<compile_context>
chip_gen: v7x
topology: tpu7x:2x2x1
jax: 0.10.0
libtpu: 0.0.40
codegen_flags: <defaults>
</compile_context>

<pallas_src>
import numpy as np
import jax
import jax.numpy as jnp
from jax import lax
from jax.experimental import pallas as pl
from jax.experimental.pallas import tpu as pltpu

# ---- small sizes consistent with the module structure ----
B = 2      # batch
T = 16     # sequence length
H = 128    # bert_hidden_size       (module default 768, shrunk)
HL = 64    # lstm_hidden_size       (module default 512, shrunk)
C = 128    # classifier_hidden_size (module default 512, shrunk)
R = 2 * B  # stacked recurrence rows: (segment, sample)


# ----------------------------------------------------------------------------------
# Fused kernel: pooling + cross-scaling + bidirectional LSTM finals + classifier head
# ----------------------------------------------------------------------------------
def _concept_sim_kernel(xdup_ref, poolw_ref, seg_ref, hc0_ref,
                        wih_f_ref, whh_f_ref, bias_f_ref,
                        wih_r_ref, whh_r_ref, bias_r_ref,
                        w1_ref, b1_ref, w2_ref, b2_ref,
                        o_ref,
                        gf_ref, gr_ref):
    bf16 = jnp.bfloat16
    f32 = jnp.float32

    # -- segment mean-pooling + cross-scaling via one MXU matmul (1/n folded in poolw) --
    xdup = xdup_ref[...]                                    # (T*2B, H), row = t*2B + seg*B + b
    scale = jnp.dot(poolw_ref[...].astype(bf16), xdup.astype(bf16),
                    preferred_element_type=f32)             # row r: pooled mean of the OTHER segment
    x_in = (xdup * scale).astype(bf16)                      # cross-scaled LSTM inputs

    # -- hoisted input projections (+ folded biases) for both directions --
    gf_ref[...] = jnp.dot(x_in, wih_f_ref[...].astype(bf16),
                          preferred_element_type=f32) + bias_f_ref[...]
    gr_ref[...] = jnp.dot(x_in, wih_r_ref[...].astype(bf16),
                          preferred_element_type=f32) + bias_r_ref[...]

    whh_f = whh_f_ref[...].astype(bf16)
    whh_r = whh_r_ref[...].astype(bf16)
    lo = seg_ref[:, 0:1]                                    # (2B, 1) valid time range [lo, hi)
    hi = seg_ref[:, 1:2]

    def lstm_update(g, h, c, valid):
        i_g = jax.nn.sigmoid(g[:, 0 * HL:1 * HL])
        f_g = jax.nn.sigmoid(g[:, 1 * HL:2 * HL])
        g_g = jnp.tanh(g[:, 2 * HL:3 * HL])
        o_g = jax.nn.sigmoid(g[:, 3 * HL:4 * HL])
        c_new = f_g * c + i_g * g_g
        h_new = o_g * jnp.tanh(c_new)
        return jnp.where(valid, h_new, h), jnp.where(valid, c_new, c)

    def step(j, carry):
        h_f, c_f, h_r, c_r = carry
        t_r = T - 1 - j
        g_f = gf_ref[pl.ds(j * R, R), :] + jnp.dot(h_f.astype(bf16), whh_f,
                                                   preferred_element_type=f32)
        g_r = gr_ref[pl.ds(t_r * R, R), :] + jnp.dot(h_r.astype(bf16), whh_r,
                                                     preferred_element_type=f32)
        h_f, c_f = lstm_update(g_f, h_f, c_f, jnp.logical_and(j >= lo, j < hi))
        h_r, c_r = lstm_update(g_r, h_r, c_r, jnp.logical_and(t_r >= lo, t_r < hi))
        return (h_f, c_f, h_r, c_r)

    h_f, c_f, h_r, c_r = lax.fori_loop(
        0, T, step, (hc0_ref[0], hc0_ref[1], hc0_ref[2], hc0_ref[3]), unroll=True)

    # -- fused classifier head: sigmoid(linear_2(relu(linear_1(concat)))) --
    # feature order per sample: [cls, s1_fwd, s1_bwd, s2_fwd, s2_bwd]; W1 is sliced
    # row-block-wise so no lane concatenation of the feature vector is needed.
    cls = xdup_ref[0:B, :]                                  # rows (t=0, seg=0, b) = CLS vectors
    w1 = w1_ref[...].astype(bf16)
    h1 = (jnp.dot(cls.astype(bf16),        w1[0:H],                   preferred_element_type=f32)
          + jnp.dot(h_f[0:B].astype(bf16), w1[H:H + HL],              preferred_element_type=f32)
          + jnp.dot(h_r[0:B].astype(bf16), w1[H + HL:H + 2 * HL],     preferred_element_type=f32)
          + jnp.dot(h_f[B:R].astype(bf16), w1[H + 2 * HL:H + 3 * HL], preferred_element_type=f32)
          + jnp.dot(h_r[B:R].astype(bf16), w1[H + 3 * HL:H + 4 * HL], preferred_element_type=f32)
          + b1_ref[...])
    h1 = jnp.maximum(h1, 0.0)
    # TODO(synk): nn.Dropout treated as identity (eval-mode semantics).
    logit = jnp.dot(h1.astype(bf16), w2_ref[...].astype(bf16),
                    preferred_element_type=f32) + b2_ref[...]
    o_ref[...] = jax.nn.sigmoid(logit)


# ----------------------------------------------------------------------------------
# Host-side glue: the scalar split_bert_output logic (mirrors the PyTorch code)
# ----------------------------------------------------------------------------------
def split_bert_output(attn_row, seg_row):
    x, y = 0, 0
    previous = -1
    for i in range(attn_row.shape[0]):
        if (attn_row[i] == 1 and seg_row[i] == 1
                and attn_row[previous] == 1 and seg_row[previous] == 0):
            x = previous
        if (attn_row[i] == 0 and seg_row[i] == 0
                and attn_row[previous] == 1 and seg_row[previous] == 1):
            y = previous
        previous += 1
    return x, y


def conceptual_similarity_forward(bert_out, attn_mask, seg, h_0, c_0,
                                  wih_f, whh_f, b_f, wih_r, whh_r, b_r,
                                  w1, b1, w2, b2):
    attn_np = np.asarray(attn_mask)
    seg_np = np.asarray(seg)

    # Host: split_bert_output (same .item()-style loop as the PyTorch module) and the
    # derived pooling-weight matrix (mean pooling with 1/n and the s1<->s2 cross-swap
    # folded in; empty segments guarded with n >= 1) + per-row valid time ranges.
    poolw = np.zeros((T * R, T * R), np.float32)
    seg_lohi = np.zeros((R, 2), np.int32)
    for b in range(B):
        x, y = split_bert_output(attn_np[b], seg_np[b])
        n1 = max(x - 1, 1)       # |s1| = positions 1 .. x-1
        n2 = max(y - x - 1, 1)   # |s2| = positions x+1 .. y-1
        seg_lohi[b] = (1, x)
        seg_lohi[B + b] = (x + 1, y)
        for t in range(T):
            r_s1 = t * R + b         # s1 input rows: scaled by s2 pooled mean
            r_s2 = t * R + B + b     # s2 input rows: scaled by s1 pooled mean
            for tp in range(x + 1, y):
                poolw[r_s1, tp * R + b] = 1.0 / n2
            for tp in range(1, x):
                poolw[r_s2, tp * R + b] = 1.0 / n1

    # Layout plumbing (host/XLA): time-major + row duplication so the kernel only ever
    # touches a lane-dense 2-D (T*2B, H) slab; row index = t*2B + seg*B + b.
    out_tbh = jnp.transpose(bert_out, (1, 0, 2))                          # (T, B, H)
    xdup = jnp.broadcast_to(out_tbh[:, None], (T, 2, B, H)).reshape(T * R, H)

    # Stacked initial states, row order (seg, b): both segments share h_0/c_0 per sample.
    hc0 = jnp.stack([jnp.concatenate([h_0[0], h_0[0]], axis=0),
                     jnp.concatenate([c_0[0], c_0[0]], axis=0),
                     jnp.concatenate([h_0[1], h_0[1]], axis=0),
                     jnp.concatenate([c_0[1], c_0[1]], axis=0)], axis=0)  # (4, 2B, HL)

    in_specs = [pl.BlockSpec(memory_space=pltpu.MemorySpace.VMEM) for _ in range(14)]
    return pl.pallas_call(
        _concept_sim_kernel,
        out_shape=jax.ShapeDtypeStruct((B, 1), jnp.float32),
        in_specs=in_specs,
        out_specs=pl.BlockSpec(memory_space=pltpu.MemorySpace.VMEM),
        scratch_shapes=[pltpu.VMEM((T * R, 4 * HL), jnp.float32),
                        pltpu.VMEM((T * R, 4 * HL), jnp.float32)],
    )(xdup, jnp.asarray(poolw), jnp.asarray(seg_lohi), hc0,
      wih_f, whh_f, b_f, wih_r, whh_r, b_r, w1, b1, w2, b2)


if __name__ == "__main__":
    key = jax.random.PRNGKey(0)
    ks = jax.random.split(key, 10)

    # Synthetic stand-in for BertModel(...)[0] (last_hidden_state).
    bert_out = jax.random.normal(ks[0], (B, T, H), jnp.float32)

    # attention mask / token-type ids: [CLS] s1 [SEP] s2 [SEP] pad...
    attn_mask = np.zeros((B, T), np.int32)
    seg = np.zeros((B, T), np.int32)
    attn_mask[0, :13] = 1; seg[0, 7:13] = 1      # x=6, y=12
    attn_mask[1, :10] = 1; seg[1, 5:10] = 1      # x=4, y=9

    def winit(k, shape, fan_in):
        return (jax.random.normal(k, shape, jnp.float32) / np.sqrt(fan_in)).astype(jnp.float32)

    # LSTM weights stored pre-transposed (in, 4*HL), gate order (i, f, g, o);
    # bias is the folded b_ih + b_hh.  Linear weights stored (in, out).
    wih_f = winit(ks[1], (H, 4 * HL), H)
    whh_f = winit(ks[2], (HL, 4 * HL), HL)
    b_f = winit(ks[3], (1, 4 * HL), 4 * HL)
    wih_r = winit(ks[4], (H, 4 * HL), H)
    whh_r = winit(ks[5], (HL, 4 * HL), HL)
    b_r = winit(ks[6], (1, 4 * HL), 4 * HL)

    h_0 = jax.random.normal(ks[7], (2, B, HL), jnp.float32) * 0.1   # (num_dirs, B, HL)
    c_0 = jax.random.normal(ks[8], (2, B, HL), jnp.float32) * 0.1

    kk = jax.random.split(ks[9], 4)
    D = H + 4 * HL
    w1 = winit(kk[0], (D, C), D)
    b1 = winit(kk[1], (1, C), C)
    w2 = winit(kk[2], (C, 1), C)
    b2 = winit(kk[3], (1, 1), 1)

    # ---- Pallas forward (single fused kernel) ----
    out = jax.block_until_ready(
        conceptual_similarity_forward(bert_out, attn_mask, seg, h_0, c_0,
                                      wih_f, whh_f, b_f, wih_r, whh_r, b_r,
                                      w1, b1, w2, b2))               # (B, 1)

    # ---- pure-JAX f32 reference (explicit slicing, no masking) ----
    def lstm_final_ref(x_seq, h0, c0, wih, whh, bias):
        def step(carry, x_t):
            h, c = carry
            g = x_t @ wih + h @ whh + bias[0]
            i_g = jax.nn.sigmoid(g[0 * HL:1 * HL])
            f_g = jax.nn.sigmoid(g[1 * HL:2 * HL])
            g_g = jnp.tanh(g[2 * HL:3 * HL])
            o_g = jax.nn.sigmoid(g[3 * HL:4 * HL])
            c = f_g * c + i_g * g_g
            h = o_g * jnp.tanh(c)
            return (h, c), None
        (h, _), _ = lax.scan(step, (h0, c0), x_seq)
        return h

    ref_rows = []
    for bidx in range(B):
        bx, by = split_bert_output(attn_mask[bidx], seg[bidx])
        s1 = bert_out[bidx, 1:bx, :]
        s2 = bert_out[bidx, bx + 1:by, :]
        s1_p = jnp.mean(s1, axis=0)
        s2_p = jnp.mean(s2, axis=0)
        s1_in = s1 * s2_p
        s2_in = s2 * s1_p
        s1_hf = lstm_final_ref(s1_in, h_0[0, bidx], c_0[0, bidx], wih_f, whh_f, b_f)
        s1_hb = lstm_final_ref(s1_in[::-1], h_0[1, bidx], c_0[1, bidx], wih_r, whh_r, b_r)
        s2_hf = lstm_final_ref(s2_in, h_0[0, bidx], c_0[0, bidx], wih_f, whh_f, b_f)
        s2_hb = lstm_final_ref(s2_in[::-1], h_0[1, bidx], c_0[1, bidx], wih_r, whh_r, b_r)
        ref_rows.append(jnp.concatenate([bert_out[bidx, 0, :], s1_hf, s1_hb, s2_hf, s2_hb]))
    concat_ref = jnp.stack(ref_rows)
    out_ref_val = jax.nn.sigmoid(jnp.maximum(concat_ref @ w1 + b1, 0.0) @ w2 + b2)

    # bf16 MXU operands (f32 accumulation) in the kernel -> compare with a looser tolerance.
    np.testing.assert_allclose(np.asarray(out), np.asarray(out_ref_val), rtol=2e-2, atol=2e-2)
    print("KERNEL_OK")
</pallas_src>

<mosaic_0001>
module attributes {stable_mosaic.version = 11 : i64} {
  func.func @_concept_sim_kernel(%arg0: memref<64x128xf32, #tpu.memory_space<vmem>>, %arg1: memref<64x64xf32, #tpu.memory_space<vmem>>, %arg2: memref<4x2xi32, #tpu.memory_space<vmem>>, %arg3: memref<4x4x64xf32, #tpu.memory_space<vmem>>, %arg4: memref<128x256xf32, #tpu.memory_space<vmem>>, %arg5: memref<64x256xf32, #tpu.memory_space<vmem>>, %arg6: memref<1x256xf32, #tpu.memory_space<vmem>>, %arg7: memref<128x256xf32, #tpu.memory_space<vmem>>, %arg8: memref<64x256xf32, #tpu.memory_space<vmem>>, %arg9: memref<1x256xf32, #tpu.memory_space<vmem>>, %arg10: memref<384x128xf32, #tpu.memory_space<vmem>>, %arg11: memref<1x128xf32, #tpu.memory_space<vmem>>, %arg12: memref<128x1xf32, #tpu.memory_space<vmem>>, %arg13: memref<1x1xf32, #tpu.memory_space<vmem>>, %arg14: memref<2x1xf32, #tpu.memory_space<vmem>>, %arg15: memref<64x256xf32, #tpu.memory_space<vmem>>, %arg16: memref<64x256xf32, #tpu.memory_space<vmem>>) attributes {dimension_semantics = [], scalar_prefetch = 0 : i64, scratch_operands = 2 : i64, tpu.core_type = #tpu.core_type<tc>} {
    %c0 = arith.constant 0 : index
    %c0_0 = arith.constant 0 : index
    %0 = vector.load %arg0[%c0, %c0_0] : memref<64x128xf32, #tpu.memory_space<vmem>>, vector<64x128xf32>
    %c0_1 = arith.constant 0 : index
    %c0_2 = arith.constant 0 : index
    %1 = vector.load %arg1[%c0_1, %c0_2] : memref<64x64xf32, #tpu.memory_space<vmem>>, vector<64x64xf32>
    %2 = arith.truncf %1 : vector<64x64xf32> to vector<64x64xbf16>
    %3 = arith.truncf %0 : vector<64x128xf32> to vector<64x128xbf16>
    %cst = arith.constant dense<0.000000e+00> : vector<64x128xf32>
    %4 = tpu.matmul %2, %3, %cst {dimension_numbers = #tpu.dot_dimension_numbers<[1], [0], [0], [1], [0, 0, 1, 1], [], []>} : vector<64x64xbf16>, vector<64x128xbf16>, vector<64x128xf32> -> vector<64x128xf32>
    %5 = arith.mulf %0, %4 : vector<64x128xf32>
    %6 = arith.truncf %5 : vector<64x128xf32> to vector<64x128xbf16>
    %c0_3 = arith.constant 0 : index
    %c0_4 = arith.constant 0 : index
    %7 = vector.load %arg4[%c0_3, %c0_4] : memref<128x256xf32, #tpu.memory_space<vmem>>, vector<128x256xf32>
    %8 = arith.truncf %7 : vector<128x256xf32> to vector<128x256xbf16>
    %cst_5 = arith.constant dense<0.000000e+00> : vector<64x256xf32>
    %9 = tpu.matmul %6, %8, %cst_5 {dimension_numbers = #tpu.dot_dimension_numbers<[1], [0], [0], [1], [0, 0, 1, 1], [], []>} : vector<64x128xbf16>, vector<128x256xbf16>, vector<64x256xf32> -> vector<64x256xf32>
    %c0_6 = arith.constant 0 : index
    %c0_7 = arith.constant 0 : index
    %10 = vector.load %arg6[%c0_6, %c0_7] : memref<1x256xf32, #tpu.memory_space<vmem>>, vector<1x256xf32>
    %11 = vector.broadcast %10 : vector<1x256xf32> to vector<64x256xf32>
    %12 = arith.addf %9, %11 : vector<64x256xf32>
    %c0_8 = arith.constant 0 : index
    %c0_9 = arith.constant 0 : index
    %13 = vector.load %arg15[%c0_8, %c0_9] : memref<64x256xf32, #tpu.memory_space<vmem>>, vector<64x256xf32>
    tpu.vector_store %arg15[%c0_8, %c0_9], %12 {strides = array<i32>} : memref<64x256xf32, #tpu.memory_space<vmem>>, vector<64x256xf32>,
    %c0_10 = arith.constant 0 : index
    %c0_11 = arith.constant 0 : index
    %14 = vector.load %arg7[%c0_10, %c0_11] : memref<128x256xf32, #tpu.memory_space<vmem>>, vector<128x256xf32>
    %15 = arith.truncf %14 : vector<128x256xf32> to vector<128x256xbf16>
    %cst_12 = arith.constant dense<0.000000e+00> : vector<64x256xf32>
    %16 = tpu.matmul %6, %15, %cst_12 {dimension_numbers = #tpu.dot_dimension_numbers<[1], [0], [0], [1], [0, 0, 1, 1], [], []>} : vector<64x128xbf16>, vector<128x256xbf16>, vector<64x256xf32> -> vector<64x256xf32>
    %c0_13 = arith.constant 0 : index
    %c0_14 = arith.constant 0 : index
    %17 = vector.load %arg9[%c0_13, %c0_14] : memref<1x256xf32, #tpu.memory_space<vmem>>, vector<1x256xf32>
    %18 = vector.broadcast %17 : vector<1x256xf32> to vector<64x256xf32>
    %19 = arith.addf %16, %18 : vector<64x256xf32>
    %c0_15 = arith.constant 0 : index
    %c0_16 = arith.constant 0 : index
    %20 = vector.load %arg16[%c0_15, %c0_16] : memref<64x256xf32, #tpu.memory_space<vmem>>, vector<64x256xf32>
    tpu.vector_store %arg16[%c0_15, %c0_16], %19 {strides = array<i32>} : memref<64x256xf32, #tpu.memory_space<vmem>>, vector<64x256xf32>,
    %c0_17 = arith.constant 0 : index
    %c0_18 = arith.constant 0 : index
    %21 = vector.load %arg5[%c0_17, %c0_18] : memref<64x256xf32, #tpu.memory_space<vmem>>, vector<64x256xf32>
    %22 = arith.truncf %21 : vector<64x256xf32> to vector<64x256xbf16>
    %c0_19 = arith.constant 0 : index
    %c0_20 = arith.constant 0 : index
    %23 = vector.load %arg8[%c0_19, %c0_20] : memref<64x256xf32, #tpu.memory_space<vmem>>, vector<64x256xf32>
    %24 = arith.truncf %23 : vector<64x256xf32> to vector<64x256xbf16>
    %c0_21 = arith.constant 0 : index
    %c0_22 = arith.constant 0 : index
    %25 = vector.load %arg2[%c0_21, %c0_22] : memref<4x2xi32, #tpu.memory_space<vmem>>, vector<4x1xi32>
    %c0_23 = arith.constant 0 : index
    %c1 = arith.constant 1 : index
    %26 = vector.load %arg2[%c0_23, %c1] : memref<4x2xi32, #tpu.memory_space<vmem>>, vector<4x1xi32>
    %c0_24 = arith.constant 0 : index
    %c0_25 = arith.constant 0 : index
    %c0_26 = arith.constant 0 : index
    %27 = vector.load %arg3[%c0_24, %c0_25, %c0_26] : memref<4x4x64xf32, #tpu.memory_space<vmem>>, vector<1x4x64xf32>
    %28 = vector.shape_cast %27 : vector<1x4x64xf32> to vector<4x64xf32>
    %c1_27 = arith.constant 1 : index
    %c0_28 = arith.constant 0 : index
    %c0_29 = arith.constant 0 : index
    %29 = vector.load %arg3[%c1_27, %c0_28, %c0_29] : memref<4x4x64xf32, #tpu.memory_space<vmem>>, vector<1x4x64xf32>
    %30 = vector.shape_cast %29 : vector<1x4x64xf32> to vector<4x64xf32>
    %c2 = arith.constant 2 : index
    %c0_30 = arith.constant 0 : index
    %c0_31 = arith.constant 0 : index
    %31 = vector.load %arg3[%c2, %c0_30, %c0_31] : memref<4x4x64xf32, #tpu.memory_space<vmem>>, vector<1x4x64xf32>
    %32 = vector.shape_cast %31 : vector<1x4x64xf32> to vector<4x64xf32>
    %c3 = arith.constant 3 : index
    %c0_32 = arith.constant 0 : index
    %c0_33 = arith.constant 0 : index
    %33 = vector.load %arg3[%c3, %c0_32, %c0_33] : memref<4x4x64xf32, #tpu.memory_space<vmem>>, vector<1x4x64xf32>
    %34 = vector.shape_cast %33 : vector<1x4x64xf32> to vector<4x64xf32>
    %c0_i32 = arith.constant 0 : i32
    %c15_i32 = arith.constant 15 : i32
    %35 = arith.subi %c15_i32, %c0_i32 : i32
    %c4_i32 = arith.constant 4 : i32
    %36 = arith.muli %c0_i32, %c4_i32 : i32
    %37 = arith.index_cast %36 : i32 to index
    %c0_34 = arith.constant 0 : index
    %38 = vector.load %arg15[%37, %c0_34] : memref<64x256xf32, #tpu.memory_space<vmem>>, vector<4x256xf32>
    %39 = arith.truncf %28 : vector<4x64xf32> to vector<4x64xbf16>
    %cst_35 = arith.constant dense<0.000000e+00> : vector<4x256xf32>
    %40 = tpu.matmul %39, %22, %cst_35 {dimension_numbers = #tpu.dot_dimension_numbers<[1], [0], [0], [1], [0, 0, 1, 1], [], []>} : vector<4x64xbf16>, vector<64x256xbf16>, vector<4x256xf32> -> vector<4x256xf32>
    %41 = arith.addf %38, %40 : vector<4x256xf32>
    %c4_i32_36 = arith.constant 4 : i32
    %42 = arith.muli %35, %c4_i32_36 : i32
    %43 = arith.index_cast %42 : i32 to index
    %c0_37 = arith.constant 0 : index
    %44 = vector.load %arg16[%43, %c0_37] : memref<64x256xf32, #tpu.memory_space<vmem>>, vector<4x256xf32>
    %45 = arith.truncf %32 : vector<4x64xf32> to vector<4x64xbf16>
    %cst_38 = arith.constant dense<0.000000e+00> : vector<4x256xf32>
    %46 = tpu.matmul %45, %24, %cst_38 {dimension_numbers = #tpu.dot_dimension_numbers<[1], [0], [0], [1], [0, 0, 1, 1], [], []>} : vector<4x64xbf16>, vector<64x256xbf16>, vector<4x256xf32> -> vector<4x256xf32>
    %47 = arith.addf %44, %46 : vector<4x256xf32>
    %48 = vector.broadcast %c0_i32 : i32 to vector<4x1xi32>
    %49 = arith.cmpi sge, %48, %25 : vector<4x1xi32>
    %50 = vector.broadcast %c0_i32 : i32 to vector<4x1xi32>
    %51 = arith.cmpi slt, %50, %26 : vector<4x1xi32>
    %52 = arith.andi %49, %51 : vector<4x1xi1>
    %53 = vector.extract_strided_slice %41 {offsets = [0, 0], sizes = [4, 64], strides = [1, 1]} : vector<4x256xf32> to vector<4x64xf32>
    %54 = arith.negf %53 : vector<4x64xf32>
    %55 = math.exp %54 : vector<4x64xf32>
    %cst_39 = arith.constant 1.000000e+00 : f32
    %56 = vector.broadcast %cst_39 : f32 to vector<4x64xf32>
    %57 = arith.addf %56, %55 : vector<4x64xf32>
    %58 = arith.divf %56, %57 : vector<4x64xf32>
    %59 = vector.extract_strided_slice %41 {offsets = [0, 64], sizes = [4, 64], strides = [1, 1]} : vector<4x256xf32> to vector<4x64xf32>
    %60 = arith.negf %59 : vector<4x64xf32>
    %61 = math.exp %60 : vector<4x64xf32>
    %cst_40 = arith.constant 1.000000e+00 : f32
    %62 = vector.broadcast %cst_40 : f32 to vector<4x64xf32>
    %63 = arith.addf %62, %61 : vector<4x64xf32>
    %64 = arith.divf %62, %63 : vector<4x64xf32>
    %65 = vector.extract_strided_slice %41 {offsets = [0, 128], sizes = [4, 64], strides = [1, 1]} : vector<4x256xf32> to vector<4x64xf32>
    %66 = math.tanh %65 : vector<4x64xf32>
    %67 = vector.extract_strided_slice %41 {offsets = [0, 192], sizes = [4, 64], strides = [1, 1]} : vector<4x256xf32> to vector<4x64xf32>
    %68 = arith.negf %67 : vector<4x64xf32>
    %69 = math.exp %68 : vector<4x64xf32>
    %cst_41 = arith.constant 1.000000e+00 : f32
    %70 = vector.broadcast %cst_41 : f32 to vector<4x64xf32>
    %71 = arith.addf %70, %69 : vector<4x64xf32>
    %72 = arith.divf %70, %71 : vector<4x64xf32>
    %73 = arith.mulf %64, %30 : vector<4x64xf32>
    %74 = arith.mulf %58, %66 : vector<4x64xf32>
    %75 = arith.addf %73, %74 : vector<4x64xf32>
    %76 = math.tanh %75 : vector<4x64xf32>
    %77 = arith.mulf %72, %76 : vector<4x64xf32>
    %78 = vector.shape_cast %52 : vector<4x1xi1> to vector<4x1xi1>
    %79 = vector.broadcast %78 : vector<4x1xi1> to vector<4x64xi1>
    %80 = arith.select %79, %77, %28 : vector<4x64xi1>, vector<4x64xf32>
    %81 = vector.shape_cast %52 : vector<4x1xi1> to vector<4x1xi1>
    %82 = vector.broadcast %81 : vector<4x1xi1> to vector<4x64xi1>
    %83 = arith.select %82, %75, %30 : vector<4x64xi1>, vector<4x64xf32>
    %84 = vector.broadcast %35 : i32 to vector<4x1xi32>
    %85 = arith.cmpi sge, %84, %25 : vector<4x1xi32>
    %86 = vector.broadcast %35 : i32 to vector<4x1xi32>
    %87 = arith.cmpi slt, %86, %26 : vector<4x1xi32>
    %88 = arith.andi %85, %87 : vector<4x1xi1>
    %89 = vector.extract_strided_slice %47 {offsets = [0, 0], sizes = [4, 64], strides = [1, 1]} : vector<4x256xf32> to vector<4x64xf32>
    %90 = arith.negf %89 : vector<4x64xf32>
    %91 = math.exp %90 : vector<4x64xf32>
    %cst_42 = arith.constant 1.000000e+00 : f32
    %92 = vector.broadcast %cst_42 : f32 to vector<4x64xf32>
    %93 = arith.addf %92, %91 : vector<4x64xf32>
    %94 = arith.divf %92, %93 : vector<4x64xf32>
    %95 = vector.extract_strided_slice %47 {offsets = [0, 64], sizes = [4, 64], strides = [1, 1]} : vector<4x256xf32> to vector<4x64xf32>
    %96 = arith.negf %95 : vector<4x64xf32>
    %97 = math.exp %96 : vector<4x64xf32>
    %cst_43 = arith.constant 1.000000e+00 : f32
    %98 = vector.broadcast %cst_43 : f32 to vector<4x64xf32>
    %99 = arith.addf %98, %97 : vector<4x64xf32>
    %100 = arith.divf %98, %99 : vector<4x64xf32>
    %101 = vector.extract_strided_slice %47 {offsets = [0, 128], sizes = [4, 64], strides = [1, 1]} : vector<4x256xf32> to vector<4x64xf32>
    %102 = math.tanh %101 : vector<4x64xf32>
    %103 = vector.extract_strided_slice %47 {offsets = [0, 192], sizes = [4, 64], strides = [1, 1]} : vector<4x256xf32> to vector<4x64xf32>
    %104 = arith.negf %103 : vector<4x64xf32>
    %105 = math.exp %104 : vector<4x64xf32>
    %cst_44 = arith.constant 1.000000e+00 : f32
    %106 = vector.broadcast %cst_44 : f32 to vector<4x64xf32>
    %107 = arith.addf %106, %105 : vector<4x64xf32>
    %108 = arith.divf %106, %107 : vector<4x64xf32>
    %109 = arith.mulf %100, %34 : vector<4x64xf32>
    %110 = arith.mulf %94, %102 : vector<4x64xf32>
    %111 = arith.addf %109, %110 : vector<4x64xf32>
    %112 = math.tanh %111 : vector<4x64xf32>
    %113 = arith.mulf %108, %112 : vector<4x64xf32>
    %114 = vector.shape_cast %88 : vector<4x1xi1> to vector<4x1xi1>
    %115 = vector.broadcast %114 : vector<4x1xi1> to vector<4x64xi1>
    %116 = arith.select %115, %113, %32 : vector<4x64xi1>, vector<4x64xf32>
    %117 = vector.shape_cast %88 : vector<4x1xi1> to vector<4x1xi1>
    %118 = vector.broadcast %117 : vector<4x1xi1> to vector<4x64xi1>
    %119 = arith.select %118, %111, %34 : vector<4x64xi1>, vector<4x64xf32>
    %c1_i32 = arith.constant 1 : i32
    %c15_i32_45 = arith.constant 15 : i32
    %120 = arith.subi %c15_i32_45, %c1_i32 : i32
    %c4_i32_46 = arith.constant 4 : i32
    %121 = arith.muli %c1_i32, %c4_i32_46 : i32
    %122 = arith.index_cast %121 : i32 to index
    %c0_47 = arith.constant 0 : index
    %123 = vector.load %arg15[%122, %c0_47] : memref<64x256xf32, #tpu.memory_space<vmem>>, vector<4x256xf32>
    %124 = arith.truncf %80 : vector<4x64xf32> to vector<4x64xbf16>
    %cst_48 = arith.constant dense<0.000000e+00> : vector<4x256xf32>
    %125 = tpu.matmul %124, %22, %cst_48 {dimension_numbers = #tpu.dot_dimension_numbers<[1], [0], [0], [1], [0, 0, 1, 1], [], []>} : vector<4x64xbf16>, vector<64x256xbf16>, vector<4x256xf32> -> vector<4x256xf32>
    %126 = arith.addf %123, %125 : vector<4x256xf32>
    %c4_i32_49 = arith.constant 4 : i32
    %127 = arith.muli %120, %c4_i32_49 : i32
    %128 = arith.index_cast %127 : i32 to index
    %c0_50 = arith.constant 0 : index
    %129 = vector.load %arg16[%128, %c0_50] : memref<64x256xf32, #tpu.memory_space<vmem>>, vector<4x256xf32>
    %130 = arith.truncf %116 : vector<4x64xf32> to vector<4x64xbf16>
    %cst_51 = arith.constant dense<0.000000e+00> : vector<4x256xf32>
    %131 = tpu.matmul %130, %24, %cst_51 {dimension_numbers = #tpu.dot_dimension_numbers<[1], [0], [0], [1], [0, 0, 1, 1], [], []>} : vector<4x64xbf16>, vector<64x256xbf16>, vector<4x256xf32> -> vector<4x256xf32>
    %132 = arith.addf %129, %131 : vector<4x256xf32>
    %133 = vector.broadcast %c1_i32 : i32 to vector<4x1xi32>
    %134 = arith.cmpi sge, %133, %25 : vector<4x1xi32>
    %135 = vector.broadcast %c1_i32 : i32 to vector<4x1xi32>
    %136 = arith.cmpi slt, %135, %26 : vector<4x1xi32>
    %137 = arith.andi %134, %136 : vector<4x1xi1>
    %138 = vector.extract_strided_slice %126 {offsets = [0, 0], sizes = [4, 64], strides = [1, 1]} : vector<4x256xf32> to vector<4x64xf32>
    %139 = arith.negf %138 : vector<4x64xf32>
    %140 = math.exp %139 : vector<4x64xf32>
    %cst_52 = arith.constant 1.000000e+00 : f32
    %141 = vector.broadcast %cst_52 : f32 to vector<4x64xf32>
    %142 = arith.addf %141, %140 : vector<4x64xf32>
    %143 = arith.divf %141, %142 : vector<4x64xf32>
    %144 = vector.extract_strided_slice %126 {offsets = [0, 64], sizes = [4, 64], strides = [1, 1]} : vector<4x256xf32> to vector<4x64xf32>
    %145 = arith.negf %144 : vector<4x64xf32>
    %146 = math.exp %145 : vector<4x64xf32>
    %cst_53 = arith.constant 1.000000e+00 : f32
    %147 = vector.broadcast %cst_53 : f32 to vector<4x64xf32>
    %148 = arith.addf %147, %146 : vector<4x64xf32>
    %149 = arith.divf %147, %148 : vector<4x64xf32>
    %150 = vector.extract_strided_slice %126 {offsets = [0, 128], sizes = [4, 64], strides = [1, 1]} : vector<4x256xf32> to vector<4x64xf32>
    %151 = math.tanh %150 : vector<4x64xf32>
    %152 = vector.extract_strided_slice %126 {offsets = [0, 192], sizes = [4, 64], strides = [1, 1]} : vector<4x256xf32> to vector<4x64xf32>
    %153 = arith.negf %152 : vector<4x64xf32>
    %154 = math.exp %153 : vector<4x64xf32>
    %cst_54 = arith.constant 1.000000e+00 : f32
    %155 = vector.broadcast %cst_54 : f32 to vector<4x64xf32>
    %156 = arith.addf %155, %154 : vector<4x64xf32>
    %157 = arith.divf %155, %156 : vector<4x64xf32>
    %158 = arith.mulf %149, %83 : vector<4x64xf32>
    %159 = arith.mulf %143, %151 : vector<4x64xf32>
    %160 = arith.addf %158, %159 : vector<4x64xf32>
    %161 = math.tanh %160 : vector<4x64xf32>
    %162 = arith.mulf %157, %161 : vector<4x64xf32>
    %163 = vector.shape_cast %137 : vector<4x1xi1> to vector<4x1xi1>
    %164 = vector.broadcast %163 : vector<4x1xi1> to vector<4x64xi1>
    %165 = arith.select %164, %162, %80 : vector<4x64xi1>, vector<4x64xf32>
    %166 = vector.shape_cast %137 : vector<4x1xi1> to vector<4x1xi1>
    %167 = vector.broadcast %166 : vector<4x1xi1> to vector<4x64xi1>
    %168 = arith.select %167, %160, %83 : vector<4x64xi1>, vector<4x64xf32>
    %169 = vector.broadcast %120 : i32 to vector<4x1xi32>
    %170 = arith.cmpi sge, %169, %25 : vector<4x1xi32>
    %171 = vector.broadcast %120 : i32 to vector<4x1xi32>
    %172 = arith.cmpi slt, %171, %26 : vector<4x1xi32>
    %173 = arith.andi %170, %172 : vector<4x1xi1>
    %174 = vector.extract_strided_slice %132 {offsets = [0, 0], sizes = [4, 64], strides = [1, 1]} : vector<4x256xf32> to vector<4x64xf32>
    %175 = arith.negf %174 : vector<4x64xf32>
    %176 = math.exp %175 : vector<4x64xf32>
    %cst_55 = arith.constant 1.000000e+00 : f32
    %177 = vector.broadcast %cst_55 : f32 to vector<4x64xf32>
    %178 = arith.addf %177, %176 : vector<4x64xf32>
    %179 = arith.divf %177, %178 : vector<4x64xf32>
    %180 = vector.extract_strided_slice %132 {offsets = [0, 64], sizes = [4, 64], strides = [1, 1]} : vector<4x256xf32> to vector<4x64xf32>
    %181 = arith.negf %180 : vector<4x64xf32>
    %182 = math.exp %181 : vector<4x64xf32>
    %cst_56 = arith.constant 1.000000e+00 : f32
    %183 = vector.broadcast %cst_56 : f32 to vector<4x64xf32>
    %184 = arith.addf %183, %182 : vector<4x64xf32>
    %185 = arith.divf %183, %184 : vector<4x64xf32>
    %186 = vector.extract_strided_slice %132 {offsets = [0, 128], sizes = [4, 64], strides = [1, 1]} : vector<4x256xf32> to vector<4x64xf32>
    %187 = math.tanh %186 : vector<4x64xf32>
    %188 = vector.extract_strided_slice %132 {offsets = [0, 192], sizes = [4, 64], strides = [1, 1]} : vector<4x256xf32> to vector<4x64xf32>
    %189 = arith.negf %188 : vector<4x64xf32>
    %190 = math.exp %189 : vector<4x64xf32>
    %cst_57 = arith.constant 1.000000e+00 : f32
    %191 = vector.broadcast %cst_57 : f32 to vector<4x64xf32>
    %192 = arith.addf %191, %190 : vector<4x64xf32>
    %193 = arith.divf %191, %192 : vector<4x64xf32>
    %194 = arith.mulf %185, %119 : vector<4x64xf32>
    %195 = arith.mulf %179, %187 : vector<4x64xf32>
    %196 = arith.addf %194, %195 : vector<4x64xf32>
    %197 = math.tanh %196 : vector<4x64xf32>
    %198 = arith.mulf %193, %197 : vector<4x64xf32>
    %199 = vector.shape_cast %173 : vector<4x1xi1> to vector<4x1xi1>
    %200 = vector.broadcast %199 : vector<4x1xi1> to vector<4x64xi1>
    %201 = arith.select %200, %198, %116 : vector<4x64xi1>, vector<4x64xf32>
    %202 = vector.shape_cast %173 : vector<4x1xi1> to vector<4x1xi1>
    %203 = vector.broadcast %202 : vector<4x1xi1> to vector<4x64xi1>
    %204 = arith.select %203, %196, %119 : vector<4x64xi1>, vector<4x64xf32>
    %c2_i32 = arith.constant 2 : i32
    %c15_i32_58 = arith.constant 15 : i32
    %205 = arith.subi %c15_i32_58, %c2_i32 : i32
    %c4_i32_59 = arith.constant 4 : i32
    %206 = arith.muli %c2_i32, %c4_i32_59 : i32
    %207 = arith.index_cast %206 : i32 to index
    %c0_60 = arith.constant 0 : index
    %208 = vector.load %arg15[%207, %c0_60] : memref<64x256xf32, #tpu.memory_space<vmem>>, vector<4x256xf32>
    %209 = arith.truncf %165 : vector<4x64xf32> to vector<4x64xbf16>
    %cst_61 = arith.constant dense<0.000000e+00> : vector<4x256xf32>
    %210 = tpu.matmul %209, %22, %cst_61 {dimension_numbers = #tpu.dot_dimension_numbers<[1], [0], [0], [1], [0, 0, 1, 1], [], []>} : vector<4x64xbf16>, vector<64x256xbf16>, vector<4x256xf32> -> vector<4x256xf32>
    %211 = arith.addf %208, %210 : vector<4x256xf32>
    %c4_i32_62 = arith.constant 4 : i32
    %212 = arith.muli %205, %c4_i32_62 : i32
    %213 = arith.index_cast %212 : i32 to index
    %c0_63 = arith.constant 0 : index
    %214 = vector.load %arg16[%213, %c0_63] : memref<64x256xf32, #tpu.memory_space<vmem>>, vector<4x256xf32>
    %215 = arith.truncf %201 : vector<4x64xf32> to vector<4x64xbf16>
    %cst_64 = arith.constant dense<0.000000e+00> : vector<4x256xf32>
    %216 = tpu.matmul %215, %24, %cst_64 {dimension_numbers = #tpu.dot_dimension_numbers<[1], [0], [0], [1], [0, 0, 1, 1], [], []>} : vector<4x64xbf16>, vector<64x256xbf16>, vector<4x256xf32> -> vector<4x256xf32>
    %217 = arith.addf %214, %216 : vector<4x256xf32>
    %218 = vector.broadcast %c2_i32 : i32 to vector<4x1xi32>
    %219 = arith.cmpi sge, %218, %25 : vector<4x1xi32>
    %220 = vector.broadcast %c2_i32 : i32 to vector<4x1xi32>
    %221 = arith.cmpi slt, %220, %26 : vector<4x1xi32>
    %222 = arith.andi %219, %221 : vector<4x1xi1>
    %223 = vector.extract_strided_slice %211 {offsets = [0, 0], sizes = [4, 64], strides = [1, 1]} : vector<4x256xf32> to vector<4x64xf32>
    %224 = arith.negf %223 : vector<4x64xf32>
    %225 = math.exp %224 : vector<4x64xf32>
    %cst_65 = arith.constant 1.000000e+00 : f32
    %226 = vector.broadcast %cst_65 : f32 to vector<4x64xf32>
    %227 = arith.addf %226, %225 : vector<4x64xf32>
    %228 = arith.divf %226, %227 : vector<4x64xf32>
    %229 = vector.extract_strided_slice %211 {offsets = [0, 64], sizes = [4, 64], strides = [1, 1]} : vector<4x256xf32> to vector<4x64xf32>
    %230 = arith.negf %229 : vector<4x64xf32>
    %231 = math.exp %230 : vector<4x64xf32>
    %cst_66 = arith.constant 1.000000e+00 : f32
    %232 = vector.broadcast %cst_66 : f32 to vector<4x64xf32>
    %233 = arith.addf %232, %231 : vector<4x64xf32>
    %234 = arith.divf %232, %233 : vector<4x64xf32>
    %235 = vector.extract_strided_slice %211 {offsets = [0, 128], sizes = [4, 64], strides = [1, 1]} : vector<4x256xf32> to vector<4x64xf32>
    %236 = math.tanh %235 : vector<4x64xf32>
    %237 = vector.extract_strided_slice %211 {offsets = [0, 192], sizes = [4, 64], strides = [1, 1]} : vector<4x256xf32> to vector<4x64xf32>
    %238 = arith.negf %237 : vector<4x64xf32>
    %239 = math.exp %238 : vector<4x64xf32>
    %cst_67 = arith.constant 1.000000e+00 : f32
    %240 = vector.broadcast %cst_67 : f32 to vector<4x64xf32>
    %241 = arith.addf %240, %239 : vector<4x64xf32>
    %242 = arith.divf %240, %241 : vector<4x64xf32>
    %243 = arith.mulf %234, %168 : vector<4x64xf32>
    %244 = arith.mulf %228, %236 : vector<4x64xf32>
    %245 = arith.addf %243, %244 : vector<4x64xf32>
    %246 = math.tanh %245 : vector<4x64xf32>
    %247 = arith.mulf %242, %246 : vector<4x64xf32>
    %248 = vector.shape_cast %222 : vector<4x1xi1> to vector<4x1xi1>
    %249 = vector.broadcast %248 : vector<4x1xi1> to vector<4x64xi1>
    %250 = arith.select %249, %247, %165 : vector<4x64xi1>, vector<4x64xf32>
    %251 = vector.shape_cast %222 : vector<4x1xi1> to vector<4x1xi1>
    %252 = vector.broadcast %251 : vector<4x1xi1> to vector<4x64xi1>
    %253 = arith.select %252, %245, %168 : vector<4x64xi1>, vector<4x64xf32>
    %254 = vector.broadcast %205 : i32 to vector<4x1xi32>
    %255 = arith.cmpi sge, %254, %25 : vector<4x1xi32>
    %256 = vector.broadcast %205 : i32 to vector<4x1xi32>
    %257 = arith.cmpi slt, %256, %26 : vector<4x1xi32>
    %258 = arith.andi %255, %257 : vector<4x1xi1>
    %259 = vector.extract_strided_slice %217 {offsets = [0, 0], sizes = [4, 64], strides = [1, 1]} : vector<4x256xf32> to vector<4x64xf32>
    %260 = arith.negf %259 : vector<4x64xf32>
    %261 = math.exp %260 : vector<4x64xf32>
    %cst_68 = arith.constant 1.000000e+00 : f32
    %262 = vector.broadcast %cst_68 : f32 to vector<4x64xf32>
    %263 = arith.addf %262, %261 : vector<4x64xf32>
    %264 = arith.divf %262, %263 : vector<4x64xf32>
    %265 = vector.extract_strided_slice %217 {offsets = [0, 64], sizes = [4, 64], strides = [1, 1]} : vector<4x256xf32> to vector<4x64xf32>
    %266 = arith.negf %265 : vector<4x64xf32>
    %267 = math.exp %266 : vector<4x64xf32>
    %cst_69 = arith.constant 1.000000e+00 : f32
    %268 = vector.broadcast %cst_69 : f32 to vector<4x64xf32>
    %269 = arith.addf %268, %267 : vector<4x64xf32>
    %270 = arith.divf %268, %269 : vector<4x64xf32>
    %271 = vector.extract_strided_slice %217 {offsets = [0, 128], sizes = [4, 64], strides = [1, 1]} : vector<4x256xf32> to vector<4x64xf32>
    %272 = math.tanh %271 : vector<4x64xf32>
    %273 = vector.extract_strided_slice %217 {offsets = [0, 192], sizes = [4, 64], strides = [1, 1]} : vector<4x256xf32> to vector<4x64xf32>
    %274 = arith.negf %273 : vector<4x64xf32>
    %275 = math.exp %274 : vector<4x64xf32>
    %cst_70 = arith.constant 1.000000e+00 : f32
    %276 = vector.broadcast %cst_70 : f32 to vector<4x64xf32>
    %277 = arith.addf %276, %275 : vector<4x64xf32>
    %278 = arith.divf %276, %277 : vector<4x64xf32>
    %279 = arith.mulf %270, %204 : vector<4x64xf32>
    %280 = arith.mulf %264, %272 : vector<4x64xf32>
    %281 = arith.addf %279, %280 : vector<4x64xf32>
    %282 = math.tanh %281 : vector<4x64xf32>
    %283 = arith.mulf %278, %282 : vector<4x64xf32>
    %284 = vector.shape_cast %258 : vector<4x1xi1> to vector<4x1xi1>
    %285 = vector.broadcast %284 : vector<4x1xi1> to vector<4x64xi1>
    %286 = arith.select %285, %283, %201 : vector<4x64xi1>, vector<4x64xf32>
    %287 = vector.shape_cast %258 : vector<4x1xi1> to vector<4x1xi1>
    %288 = vector.broadcast %287 : vector<4x1xi1> to vector<4x64xi1>
    %289 = arith.select %288, %281, %204 : vector<4x64xi1>, vector<4x64xf32>
    %c3_i32 = arith.constant 3 : i32
    %c15_i32_71 = arith.constant 15 : i32
    %290 = arith.subi %c15_i32_71, %c3_i32 : i32
    %c4_i32_72 = arith.constant 4 : i32
    %291 = arith.muli %c3_i32, %c4_i32_72 : i32
    %292 = arith.index_cast %291 : i32 to index
    %c0_73 = arith.constant 0 : index
    %293 = vector.load %arg15[%292, %c0_73] : memref<64x256xf32, #tpu.memory_space<vmem>>, vector<4x256xf32>
    %294 = arith.truncf %250 : vector<4x64xf32> to vector<4x64xbf16>
    %cst_74 = arith.constant dense<0.000000e+00> : vector<4x256xf32>
    %295 = tpu.matmul %294, %22, %cst_74 {dimension_numbers = #tpu.dot_dimension_numbers<[1], [0], [0], [1], [0, 0, 1, 1], [], []>} : vector<4x64xbf16>, vector<64x256xbf16>, vector<4x256xf32> -> vector<4x256xf32>
    %296 = arith.addf %293, %295 : vector<4x256xf32>
    %c4_i32_75 = arith.constant 4 : i32
    %297 = arith.muli %290, %c4_i32_75 : i32
    %298 = arith.index_cast %297 : i32 to index
    %c0_76 = arith.constant 0 : index
    %299 = vector.load %arg16[%298, %c0_76] : memref<64x256xf32, #tpu.memory_space<vmem>>, vector<4x256xf32>
    %300 = arith.truncf %286 : vector<4x64xf32> to vector<4x64xbf16>
    %cst_77 = arith.constant dense<0.000000e+00> : vector<4x256xf32>
    %301 = tpu.matmul %300, %24, %cst_77 {dimension_numbers = #tpu.dot_dimension_numbers<[1], [0], [0], [1], [0, 0, 1, 1], [], []>} : vector<4x64xbf16>, vector<64x256xbf16>, vector<4x256xf32> -> vector<4x256xf32>
    %302 = arith.addf %299, %301 : vector<4x256xf32>
    %303 = vector.broadcast %c3_i32 : i32 to vector<4x1xi32>
    %304 = arith.cmpi sge, %303, %25 : vector<4x1xi32>
    %305 = vector.broadcast %c3_i32 : i32 to vector<4x1xi32>
    %306 = arith.cmpi slt, %305, %26 : vector<4x1xi32>
    %307 = arith.andi %304, %306 : vector<4x1xi1>
    %308 = vector.extract_strided_slice %296 {offsets = [0, 0], sizes = [4, 64], strides = [1, 1]} : vector<4x256xf32> to vector<4x64xf32>
    %309 = arith.negf %308 : vector<4x64xf32>
    %310 = math.exp %309 : vector<4x64xf32>
    %cst_78 = arith.constant 1.000000e+00 : f32
    %311 = vector.broadcast %cst_78 : f32 to vector<4x64xf32>
    %312 = arith.addf %311, %310 : vector<4x64xf32>
    %313 = arith.divf %311, %312 : vector<4x64xf32>
    %314 = vector.extract_strided_slice %296 {offsets = [0, 64], sizes = [4, 64], strides = [1, 1]} : vector<4x256xf32> to vector<4x64xf32>
    %315 = arith.negf %314 : vector<4x64xf32>
    %316 = math.exp %315 : vector<4x64xf32>
    %cst_79 = arith.constant 1.000000e+00 : f32
    %317 = vector.broadcast %cst_79 : f32 to vector<4x64xf32>
    %318 = arith.addf %317, %316 : vector<4x64xf32>
    %319 = arith.divf %317, %318 : vector<4x64xf32>
    %320 = vector.extract_strided_slice %296 {offsets = [0, 128], sizes = [4, 64], strides = [1, 1]} : vector<4x256xf32> to vector<4x64xf32>
    %321 = math.tanh %320 : vector<4x64xf32>
    %322 = vector.extract_strided_slice %296 {offsets = [0, 192], sizes = [4, 64], strides = [1, 1]} : vector<4x256xf32> to vector<4x64xf32>
    %323 = arith.negf %322 : vector<4x64xf32>
    %324 = math.exp %323 : vector<4x64xf32>
    %cst_80 = arith.constant 1.000000e+00 : f32
    %325 = vector.broadcast %cst_80 : f32 to vector<4x64xf32>
    %326 = arith.addf %325, %324 : vector<4x64xf32>
    %327 = arith.divf %325, %326 : vector<4x64xf32>
    %328 = arith.mulf %319, %253 : vector<4x64xf32>
    %329 = arith.mulf %313, %321 : vector<4x64xf32>
    %330 = arith.addf %328, %329 : vector<4x64xf32>
    %331 = math.tanh %330 : vector<4x64xf32>
    %332 = arith.mulf %327, %331 : vector<4x64xf32>
    %333 = vector.shape_cast %307 : vector<4x1xi1> to vector<4x1xi1>
    %334 = vector.broadcast %333 : vector<4x1xi1> to vector<4x64xi1>
    %335 = arith.select %334, %332, %250 : vector<4x64xi1>, vector<4x64xf32>
    %336 = vector.shape_cast %307 : vector<4x1xi1> to vector<4x1xi1>
    %337 = vector.broadcast %336 : vector<4x1xi1> to vector<4x64xi1>
    %338 = arith.select %337, %330, %253 : vector<4x64xi1>, vector<4x64xf32>
    %339 = vector.broadcast %290 : i32 to vector<4x1xi32>
    %340 = arith.cmpi sge, %339, %25 : vector<4x1xi32>
    %341 = vector.broadcast %290 : i32 to vector<4x1xi32>
    %342 = arith.cmpi slt, %341, %26 : vector<4x1xi32>
    %343 = arith.andi %340, %342 : vector<4x1xi1>
    %344 = vector.extract_strided_slice %302 {offsets = [0, 0], sizes = [4, 64], strides = [1, 1]} : vector<4x256xf32> to vector<4x64xf32>
    %345 = arith.negf %344 : vector<4x64xf32>
    %346 = math.exp %345 : vector<4x64xf32>
    %cst_81 = arith.constant 1.000000e+00 : f32
    %347 = vector.broadcast %cst_81 : f32 to vector<4x64xf32>
    %348 = arith.addf %347, %346 : vector<4x64xf32>
    %349 = arith.divf %347, %348 : vector<4x64xf32>
    %350 = vector.extract_strided_slice %302 {offsets = [0, 64], sizes = [4, 64], strides = [1, 1]} : vector<4x256xf32> to vector<4x64xf32>
    %351 = arith.negf %350 : vector<4x64xf32>
    %352 = math.exp %351 : vector<4x64xf32>
    %cst_82 = arith.constant 1.000000e+00 : f32
    %353 = vector.broadcast %cst_82 : f32 to vector<4x64xf32>
    %354 = arith.addf %353, %352 : vector<4x64xf32>
    %355 = arith.divf %353, %354 : vector<4x64xf32>
    %356 = vector.extract_strided_slice %302 {offsets = [0, 128], sizes = [4, 64], strides = [1, 1]} : vector<4x256xf32> to vector<4x64xf32>
    %357 = math.tanh %356 : vector<4x64xf32>
    %358 = vector.extract_strided_slice %302 {offsets = [0, 192], sizes = [4, 64], strides = [1, 1]} : vector<4x256xf32> to vector<4x64xf32>
    %359 = arith.negf %358 : vector<4x64xf32>
    %360 = math.exp %359 : vector<4x64xf32>
    %cst_83 = arith.constant 1.000000e+00 : f32
    %361 = vector.broadcast %cst_83 : f32 to vector<4x64xf32>
    %362 = arith.addf %361, %360 : vector<4x64xf32>
    %363 = arith.divf %361, %362 : vector<4x64xf32>
    %364 = arith.mulf %355, %289 : vector<4x64xf32>
    %365 = arith.mulf %349, %357 : vector<4x64xf32>
    %366 = arith.addf %364, %365 : vector<4x64xf32>
    %367 = math.tanh %366 : vector<4x64xf32>
    %368 = arith.mulf %363, %367 : vector<4x64xf32>
    %369 = vector.shape_cast %343 : vector<4x1xi1> to vector<4x1xi1>
    %370 = vector.broadcast %369 : vector<4x1xi1> to vector<4x64xi1>
    %371 = arith.select %370, %368, %286 : vector<4x64xi1>, vector<4x64xf32>
    %372 = vector.shape_cast %343 : vector<4x1xi1> to vector<4x1xi1>
    %373 = vector.broadcast %372 : vector<4x1xi1> to vector<4x64xi1>
    %374 = arith.select %373, %366, %289 : vector<4x64xi1>, vector<4x64xf32>
    %c4_i32_84 = arith.constant 4 : i32
    %c15_i32_85 = arith.constant 15 : i32
    %375 = arith.subi %c15_i32_85, %c4_i32_84 : i32
    %c4_i32_86 = arith.constant 4 : i32
    %376 = arith.muli %c4_i32_84, %c4_i32_86 : i32
    %377 = arith.index_cast %376 : i32 to index
    %c0_87 = arith.constant 0 : index
    %378 = vector.load %arg15[%377, %c0_87] : memref<64x256xf32, #tpu.memory_space<vmem>>, vector<4x256xf32>
    %379 = arith.truncf %335 : vector<4x64xf32> to vector<4x64xbf16>
    %cst_88 = arith.constant dense<0.000000e+00> : vector<4x256xf32>
    %380 = tpu.matmul %379, %22, %cst_88 {dimension_numbers = #tpu.dot_dimension_numbers<[1], [0], [0], [1], [0, 0, 1, 1], [], []>} : vector<4x64xbf16>, vector<64x256xbf16>, vector<4x256xf32> -> vector<4x256xf32>
    %381 = arith.addf %378, %380 : vector<4x256xf32>
    %c4_i32_89 = arith.constant 4 : i32
    %382 = arith.muli %375, %c4_i32_89 : i32
    %383 = arith.index_cast %382 : i32 to index
    %c0_90 = arith.constant 0 : index
    %384 = vector.load %arg16[%383, %c0_90] : memref<64x256xf32, #tpu.memory_space<vmem>>, vector<4x256xf32>
    %385 = arith.truncf %371 : vector<4x64xf32> to vector<4x64xbf16>
    %cst_91 = arith.constant dense<0.000000e+00> : vector<4x256xf32>
    %386 = tpu.matmul %385, %24, %cst_91 {dimension_numbers = #tpu.dot_dimension_numbers<[1], [0], [0], [1], [0, 0, 1, 1], [], []>} : vector<4x64xbf16>, vector<64x256xbf16>, vector<4x256xf32> -> vector<4x256xf32>
    %387 = arith.addf %384, %386 : vector<4x256xf32>
    %388 = vector.broadcast %c4_i32_84 : i32 to vector<4x1xi32>
    %389 = arith.cmpi sge, %388, %25 : vector<4x1xi32>
    %390 = vector.broadcast %c4_i32_84 : i32 to vector<4x1xi32>
    %391 = arith.cmpi slt, %390, %26 : vector<4x1xi32>
    %392 = arith.andi %389, %391 : vector<4x1xi1>
    %393 = vector.extract_strided_slice %381 {offsets = [0, 0], sizes = [4, 64], strides = [1, 1]} : vector<4x256xf32> to vector<4x64xf32>
    %394 = arith.negf %393 : vector<4x64xf32>
    %395 = math.exp %394 : vector<4x64xf32>
    %cst_92 = arith.constant 1.000000e+00 : f32
    %396 = vector.broadcast %cst_92 : f32 to vector<4x64xf32>
    %397 = arith.addf %396, %395 : vector<4x64xf32>
    %398 = arith.divf %396, %397 : vector<4x64xf32>
    %399 = vector.extract_strided_slice %381 {offsets = [0, 64], sizes = [4, 64], strides = [1, 1]} : vector<4x256xf32> to vector<4x64xf32>
    %400 = arith.negf %399 : vector<4x64xf32>
    %401 = math.exp %400 : vector<4x64xf32>
    %cst_93 = arith.constant 1.000000e+00 : f32
    %402 = vector.broadcast %cst_93 : f32 to vector<4x64xf32>
    %403 = arith.addf %402, %401 : vector<4x64xf32>
    %404 = arith.divf %402, %403 : vector<4x64xf32>
    %405 = vector.extract_strided_slice %381 {offsets = [0, 128], sizes = [4, 64], strides = [1, 1]} : vector<4x256xf32> to vector<4x64xf32>
    %406 = math.tanh %405 : vector<4x64xf32>
    %407 = vector.extract_strided_slice %381 {offsets = [0, 192], sizes = [4, 64], strides = [1, 1]} : vector<4x256xf32> to vector<4x64xf32>
    %408 = arith.negf %407 : vector<4x64xf32>
    %409 = math.exp %408 : vector<4x64xf32>
    %cst_94 = arith.constant 1.000000e+00 : f32
    %410 = vector.broadcast %cst_94 : f32 to vector<4x64xf32>
    %411 = arith.addf %410, %409 : vector<4x64xf32>
    %412 = arith.divf %410, %411 : vector<4x64xf32>
    %413 = arith.mulf %404, %338 : vector<4x64xf32>
    %414 = arith.mulf %398, %406 : vector<4x64xf32>
    %415 = arith.addf %413, %414 : vector<4x64xf32>
    %416 = math.tanh %415 : vector<4x64xf32>
    %417 = arith.mulf %412, %416 : vector<4x64xf32>
    %418 = vector.shape_cast %392 : vector<4x1xi1> to vector<4x1xi1>
    %419 = vector.broadcast %418 : vector<4x1xi1> to vector<4x64xi1>
    %420 = arith.select %419, %417, %335 : vector<4x64xi1>, vector<4x64xf32>
    %421 = vector.shape_cast %392 : vector<4x1xi1> to vector<4x1xi1>
    %422 = vector.broadcast %421 : vector<4x1xi1> to vector<4x64xi1>
    %423 = arith.select %422, %415, %338 : vector<4x64xi1>, vector<4x64xf32>
    %424 = vector.broadcast %375 : i32 to vector<4x1xi32>
    %425 = arith.cmpi sge, %424, %25 : vector<4x1xi32>
    %426 = vector.broadcast %375 : i32 to vector<4x1xi32>
    %427 = arith.cmpi slt, %426, %26 : vector<4x1xi32>
    %428 = arith.andi %425, %427 : vector<4x1xi1>
    %429 = vector.extract_strided_slice %387 {offsets = [0, 0], sizes = [4, 64], strides = [1, 1]} : vector<4x256xf32> to vector<4x64xf32>
    %430 = arith.negf %429 : vector<4x64xf32>
    %431 = math.exp %430 : vector<4x64xf32>
    %cst_95 = arith.constant 1.000000e+00 : f32
    %432 = vector.broadcast %cst_95 : f32 to vector<4x64xf32>
    %433 = arith.addf %432, %431 : vector<4x64xf32>
    %434 = arith.divf %432, %433 : vector<4x64xf32>
    %435 = vector.extract_strided_slice %387 {offsets = [0, 64], sizes = [4, 64], strides = [1, 1]} : vector<4x256xf32> to vector<4x64xf32>
    %436 = arith.negf %435 : vector<4x64xf32>
    %437 = math.exp %436 : vector<4x64xf32>
    %cst_96 = arith.constant 1.000000e+00 : f32
    %438 = vector.broadcast %cst_96 : f32 to vector<4x64xf32>
    %439 = arith.addf %438, %437 : vector<4x64xf32>
    %440 = arith.divf %438, %439 : vector<4x64xf32>
    %441 = vector.extract_strided_slice %387 {offsets = [0, 128], sizes = [4, 64], strides = [1, 1]} : vector<4x256xf32> to vector<4x64xf32>
    %442 = math.tanh %441 : vector<4x64xf32>
    %443 = vector.extract_strided_slice %387 {offsets = [0, 192], sizes = [4, 64], strides = [1, 1]} : vector<4x256xf32> to vector<4x64xf32>
    %444 = arith.negf %443 : vector<4x64xf32>
    %445 = math.exp %444 : vector<4x64xf32>
    %cst_97 = arith.constant 1.000000e+00 : f32
    %446 = vector.broadcast %cst_97 : f32 to vector<4x64xf32>
    %447 = arith.addf %446, %445 : vector<4x64xf32>
    %448 = arith.divf %446, %447 : vector<4x64xf32>
    %449 = arith.mulf %440, %374 : vector<4x64xf32>
    %450 = arith.mulf %434, %442 : vector<4x64xf32>
    %451 = arith.addf %449, %450 : vector<4x64xf32>
    %452 = math.tanh %451 : vector<4x64xf32>
    %453 = arith.mulf %448, %452 : vector<4x64xf32>
    %454 = vector.shape_cast %428 : vector<4x1xi1> to vector<4x1xi1>
    %455 = vector.broadcast %454 : vector<4x1xi1> to vector<4x64xi1>
    %456 = arith.select %455, %453, %371 : vector<4x64xi1>, vector<4x64xf32>
    %457 = vector.shape_cast %428 : vector<4x1xi1> to vector<4x1xi1>
    %458 = vector.broadcast %457 : vector<4x1xi1> to vector<4x64xi1>
    %459 = arith.select %458, %451, %374 : vector<4x64xi1>, vector<4x64xf32>
    %c5_i32 = arith.constant 5 : i32
    %c15_i32_98 = arith.constant 15 : i32
    %460 = arith.subi %c15_i32_98, %c5_i32 : i32
    %c4_i32_99 = arith.constant 4 : i32
    %461 = arith.muli %c5_i32, %c4_i32_99 : i32
    %462 = arith.index_cast %461 : i32 to index
    %c0_100 = arith.constant 0 : index
    %463 = vector.load %arg15[%462, %c0_100] : memref<64x256xf32, #tpu.memory_space<vmem>>, vector<4x256xf32>
    %464 = arith.truncf %420 : vector<4x64xf32> to vector<4x64xbf16>
    %cst_101 = arith.constant dense<0.000000e+00> : vector<4x256xf32>
    %465 = tpu.matmul %464, %22, %cst_101 {dimension_numbers = #tpu.dot_dimension_numbers<[1], [0], [0], [1], [0, 0, 1, 1], [], []>} : vector<4x64xbf16>, vector<64x256xbf16>, vector<4x256xf32> -> vector<4x256xf32>
    %466 = arith.addf %463, %465 : vector<4x256xf32>
    %c4_i32_102 = arith.constant 4 : i32
    %467 = arith.muli %460, %c4_i32_102 : i32
    %468 = arith.index_cast %467 : i32 to index
    %c0_103 = arith.constant 0 : index
    %469 = vector.load %arg16[%468, %c0_103] : memref<64x256xf32, #tpu.memory_space<vmem>>, vector<4x256xf32>
    %470 = arith.truncf %456 : vector<4x64xf32> to vector<4x64xbf16>
    %cst_104 = arith.constant dense<0.000000e+00> : vector<4x256xf32>
    %471 = tpu.matmul %470, %24, %cst_104 {dimension_numbers = #tpu.dot_dimension_numbers<[1], [0], [0], [1], [0, 0, 1, 1], [], []>} : vector<4x64xbf16>, vector<64x256xbf16>, vector<4x256xf32> -> vector<4x256xf32>
    %472 = arith.addf %469, %471 : vector<4x256xf32>
    %473 = vector.broadcast %c5_i32 : i32 to vector<4x1xi32>
    %474 = arith.cmpi sge, %473, %25 : vector<4x1xi32>
    %475 = vector.broadcast %c5_i32 : i32 to vector<4x1xi32>
    %476 = arith.cmpi slt, %475, %26 : vector<4x1xi32>
    %477 = arith.andi %474, %476 : vector<4x1xi1>
    %478 = vector.extract_strided_slice %466 {offsets = [0, 0], sizes = [4, 64], strides = [1, 1]} : vector<4x256xf32> to vector<4x64xf32>
    %479 = arith.negf %478 : vector<4x64xf32>
    %480 = math.exp %479 : vector<4x64xf32>
    %cst_105 = arith.constant 1.000000e+00 : f32
    %481 = vector.broadcast %cst_105 : f32 to vector<4x64xf32>
    %482 = arith.addf %481, %480 : vector<4x64xf32>
    %483 = arith.divf %481, %482 : vector<4x64xf32>
    %484 = vector.extract_strided_slice %466 {offsets = [0, 64], sizes = [4, 64], strides = [1, 1]} : vector<4x256xf32> to vector<4x64xf32>
    %485 = arith.negf %484 : vector<4x64xf32>
    %486 = math.exp %485 : vector<4x64xf32>
    %cst_106 = arith.constant 1.000000e+00 : f32
    %487 = vector.broadcast %cst_106 : f32 to vector<4x64xf32>
    %488 = arith.addf %487, %486 : vector<4x64xf32>
    %489 = arith.divf %487, %488 : vector<4x64xf32>
    %490 = vector.extract_strided_slice %466 {offsets = [0, 128], sizes = [4, 64], strides = [1, 1]} : vector<4x256xf32> to vector<4x64xf32>
    %491 = math.tanh %490 : vector<4x64xf32>
    %492 = vector.extract_strided_slice %466 {offsets = [0, 192], sizes = [4, 64], strides = [1, 1]} : vector<4x256xf32> to vector<4x64xf32>
    %493 = arith.negf %492 : vector<4x64xf32>
    %494 = math.exp %493 : vector<4x64xf32>
    %cst_107 = arith.constant 1.000000e+00 : f32
    %495 = vector.broadcast %cst_107 : f32 to vector<4x64xf32>
    %496 = arith.addf %495, %494 : vector<4x64xf32>
    %497 = arith.divf %495, %496 : vector<4x64xf32>
    %498 = arith.mulf %489, %423 : vector<4x64xf32>
    %499 = arith.mulf %483, %491 : vector<4x64xf32>
    %500 = arith.addf %498, %499 : vector<4x64xf32>
    %501 = math.tanh %500 : vector<4x64xf32>
    %502 = arith.mulf %497, %501 : vector<4x64xf32>
    %503 = vector.shape_cast %477 : vector<4x1xi1> to vector<4x1xi1>
    %504 = vector.broadcast %503 : vector<4x1xi1> to vector<4x64xi1>
    %505 = arith.select %504, %502, %420 : vector<4x64xi1>, vector<4x64xf32>
    %506 = vector.shape_cast %477 : vector<4x1xi1> to vector<4x1xi1>
    %507 = vector.broadcast %506 : vector<4x1xi1> to vector<4x64xi1>
    %508 = arith.select %507, %500, %423 : vector<4x64xi1>, vector<4x64xf32>
    %509 = vector.broadcast %460 : i32 to vector<4x1xi32>
    %510 = arith.cmpi sge, %509, %25 : vector<4x1xi32>
    %511 = vector.broadcast %460 : i32 to vector<4x1xi32>
    %512 = arith.cmpi slt, %511, %26 : vector<4x1xi32>
    %513 = arith.andi %510, %512 : vector<4x1xi1>
    %514 = vector.extract_strided_slice %472 {offsets = [0, 0], sizes = [4, 64], strides = [1, 1]} : vector<4x256xf32> to vector<4x64xf32>
    %515 = arith.negf %514 : vector<4x64xf32>
    %516 = math.exp %515 : vector<4x64xf32>
    %cst_108 = arith.constant 1.000000e+00 : f32
    %517 = vector.broadcast %cst_108 : f32 to vector<4x64xf32>
    %518 = arith.addf %517, %516 : vector<4x64xf32>
    %519 = arith.divf %517, %518 : vector<4x64xf32>
    %520 = vector.extract_strided_slice %472 {offsets = [0, 64], sizes = [4, 64], strides = [1, 1]} : vector<4x256xf32> to vector<4x64xf32>
    %521 = arith.negf %520 : vector<4x64xf32>
    %522 = math.exp %521 : vector<4x64xf32>
    %cst_109 = arith.constant 1.000000e+00 : f32
    %523 = vector.broadcast %cst_109 : f32 to vector<4x64xf32>
    %524 = arith.addf %523, %522 : vector<4x64xf32>
    %525 = arith.divf %523, %524 : vector<4x64xf32>
    %526 = vector.extract_strided_slice %472 {offsets = [0, 128], sizes = [4, 64], strides = [1, 1]} : vector<4x256xf32> to vector<4x64xf32>
    %527 = math.tanh %526 : vector<4x64xf32>
    %528 = vector.extract_strided_slice %472 {offsets = [0, 192], sizes = [4, 64], strides = [1, 1]} : vector<4x256xf32> to vector<4x64xf32>
    %529 = arith.negf %528 : vector<4x64xf32>
    %530 = math.exp %529 : vector<4x64xf32>
    %cst_110 = arith.constant 1.000000e+00 : f32
    %531 = vector.broadcast %cst_110 : f32 to vector<4x64xf32>
    %532 = arith.addf %531, %530 : vector<4x64xf32>
    %533 = arith.divf %531, %532 : vector<4x64xf32>
    %534 = arith.mulf %525, %459 : vector<4x64xf32>
    %535 = arith.mulf %519, %527 : vector<4x64xf32>
    %536 = arith.addf %534, %535 : vector<4x64xf32>
    %537 = math.tanh %536 : vector<4x64xf32>
    %538 = arith.mulf %533, %537 : vector<4x64xf32>
    %539 = vector.shape_cast %513 : vector<4x1xi1> to vector<4x1xi1>
    %540 = vector.broadcast %539 : vector<4x1xi1> to vector<4x64xi1>
    %541 = arith.select %540, %538, %456 : vector<4x64xi1>, vector<4x64xf32>
    %542 = vector.shape_cast %513 : vector<4x1xi1> to vector<4x1xi1>
    %543 = vector.broadcast %542 : vector<4x1xi1> to vector<4x64xi1>
    %544 = arith.select %543, %536, %459 : vector<4x64xi1>, vector<4x64xf32>
    %c6_i32 = arith.constant 6 : i32
    %c15_i32_111 = arith.constant 15 : i32
    %545 = arith.subi %c15_i32_111, %c6_i32 : i32
    %c4_i32_112 = arith.constant 4 : i32
    %546 = arith.muli %c6_i32, %c4_i32_112 : i32
    %547 = arith.index_cast %546 : i32 to index
    %c0_113 = arith.constant 0 : index
    %548 = vector.load %arg15[%547, %c0_113] : memref<64x256xf32, #tpu.memory_space<vmem>>, vector<4x256xf32>
    %549 = arith.truncf %505 : vector<4x64xf32> to vector<4x64xbf16>
    %cst_114 = arith.constant dense<0.000000e+00> : vector<4x256xf32>
    %550 = tpu.matmul %549, %22, %cst_114 {dimension_numbers = #tpu.dot_dimension_numbers<[1], [0], [0], [1], [0, 0, 1, 1], [], []>} : vector<4x64xbf16>, vector<64x256xbf16>, vector<4x256xf32> -> vector<4x256xf32>
    %551 = arith.addf %548, %550 : vector<4x256xf32>
    %c4_i32_115 = arith.constant 4 : i32
    %552 = arith.muli %545, %c4_i32_115 : i32
    %553 = arith.index_cast %552 : i32 to index
    %c0_116 = arith.constant 0 : index
    %554 = vector.load %arg16[%553, %c0_116] : memref<64x256xf32, #tpu.memory_space<vmem>>, vector<4x256xf32>
    %555 = arith.truncf %541 : vector<4x64xf32> to vector<4x64xbf16>
    %cst_117 = arith.constant dense<0.000000e+00> : vector<4x256xf32>
    %556 = tpu.matmul %555, %24, %cst_117 {dimension_numbers = #tpu.dot_dimension_numbers<[1], [0], [0], [1], [0, 0, 1, 1], [], []>} : vector<4x64xbf16>, vector<64x256xbf16>, vector<4x256xf32> -> vector<4x256xf32>
    %557 = arith.addf %554, %556 : vector<4x256xf32>
    %558 = vector.broadcast %c6_i32 : i32 to vector<4x1xi32>
    %559 = arith.cmpi sge, %558, %25 : vector<4x1xi32>
    %560 = vector.broadcast %c6_i32 : i32 to vector<4x1xi32>
    %561 = arith.cmpi slt, %560, %26 : vector<4x1xi32>
    %562 = arith.andi %559, %561 : vector<4x1xi1>
    %563 = vector.extract_strided_slice %551 {offsets = [0, 0], sizes = [4, 64], strides = [1, 1]} : vector<4x256xf32> to vector<4x64xf32>
    %564 = arith.negf %563 : vector<4x64xf32>
    %565 = math.exp %564 : vector<4x64xf32>
    %cst_118 = arith.constant 1.000000e+00 : f32
    %566 = vector.broadcast %cst_118 : f32 to vector<4x64xf32>
    %567 = arith.addf %566, %565 : vector<4x64xf32>
    %568 = arith.divf %566, %567 : vector<4x64xf32>
    %569 = vector.extract_strided_slice %551 {offsets = [0, 64], sizes = [4, 64], strides = [1, 1]} : vector<4x256xf32> to vector<4x64xf32>
    %570 = arith.negf %569 : vector<4x64xf32>
    %571 = math.exp %570 : vector<4x64xf32>
    %cst_119 = arith.constant 1.000000e+00 : f32
    %572 = vector.broadcast %cst_119 : f32 to vector<4x64xf32>
    %573 = arith.addf %572, %571 : vector<4x64xf32>
    %574 = arith.divf %572, %573 : vector<4x64xf32>
    %575 = vector.extract_strided_slice %551 {offsets = [0, 128], sizes = [4, 64], strides = [1, 1]} : vector<4x256xf32> to vector<4x64xf32>
    %576 = math.tanh %575 : vector<4x64xf32>
    %577 = vector.extract_strided_slice %551 {offsets = [0, 192], sizes = [4, 64], strides = [1, 1]} : vector<4x256xf32> to vector<4x64xf32>
    %578 = arith.negf %577 : vector<4x64xf32>
    %579 = math.exp %578 : vector<4x64xf32>
    %cst_120 = arith.constant 1.000000e+00 : f32
    %580 = vector.broadcast %cst_120 : f32 to vector<4x64xf32>
    %581 = arith.addf %580, %579 : vector<4x64xf32>
    %582 = arith.divf %580, %581 : vector<4x64xf32>
    %583 = arith.mulf %574, %508 : vector<4x64xf32>
    %584 = arith.mulf %568, %576 : vector<4x64xf32>
    %585 = arith.addf %583, %584 : vector<4x64xf32>
    %586 = math.tanh %585 : vector<4x64xf32>
    %587 = arith.mulf %582, %586 : vector<4x64xf32>
    %588 = vector.shape_cast %562 : vector<4x1xi1> to vector<4x1xi1>
    %589 = vector.broadcast %588 : vector<4x1xi1> to vector<4x64xi1>
    %590 = arith.select %589, %587, %505 : vector<4x64xi1>, vector<4x64xf32>
    %591 = vector.shape_cast %562 : vector<4x1xi1> to vector<4x1xi1>
    %592 = vector.broadcast %591 : vector<4x1xi1> to vector<4x64xi1>
    %593 = arith.select %592, %585, %508 : vector<4x64xi1>, vector<4x64xf32>
    %594 = vector.broadcast %545 : i32 to vector<4x1xi32>
    %595 = arith.cmpi sge, %594, %25 : vector<4x1xi32>
    %596 = vector.broadcast %545 : i32 to vector<4x1xi32>
    %597 = arith.cmpi slt, %596, %26 : vector<4x1xi32>
    %598 = arith.andi %595, %597 : vector<4x1xi1>
    %599 = vector.extract_strided_slice %557 {offsets = [0, 0], sizes = [4, 64], strides = [1, 1]} : vector<4x256xf32> to vector<4x64xf32>
    %600 = arith.negf %599 : vector<4x64xf32>
    %601 = math.exp %600 : vector<4x64xf32>
    %cst_121 = arith.constant 1.000000e+00 : f32
    %602 = vector.broadcast %cst_121 : f32 to vector<4x64xf32>
    %603 = arith.addf %602, %601 : vector<4x64xf32>
    %604 = arith.divf %602, %603 : vector<4x64xf32>
    %605 = vector.extract_strided_slice %557 {offsets = [0, 64], sizes = [4, 64], strides = [1, 1]} : vector<4x256xf32> to vector<4x64xf32>
    %606 = arith.negf %605 : vector<4x64xf32>
    %607 = math.exp %606 : vector<4x64xf32>
    %cst_122 = arith.constant 1.000000e+00 : f32
    %608 = vector.broadcast %cst_122 : f32 to vector<4x64xf32>
    %609 = arith.addf %608, %607 : vector<4x64xf32>
    %610 = arith.divf %608, %609 : vector<4x64xf32>
    %611 = vector.extract_strided_slice %557 {offsets = [0, 128], sizes = [4, 64], strides = [1, 1]} : vector<4x256xf32> to vector<4x64xf32>
    %612 = math.tanh %611 : vector<4x64xf32>
    %613 = vector.extract_strided_slice %557 {offsets = [0, 192], sizes = [4, 64], strides = [1, 1]} : vector<4x256xf32> to vector<4x64xf32>
    %614 = arith.negf %613 : vector<4x64xf32>
    %615 = math.exp %614 : vector<4x64xf32>
    %cst_123 = arith.constant 1.000000e+00 : f32
    %616 = vector.broadcast %cst_123 : f32 to vector<4x64xf32>
    %617 = arith.addf %616, %615 : vector<4x64xf32>
    %618 = arith.divf %616, %617 : vector<4x64xf32>
    %619 = arith.mulf %610, %544 : vector<4x64xf32>
    %620 = arith.mulf %604, %612 : vector<4x64xf32>
    %621 = arith.addf %619, %620 : vector<4x64xf32>
    %622 = math.tanh %621 : vector<4x64xf32>
    %623 = arith.mulf %618, %622 : vector<4x64xf32>
    %624 = vector.shape_cast %598 : vector<4x1xi1> to vector<4x1xi1>
    %625 = vector.broadcast %624 : vector<4x1xi1> to vector<4x64xi1>
    %626 = arith.select %625, %623, %541 : vector<4x64xi1>, vector<4x64xf32>
    %627 = vector.shape_cast %598 : vector<4x1xi1> to vector<4x1xi1>
    %628 = vector.broadcast %627 : vector<4x1xi1> to vector<4x64xi1>
    %629 = arith.select %628, %621, %544 : vector<4x64xi1>, vector<4x64xf32>
    %c7_i32 = arith.constant 7 : i32
    %c15_i32_124 = arith.constant 15 : i32
    %630 = arith.subi %c15_i32_124, %c7_i32 : i32
    %c4_i32_125 = arith.constant 4 : i32
    %631 = arith.muli %c7_i32, %c4_i32_125 : i32
    %632 = arith.index_cast %631 : i32 to index
    %c0_126 = arith.constant 0 : index
    %633 = vector.load %arg15[%632, %c0_126] : memref<64x256xf32, #tpu.memory_space<vmem>>, vector<4x256xf32>
    %634 = arith.truncf %590 : vector<4x64xf32> to vector<4x64xbf16>
    %cst_127 = arith.constant dense<0.000000e+00> : vector<4x256xf32>
    %635 = tpu.matmul %634, %22, %cst_127 {dimension_numbers = #tpu.dot_dimension_numbers<[1], [0], [0], [1], [0, 0, 1, 1], [], []>} : vector<4x64xbf16>, vector<64x256xbf16>, vector<4x256xf32> -> vector<4x256xf32>
    %636 = arith.addf %633, %635 : vector<4x256xf32>
    %c4_i32_128 = arith.constant 4 : i32
    %637 = arith.muli %630, %c4_i32_128 : i32
    %638 = arith.index_cast %637 : i32 to index
    %c0_129 = arith.constant 0 : index
    %639 = vector.load %arg16[%638, %c0_129] : memref<64x256xf32, #tpu.memory_space<vmem>>, vector<4x256xf32>
    %640 = arith.truncf %626 : vector<4x64xf32> to vector<4x64xbf16>
    %cst_130 = arith.constant dense<0.000000e+00> : vector<4x256xf32>
    %641 = tpu.matmul %640, %24, %cst_130 {dimension_numbers = #tpu.dot_dimension_numbers<[1], [0], [0], [1], [0, 0, 1, 1], [], []>} : vector<4x64xbf16>, vector<64x256xbf16>, vector<4x256xf32> -> vector<4x256xf32>
    %642 = arith.addf %639, %641 : vector<4x256xf32>
    %643 = vector.broadcast %c7_i32 : i32 to vector<4x1xi32>
    %644 = arith.cmpi sge, %643, %25 : vector<4x1xi32>
    %645 = vector.broadcast %c7_i32 : i32 to vector<4x1xi32>
    %646 = arith.cmpi slt, %645, %26 : vector<4x1xi32>
    %647 = arith.andi %644, %646 : vector<4x1xi1>
    %648 = vector.extract_strided_slice %636 {offsets = [0, 0], sizes = [4, 64], strides = [1, 1]} : vector<4x256xf32> to vector<4x64xf32>
    %649 = arith.negf %648 : vector<4x64xf32>
    %650 = math.exp %649 : vector<4x64xf32>
    %cst_131 = arith.constant 1.000000e+00 : f32
    %651 = vector.broadcast %cst_131 : f32 to vector<4x64xf32>
    %652 = arith.addf %651, %650 : vector<4x64xf32>
    %653 = arith.divf %651, %652 : vector<4x64xf32>
    %654 = vector.extract_strided_slice %636 {offsets = [0, 64], sizes = [4, 64], strides = [1, 1]} : vector<4x256xf32> to vector<4x64xf32>
    %655 = arith.negf %654 : vector<4x64xf32>
    %656 = math.exp %655 : vector<4x64xf32>
    %cst_132 = arith.constant 1.000000e+00 : f32
    %657 = vector.broadcast %cst_132 : f32 to vector<4x64xf32>
    %658 = arith.addf %657, %656 : vector<4x64xf32>
    %659 = arith.divf %657, %658 : vector<4x64xf32>
    %660 = vector.extract_strided_slice %636 {offsets = [0, 128], sizes = [4, 64], strides = [1, 1]} : vector<4x256xf32> to vector<4x64xf32>
    %661 = math.tanh %660 : vector<4x64xf32>
    %662 = vector.extract_strided_slice %636 {offsets = [0, 192], sizes = [4, 64], strides = [1, 1]} : vector<4x256xf32> to vector<4x64xf32>
    %663 = arith.negf %662 : vector<4x64xf32>
    %664 = math.exp %663 : vector<4x64xf32>
    %cst_133 = arith.constant 1.000000e+00 : f32
    %665 = vector.broadcast %cst_133 : f32 to vector<4x64xf32>
    %666 = arith.addf %665, %664 : vector<4x64xf32>
    %667 = arith.divf %665, %666 : vector<4x64xf32>
    %668 = arith.mulf %659, %593 : vector<4x64xf32>
    %669 = arith.mulf %653, %661 : vector<4x64xf32>
    %670 = arith.addf %668, %669 : vector<4x64xf32>
    %671 = math.tanh %670 : vector<4x64xf32>
    %672 = arith.mulf %667, %671 : vector<4x64xf32>
    %673 = vector.shape_cast %647 : vector<4x1xi1> to vector<4x1xi1>
    %674 = vector.broadcast %673 : vector<4x1xi1> to vector<4x64xi1>
    %675 = arith.select %674, %672, %590 : vector<4x64xi1>, vector<4x64xf32>
    %676 = vector.shape_cast %647 : vector<4x1xi1> to vector<4x1xi1>
    %677 = vector.broadcast %676 : vector<4x1xi1> to vector<4x64xi1>
    %678 = arith.select %677, %670, %593 : vector<4x64xi1>, vector<4x64xf32>
    %679 = vector.broadcast %630 : i32 to vector<4x1xi32>
    %680 = arith.cmpi sge, %679, %25 : vector<4x1xi32>
    %681 = vector.broadcast %630 : i32 to vector<4x1xi32>
    %682 = arith.cmpi slt, %681, %26 : vector<4x1xi32>
    %683 = arith.andi %680, %682 : vector<4x1xi1>
    %684 = vector.extract_strided_slice %642 {offsets = [0, 0], sizes = [4, 64], strides = [1, 1]} : vector<4x256xf32> to vector<4x64xf32>
    %685 = arith.negf %684 : vector<4x64xf32>
    %686 = math.exp %685 : vector<4x64xf32>
    %cst_134 = arith.constant 1.000000e+00 : f32
    %687 = vector.broadcast %cst_134 : f32 to vector<4x64xf32>
    %688 = arith.addf %687, %686 : vector<4x64xf32>
    %689 = arith.divf %687, %688 : vector<4x64xf32>
    %690 = vector.extract_strided_slice %642 {offsets = [0, 64], sizes = [4, 64], strides = [1, 1]} : vector<4x256xf32> to vector<4x64xf32>
    %691 = arith.negf %690 : vector<4x64xf32>
    %692 = math.exp %691 : vector<4x64xf32>
    %cst_135 = arith.constant 1.000000e+00 : f32
    %693 = vector.broadcast %cst_135 : f32 to vector<4x64xf32>
    %694 = arith.addf %693, %692 : vector<4x64xf32>
    %695 = arith.divf %693, %694 : vector<4x64xf32>
    %696 = vector.extract_strided_slice %642 {offsets = [0, 128], sizes = [4, 64], strides = [1, 1]} : vector<4x256xf32> to vector<4x64xf32>
    %697 = math.tanh %696 : vector<4x64xf32>
    %698 = vector.extract_strided_slice %642 {offsets = [0, 192], sizes = [4, 64], strides = [1, 1]} : vector<4x256xf32> to vector<4x64xf32>
    %699 = arith.negf %698 : vector<4x64xf32>
    %700 = math.exp %699 : vector<4x64xf32>
    %cst_136 = arith.constant 1.000000e+00 : f32
    %701 = vector.broadcast %cst_136 : f32 to vector<4x64xf32>
    %702 = arith.addf %701, %700 : vector<4x64xf32>
    %703 = arith.divf %701, %702 : vector<4x64xf32>
    %704 = arith.mulf %695, %629 : vector<4x64xf32>
    %705 = arith.mulf %689, %697 : vector<4x64xf32>
    %706 = arith.addf %704, %705 : vector<4x64xf32>
    %707 = math.tanh %706 : vector<4x64xf32>
    %708 = arith.mulf %703, %707 : vector<4x64xf32>
    %709 = vector.shape_cast %683 : vector<4x1xi1> to vector<4x1xi1>
    %710 = vector.broadcast %709 : vector<4x1xi1> to vector<4x64xi1>
    %711 = arith.select %710, %708, %626 : vector<4x64xi1>, vector<4x64xf32>
    %712 = vector.shape_cast %683 : vector<4x1xi1> to vector<4x1xi1>
    %713 = vector.broadcast %712 : vector<4x1xi1> to vector<4x64xi1>
    %714 = arith.select %713, %706, %629 : vector<4x64xi1>, vector<4x64xf32>
    %c8_i32 = arith.constant 8 : i32
    %c15_i32_137 = arith.constant 15 : i32
    %715 = arith.subi %c15_i32_137, %c8_i32 : i32
    %c4_i32_138 = arith.constant 4 : i32
    %716 = arith.muli %c8_i32, %c4_i32_138 : i32
    %717 = arith.index_cast %716 : i32 to index
    %c0_139 = arith.constant 0 : index
    %718 = vector.load %arg15[%717, %c0_139] : memref<64x256xf32, #tpu.memory_space<vmem>>, vector<4x256xf32>
    %719 = arith.truncf %675 : vector<4x64xf32> to vector<4x64xbf16>
    %cst_140 = arith.constant dense<0.000000e+00> : vector<4x256xf32>
    %720 = tpu.matmul %719, %22, %cst_140 {dimension_numbers = #tpu.dot_dimension_numbers<[1], [0], [0], [1], [0, 0, 1, 1], [], []>} : vector<4x64xbf16>, vector<64x256xbf16>, vector<4x256xf32> -> vector<4x256xf32>
    %721 = arith.addf %718, %720 : vector<4x256xf32>
    %c4_i32_141 = arith.constant 4 : i32
    %722 = arith.muli %715, %c4_i32_141 : i32
    %723 = arith.index_cast %722 : i32 to index
    %c0_142 = arith.constant 0 : index
    %724 = vector.load %arg16[%723, %c0_142] : memref<64x256xf32, #tpu.memory_space<vmem>>, vector<4x256xf32>
    %725 = arith.truncf %711 : vector<4x64xf32> to vector<4x64xbf16>
    %cst_143 = arith.constant dense<0.000000e+00> : vector<4x256xf32>
    %726 = tpu.matmul %725, %24, %cst_143 {dimension_numbers = #tpu.dot_dimension_numbers<[1], [0], [0], [1], [0, 0, 1, 1], [], []>} : vector<4x64xbf16>, vector<64x256xbf16>, vector<4x256xf32> -> vector<4x256xf32>
    %727 = arith.addf %724, %726 : vector<4x256xf32>
    %728 = vector.broadcast %c8_i32 : i32 to vector<4x1xi32>
    %729 = arith.cmpi sge, %728, %25 : vector<4x1xi32>
    %730 = vector.broadcast %c8_i32 : i32 to vector<4x1xi32>
    %731 = arith.cmpi slt, %730, %26 : vector<4x1xi32>
    %732 = arith.andi %729, %731 : vector<4x1xi1>
    %733 = vector.extract_strided_slice %721 {offsets = [0, 0], sizes = [4, 64], strides = [1, 1]} : vector<4x256xf32> to vector<4x64xf32>
    %734 = arith.negf %733 : vector<4x64xf32>
    %735 = math.exp %734 : vector<4x64xf32>
    %cst_144 = arith.constant 1.000000e+00 : f32
    %736 = vector.broadcast %cst_144 : f32 to vector<4x64xf32>
    %737 = arith.addf %736, %735 : vector<4x64xf32>
    %738 = arith.divf %736, %737 : vector<4x64xf32>
    %739 = vector.extract_strided_slice %721 {offsets = [0, 64], sizes = [4, 64], strides = [1, 1]} : vector<4x256xf32> to vector<4x64xf32>
    %740 = arith.negf %739 : vector<4x64xf32>
    %741 = math.exp %740 : vector<4x64xf32>
    %cst_145 = arith.constant 1.000000e+00 : f32
    %742 = vector.broadcast %cst_145 : f32 to vector<4x64xf32>
    %743 = arith.addf %742, %741 : vector<4x64xf32>
    %744 = arith.divf %742, %743 : vector<4x64xf32>
    %745 = vector.extract_strided_slice %721 {offsets = [0, 128], sizes = [4, 64], strides = [1, 1]} : vector<4x256xf32> to vector<4x64xf32>
    %746 = math.tanh %745 : vector<4x64xf32>
    %747 = vector.extract_strided_slice %721 {offsets = [0, 192], sizes = [4, 64], strides = [1, 1]} : vector<4x256xf32> to vector<4x64xf32>
    %748 = arith.negf %747 : vector<4x64xf32>
    %749 = math.exp %748 : vector<4x64xf32>
    %cst_146 = arith.constant 1.000000e+00 : f32
    %750 = vector.broadcast %cst_146 : f32 to vector<4x64xf32>
    %751 = arith.addf %750, %749 : vector<4x64xf32>
    %752 = arith.divf %750, %751 : vector<4x64xf32>
    %753 = arith.mulf %744, %678 : vector<4x64xf32>
    %754 = arith.mulf %738, %746 : vector<4x64xf32>
    %755 = arith.addf %753, %754 : vector<4x64xf32>
    %756 = math.tanh %755 : vector<4x64xf32>
    %757 = arith.mulf %752, %756 : vector<4x64xf32>
    %758 = vector.shape_cast %732 : vector<4x1xi1> to vector<4x1xi1>
    %759 = vector.broadcast %758 : vector<4x1xi1> to vector<4x64xi1>
    %760 = arith.select %759, %757, %675 : vector<4x64xi1>, vector<4x64xf32>
    %761 = vector.shape_cast %732 : vector<4x1xi1> to vector<4x1xi1>
    %762 = vector.broadcast %761 : vector<4x1xi1> to vector<4x64xi1>
    %763 = arith.select %762, %755, %678 : vector<4x64xi1>, vector<4x64xf32>
    %764 = vector.broadcast %715 : i32 to vector<4x1xi32>
    %765 = arith.cmpi sge, %764, %25 : vector<4x1xi32>
    %766 = vector.broadcast %715 : i32 to vector<4x1xi32>
    %767 = arith.cmpi slt, %766, %26 : vector<4x1xi32>
    %768 = arith.andi %765, %767 : vector<4x1xi1>
    %769 = vector.extract_strided_slice %727 {offsets = [0, 0], sizes = [4, 64], strides = [1, 1]} : vector<4x256xf32> to vector<4x64xf32>
    %770 = arith.negf %769 : vector<4x64xf32>
    %771 = math.exp %770 : vector<4x64xf32>
    %cst_147 = arith.constant 1.000000e+00 : f32
    %772 = vector.broadcast %cst_147 : f32 to vector<4x64xf32>
    %773 = arith.addf %772, %771 : vector<4x64xf32>
    %774 = arith.divf %772, %773 : vector<4x64xf32>
    %775 = vector.extract_strided_slice %727 {offsets = [0, 64], sizes = [4, 64], strides = [1, 1]} : vector<4x256xf32> to vector<4x64xf32>
    %776 = arith.negf %775 : vector<4x64xf32>
    %777 = math.exp %776 : vector<4x64xf32>
    %cst_148 = arith.constant 1.000000e+00 : f32
    %778 = vector.broadcast %cst_148 : f32 to vector<4x64xf32>
    %779 = arith.addf %778, %777 : vector<4x64xf32>
    %780 = arith.divf %778, %779 : vector<4x64xf32>
    %781 = vector.extract_strided_slice %727 {offsets = [0, 128], sizes = [4, 64], strides = [1, 1]} : vector<4x256xf32> to vector<4x64xf32>
    %782 = math.tanh %781 : vector<4x64xf32>
    %783 = vector.extract_strided_slice %727 {offsets = [0, 192], sizes = [4, 64], strides = [1, 1]} : vector<4x256xf32> to vector<4x64xf32>
    %784 = arith.negf %783 : vector<4x64xf32>
    %785 = math.exp %784 : vector<4x64xf32>
    %cst_149 = arith.constant 1.000000e+00 : f32
    %786 = vector.broadcast %cst_149 : f32 to vector<4x64xf32>
    %787 = arith.addf %786, %785 : vector<4x64xf32>
    %788 = arith.divf %786, %787 : vector<4x64xf32>
    %789 = arith.mulf %780, %714 : vector<4x64xf32>
    %790 = arith.mulf %774, %782 : vector<4x64xf32>
    %791 = arith.addf %789, %790 : vector<4x64xf32>
    %792 = math.tanh %791 : vector<4x64xf32>
    %793 = arith.mulf %788, %792 : vector<4x64xf32>
    %794 = vector.shape_cast %768 : vector<4x1xi1> to vector<4x1xi1>
    %795 = vector.broadcast %794 : vector<4x1xi1> to vector<4x64xi1>
    %796 = arith.select %795, %793, %711 : vector<4x64xi1>, vector<4x64xf32>
    %797 = vector.shape_cast %768 : vector<4x1xi1> to vector<4x1xi1>
    %798 = vector.broadcast %797 : vector<4x1xi1> to vector<4x64xi1>
    %799 = arith.select %798, %791, %714 : vector<4x64xi1>, vector<4x64xf32>
    %c9_i32 = arith.constant 9 : i32
    %c15_i32_150 = arith.constant 15 : i32
    %800 = arith.subi %c15_i32_150, %c9_i32 : i32
    %c4_i32_151 = arith.constant 4 : i32
    %801 = arith.muli %c9_i32, %c4_i32_151 : i32
    %802 = arith.index_cast %801 : i32 to index
    %c0_152 = arith.constant 0 : index
    %803 = vector.load %arg15[%802, %c0_152] : memref<64x256xf32, #tpu.memory_space<vmem>>, vector<4x256xf32>
    %804 = arith.truncf %760 : vector<4x64xf32> to vector<4x64xbf16>
    %cst_153 = arith.constant dense<0.000000e+00> : vector<4x256xf32>
    %805 = tpu.matmul %804, %22, %cst_153 {dimension_numbers = #tpu.dot_dimension_numbers<[1], [0], [0], [1], [0, 0, 1, 1], [], []>} : vector<4x64xbf16>, vector<64x256xbf16>, vector<4x256xf32> -> vector<4x256xf32>
    %806 = arith.addf %803, %805 : vector<4x256xf32>
    %c4_i32_154 = arith.constant 4 : i32
    %807 = arith.muli %800, %c4_i32_154 : i32
    %808 = arith.index_cast %807 : i32 to index
    %c0_155 = arith.constant 0 : index
    %809 = vector.load %arg16[%808, %c0_155] : memref<64x256xf32, #tpu.memory_space<vmem>>, vector<4x256xf32>
    %810 = arith.truncf %796 : vector<4x64xf32> to vector<4x64xbf16>
    %cst_156 = arith.constant dense<0.000000e+00> : vector<4x256xf32>
    %811 = tpu.matmul %810, %24, %cst_156 {dimension_numbers = #tpu.dot_dimension_numbers<[1], [0], [0], [1], [0, 0, 1, 1], [], []>} : vector<4x64xbf16>, vector<64x256xbf16>, vector<4x256xf32> -> vector<4x256xf32>
    %812 = arith.addf %809, %811 : vector<4x256xf32>
    %813 = vector.broadcast %c9_i32 : i32 to vector<4x1xi32>
    %814 = arith.cmpi sge, %813, %25 : vector<4x1xi32>
    %815 = vector.broadcast %c9_i32 : i32 to vector<4x1xi32>
    %816 = arith.cmpi slt, %815, %26 : vector<4x1xi32>
    %817 = arith.andi %814, %816 : vector<4x1xi1>
    %818 = vector.extract_strided_slice %806 {offsets = [0, 0], sizes = [4, 64], strides = [1, 1]} : vector<4x256xf32> to vector<4x64xf32>
    %819 = arith.negf %818 : vector<4x64xf32>
    %820 = math.exp %819 : vector<4x64xf32>
    %cst_157 = arith.constant 1.000000e+00 : f32
    %821 = vector.broadcast %cst_157 : f32 to vector<4x64xf32>
    %822 = arith.addf %821, %820 : vector<4x64xf32>
    %823 = arith.divf %821, %822 : vector<4x64xf32>
    %824 = vector.extract_strided_slice %806 {offsets = [0, 64], sizes = [4, 64], strides = [1, 1]} : vector<4x256xf32> to vector<4x64xf32>
    %825 = arith.negf %824 : vector<4x64xf32>
    %826 = math.exp %825 : vector<4x64xf32>
    %cst_158 = arith.constant 1.000000e+00 : f32
    %827 = vector.broadcast %cst_158 : f32 to vector<4x64xf32>
    %828 = arith.addf %827, %826 : vector<4x64xf32>
    %829 = arith.divf %827, %828 : vector<4x64xf32>
    %830 = vector.extract_strided_slice %806 {offsets = [0, 128], sizes = [4, 64], strides = [1, 1]} : vector<4x256xf32> to vector<4x64xf32>
    %831 = math.tanh %830 : vector<4x64xf32>
    %832 = vector.extract_strided_slice %806 {offsets = [0, 192], sizes = [4, 64], strides = [1, 1]} : vector<4x256xf32> to vector<4x64xf32>
    %833 = arith.negf %832 : vector<4x64xf32>
    %834 = math.exp %833 : vector<4x64xf32>
    %cst_159 = arith.constant 1.000000e+00 : f32
    %835 = vector.broadcast %cst_159 : f32 to vector<4x64xf32>
    %836 = arith.addf %835, %834 : vector<4x64xf32>
    %837 = arith.divf %835, %836 : vector<4x64xf32>
    %838 = arith.mulf %829, %763 : vector<4x64xf32>
    %839 = arith.mulf %823, %831 : vector<4x64xf32>
    %840 = arith.addf %838, %839 : vector<4x64xf32>
    %841 = math.tanh %840 : vector<4x64xf32>
    %842 = arith.mulf %837, %841 : vector<4x64xf32>
    %843 = vector.shape_cast %817 : vector<4x1xi1> to vector<4x1xi1>
    %844 = vector.broadcast %843 : vector<4x1xi1> to vector<4x64xi1>
    %845 = arith.select %844, %842, %760 : vector<4x64xi1>, vector<4x64xf32>
    %846 = vector.shape_cast %817 : vector<4x1xi1> to vector<4x1xi1>
    %847 = vector.broadcast %846 : vector<4x1xi1> to vector<4x64xi1>
    %848 = arith.select %847, %840, %763 : vector<4x64xi1>, vector<4x64xf32>
    %849 = vector.broadcast %800 : i32 to vector<4x1xi32>
    %850 = arith.cmpi sge, %849, %25 : vector<4x1xi32>
    %851 = vector.broadcast %800 : i32 to vector<4x1xi32>
    %852 = arith.cmpi slt, %851, %26 : vector<4x1xi32>
    %853 = arith.andi %850, %852 : vector<4x1xi1>
    %854 = vector.extract_strided_slice %812 {offsets = [0, 0], sizes = [4, 64], strides = [1, 1]} : vector<4x256xf32> to vector<4x64xf32>
    %855 = arith.negf %854 : vector<4x64xf32>
    %856 = math.exp %855 : vector<4x64xf32>
    %cst_160 = arith.constant 1.000000e+00 : f32
    %857 = vector.broadcast %cst_160 : f32 to vector<4x64xf32>
    %858 = arith.addf %857, %856 : vector<4x64xf32>
    %859 = arith.divf %857, %858 : vector<4x64xf32>
    %860 = vector.extract_strided_slice %812 {offsets = [0, 64], sizes = [4, 64], strides = [1, 1]} : vector<4x256xf32> to vector<4x64xf32>
    %861 = arith.negf %860 : vector<4x64xf32>
    %862 = math.exp %861 : vector<4x64xf32>
    %cst_161 = arith.constant 1.000000e+00 : f32
    %863 = vector.broadcast %cst_161 : f32 to vector<4x64xf32>
    %864 = arith.addf %863, %862 : vector<4x64xf32>
    %865 = arith.divf %863, %864 : vector<4x64xf32>
    %866 = vector.extract_strided_slice %812 {offsets = [0, 128], sizes = [4, 64], strides = [1, 1]} : vector<4x256xf32> to vector<4x64xf32>
    %867 = math.tanh %866 : vector<4x64xf32>
    %868 = vector.extract_strided_slice %812 {offsets = [0, 192], sizes = [4, 64], strides = [1, 1]} : vector<4x256xf32> to vector<4x64xf32>
    %869 = arith.negf %868 : vector<4x64xf32>
    %870 = math.exp %869 : vector<4x64xf32>
    %cst_162 = arith.constant 1.000000e+00 : f32
    %871 = vector.broadcast %cst_162 : f32 to vector<4x64xf32>
    %872 = arith.addf %871, %870 : vector<4x64xf32>
    %873 = arith.divf %871, %872 : vector<4x64xf32>
    %874 = arith.mulf %865, %799 : vector<4x64xf32>
    %875 = arith.mulf %859, %867 : vector<4x64xf32>
    %876 = arith.addf %874, %875 : vector<4x64xf32>
    %877 = math.tanh %876 : vector<4x64xf32>
    %878 = arith.mulf %873, %877 : vector<4x64xf32>
    %879 = vector.shape_cast %853 : vector<4x1xi1> to vector<4x1xi1>
    %880 = vector.broadcast %879 : vector<4x1xi1> to vector<4x64xi1>
    %881 = arith.select %880, %878, %796 : vector<4x64xi1>, vector<4x64xf32>
    %882 = vector.shape_cast %853 : vector<4x1xi1> to vector<4x1xi1>
    %883 = vector.broadcast %882 : vector<4x1xi1> to vector<4x64xi1>
    %884 = arith.select %883, %876, %799 : vector<4x64xi1>, vector<4x64xf32>
    %c10_i32 = arith.constant 10 : i32
    %c15_i32_163 = arith.constant 15 : i32
    %885 = arith.subi %c15_i32_163, %c10_i32 : i32
    %c4_i32_164 = arith.constant 4 : i32
    %886 = arith.muli %c10_i32, %c4_i32_164 : i32
    %887 = arith.index_cast %886 : i32 to index
    %c0_165 = arith.constant 0 : index
    %888 = vector.load %arg15[%887, %c0_165] : memref<64x256xf32, #tpu.memory_space<vmem>>, vector<4x256xf32>
    %889 = arith.truncf %845 : vector<4x64xf32> to vector<4x64xbf16>
    %cst_166 = arith.constant dense<0.000000e+00> : vector<4x256xf32>
    %890 = tpu.matmul %889, %22, %cst_166 {dimension_numbers = #tpu.dot_dimension_numbers<[1], [0], [0], [1], [0, 0, 1, 1], [], []>} : vector<4x64xbf16>, vector<64x256xbf16>, vector<4x256xf32> -> vector<4x256xf32>
    %891 = arith.addf %888, %890 : vector<4x256xf32>
    %c4_i32_167 = arith.constant 4 : i32
    %892 = arith.muli %885, %c4_i32_167 : i32
    %893 = arith.index_cast %892 : i32 to index
    %c0_168 = arith.constant 0 : index
    %894 = vector.load %arg16[%893, %c0_168] : memref<64x256xf32, #tpu.memory_space<vmem>>, vector<4x256xf32>
    %895 = arith.truncf %881 : vector<4x64xf32> to vector<4x64xbf16>
    %cst_169 = arith.constant dense<0.000000e+00> : vector<4x256xf32>
    %896 = tpu.matmul %895, %24, %cst_169 {dimension_numbers = #tpu.dot_dimension_numbers<[1], [0], [0], [1], [0, 0, 1, 1], [], []>} : vector<4x64xbf16>, vector<64x256xbf16>, vector<4x256xf32> -> vector<4x256xf32>
    %897 = arith.addf %894, %896 : vector<4x256xf32>
    %898 = vector.broadcast %c10_i32 : i32 to vector<4x1xi32>
    %899 = arith.cmpi sge, %898, %25 : vector<4x1xi32>
    %900 = vector.broadcast %c10_i32 : i32 to vector<4x1xi32>
    %901 = arith.cmpi slt, %900, %26 : vector<4x1xi32>
    %902 = arith.andi %899, %901 : vector<4x1xi1>
    %903 = vector.extract_strided_slice %891 {offsets = [0, 0], sizes = [4, 64], strides = [1, 1]} : vector<4x256xf32> to vector<4x64xf32>
    %904 = arith.negf %903 : vector<4x64xf32>
    %905 = math.exp %904 : vector<4x64xf32>
    %cst_170 = arith.constant 1.000000e+00 : f32
    %906 = vector.broadcast %cst_170 : f32 to vector<4x64xf32>
    %907 = arith.addf %906, %905 : vector<4x64xf32>
    %908 = arith.divf %906, %907 : vector<4x64xf32>
    %909 = vector.extract_strided_slice %891 {offsets = [0, 64], sizes = [4, 64], strides = [1, 1]} : vector<4x256xf32> to vector<4x64xf32>
    %910 = arith.negf %909 : vector<4x64xf32>
    %911 = math.exp %910 : vector<4x64xf32>
    %cst_171 = arith.constant 1.000000e+00 : f32
    %912 = vector.broadcast %cst_171 : f32 to vector<4x64xf32>
    %913 = arith.addf %912, %911 : vector<4x64xf32>
    %914 = arith.divf %912, %913 : vector<4x64xf32>
    %915 = vector.extract_strided_slice %891 {offsets = [0, 128], sizes = [4, 64], strides = [1, 1]} : vector<4x256xf32> to vector<4x64xf32>
    %916 = math.tanh %915 : vector<4x64xf32>
    %917 = vector.extract_strided_slice %891 {offsets = [0, 192], sizes = [4, 64], strides = [1, 1]} : vector<4x256xf32> to vector<4x64xf32>
    %918 = arith.negf %917 : vector<4x64xf32>
    %919 = math.exp %918 : vector<4x64xf32>
    %cst_172 = arith.constant 1.000000e+00 : f32
    %920 = vector.broadcast %cst_172 : f32 to vector<4x64xf32>
    %921 = arith.addf %920, %919 : vector<4x64xf32>
    %922 = arith.divf %920, %921 : vector<4x64xf32>
    %923 = arith.mulf %914, %848 : vector<4x64xf32>
    %924 = arith.mulf %908, %916 : vector<4x64xf32>
    %925 = arith.addf %923, %924 : vector<4x64xf32>
    %926 = math.tanh %925 : vector<4x64xf32>
    %927 = arith.mulf %922, %926 : vector<4x64xf32>
    %928 = vector.shape_cast %902 : vector<4x1xi1> to vector<4x1xi1>
    %929 = vector.broadcast %928 : vector<4x1xi1> to vector<4x64xi1>
    %930 = arith.select %929, %927, %845 : vector<4x64xi1>, vector<4x64xf32>
    %931 = vector.shape_cast %902 : vector<4x1xi1> to vector<4x1xi1>
    %932 = vector.broadcast %931 : vector<4x1xi1> to vector<4x64xi1>
    %933 = arith.select %932, %925, %848 : vector<4x64xi1>, vector<4x64xf32>
    %934 = vector.broadcast %885 : i32 to vector<4x1xi32>
    %935 = arith.cmpi sge, %934, %25 : vector<4x1xi32>
    %936 = vector.broadcast %885 : i32 to vector<4x1xi32>
    %937 = arith.cmpi slt, %936, %26 : vector<4x1xi32>
    %938 = arith.andi %935, %937 : vector<4x1xi1>
    %939 = vector.extract_strided_slice %897 {offsets = [0, 0], sizes = [4, 64], strides = [1, 1]} : vector<4x256xf32> to vector<4x64xf32>
    %940 = arith.negf %939 : vector<4x64xf32>
    %941 = math.exp %940 : vector<4x64xf32>
    %cst_173 = arith.constant 1.000000e+00 : f32
    %942 = vector.broadcast %cst_173 : f32 to vector<4x64xf32>
    %943 = arith.addf %942, %941 : vector<4x64xf32>
    %944 = arith.divf %942, %943 : vector<4x64xf32>
    %945 = vector.extract_strided_slice %897 {offsets = [0, 64], sizes = [4, 64], strides = [1, 1]} : vector<4x256xf32> to vector<4x64xf32>
    %946 = arith.negf %945 : vector<4x64xf32>
    %947 = math.exp %946 : vector<4x64xf32>
    %cst_174 = arith.constant 1.000000e+00 : f32
    %948 = vector.broadcast %cst_174 : f32 to vector<4x64xf32>
    %949 = arith.addf %948, %947 : vector<4x64xf32>
    %950 = arith.divf %948, %949 : vector<4x64xf32>
    %951 = vector.extract_strided_slice %897 {offsets = [0, 128], sizes = [4, 64], strides = [1, 1]} : vector<4x256xf32> to vector<4x64xf32>
    %952 = math.tanh %951 : vector<4x64xf32>
    %953 = vector.extract_strided_slice %897 {offsets = [0, 192], sizes = [4, 64], strides = [1, 1]} : vector<4x256xf32> to vector<4x64xf32>
    %954 = arith.negf %953 : vector<4x64xf32>
    %955 = math.exp %954 : vector<4x64xf32>
    %cst_175 = arith.constant 1.000000e+00 : f32
    %956 = vector.broadcast %cst_175 : f32 to vector<4x64xf32>
    %957 = arith.addf %956, %955 : vector<4x64xf32>
    %958 = arith.divf %956, %957 : vector<4x64xf32>
    %959 = arith.mulf %950, %884 : vector<4x64xf32>
    %960 = arith.mulf %944, %952 : vector<4x64xf32>
    %961 = arith.addf %959, %960 : vector<4x64xf32>
    %962 = math.tanh %961 : vector<4x64xf32>
    %963 = arith.mulf %958, %962 : vector<4x64xf32>
    %964 = vector.shape_cast %938 : vector<4x1xi1> to vector<4x1xi1>
    %965 = vector.broadcast %964 : vector<4x1xi1> to vector<4x64xi1>
    %966 = arith.select %965, %963, %881 : vector<4x64xi1>, vector<4x64xf32>
    %967 = vector.shape_cast %938 : vector<4x1xi1> to vector<4x1xi1>
    %968 = vector.broadcast %967 : vector<4x1xi1> to vector<4x64xi1>
    %969 = arith.select %968, %961, %884 : vector<4x64xi1>, vector<4x64xf32>
    %c11_i32 = arith.constant 11 : i32
    %c15_i32_176 = arith.constant 15 : i32
    %970 = arith.subi %c15_i32_176, %c11_i32 : i32
    %c4_i32_177 = arith.constant 4 : i32
    %971 = arith.muli %c11_i32, %c4_i32_177 : i32
    %972 = arith.index_cast %971 : i32 to index
    %c0_178 = arith.constant 0 : index
    %973 = vector.load %arg15[%972, %c0_178] : memref<64x256xf32, #tpu.memory_space<vmem>>, vector<4x256xf32>
    %974 = arith.truncf %930 : vector<4x64xf32> to vector<4x64xbf16>
    %cst_179 = arith.constant dense<0.000000e+00> : vector<4x256xf32>
    %975 = tpu.matmul %974, %22, %cst_179 {dimension_numbers = #tpu.dot_dimension_numbers<[1], [0], [0], [1], [0, 0, 1, 1], [], []>} : vector<4x64xbf16>, vector<64x256xbf16>, vector<4x256xf32> -> vector<4x256xf32>
    %976 = arith.addf %973, %975 : vector<4x256xf32>
    %c4_i32_180 = arith.constant 4 : i32
    %977 = arith.muli %970, %c4_i32_180 : i32
    %978 = arith.index_cast %977 : i32 to index
    %c0_181 = arith.constant 0 : index
    %979 = vector.load %arg16[%978, %c0_181] : memref<64x256xf32, #tpu.memory_space<vmem>>, vector<4x256xf32>
    %980 = arith.truncf %966 : vector<4x64xf32> to vector<4x64xbf16>
    %cst_182 = arith.constant dense<0.000000e+00> : vector<4x256xf32>
    %981 = tpu.matmul %980, %24, %cst_182 {dimension_numbers = #tpu.dot_dimension_numbers<[1], [0], [0], [1], [0, 0, 1, 1], [], []>} : vector<4x64xbf16>, vector<64x256xbf16>, vector<4x256xf32> -> vector<4x256xf32>
    %982 = arith.addf %979, %981 : vector<4x256xf32>
    %983 = vector.broadcast %c11_i32 : i32 to vector<4x1xi32>
    %984 = arith.cmpi sge, %983, %25 : vector<4x1xi32>
    %985 = vector.broadcast %c11_i32 : i32 to vector<4x1xi32>
    %986 = arith.cmpi slt, %985, %26 : vector<4x1xi32>
    %987 = arith.andi %984, %986 : vector<4x1xi1>
    %988 = vector.extract_strided_slice %976 {offsets = [0, 0], sizes = [4, 64], strides = [1, 1]} : vector<4x256xf32> to vector<4x64xf32>
    %989 = arith.negf %988 : vector<4x64xf32>
    %990 = math.exp %989 : vector<4x64xf32>
    %cst_183 = arith.constant 1.000000e+00 : f32
    %991 = vector.broadcast %cst_183 : f32 to vector<4x64xf32>
    %992 = arith.addf %991, %990 : vector<4x64xf32>
    %993 = arith.divf %991, %992 : vector<4x64xf32>
    %994 = vector.extract_strided_slice %976 {offsets = [0, 64], sizes = [4, 64], strides = [1, 1]} : vector<4x256xf32> to vector<4x64xf32>
    %995 = arith.negf %994 : vector<4x64xf32>
    %996 = math.exp %995 : vector<4x64xf32>
    %cst_184 = arith.constant 1.000000e+00 : f32
    %997 = vector.broadcast %cst_184 : f32 to vector<4x64xf32>
    %998 = arith.addf %997, %996 : vector<4x64xf32>
    %999 = arith.divf %997, %998 : vector<4x64xf32>
    %1000 = vector.extract_strided_slice %976 {offsets = [0, 128], sizes = [4, 64], strides = [1, 1]} : vector<4x256xf32> to vector<4x64xf32>
    %1001 = math.tanh %1000 : vector<4x64xf32>
    %1002 = vector.extract_strided_slice %976 {offsets = [0, 192], sizes = [4, 64], strides = [1, 1]} : vector<4x256xf32> to vector<4x64xf32>
    %1003 = arith.negf %1002 : vector<4x64xf32>
    %1004 = math.exp %1003 : vector<4x64xf32>
    %cst_185 = arith.constant 1.000000e+00 : f32
    %1005 = vector.broadcast %cst_185 : f32 to vector<4x64xf32>
    %1006 = arith.addf %1005, %1004 : vector<4x64xf32>
    %1007 = arith.divf %1005, %1006 : vector<4x64xf32>
    %1008 = arith.mulf %999, %933 : vector<4x64xf32>
    %1009 = arith.mulf %993, %1001 : vector<4x64xf32>
    %1010 = arith.addf %1008, %1009 : vector<4x64xf32>
    %1011 = math.tanh %1010 : vector<4x64xf32>
    %1012 = arith.mulf %1007, %1011 : vector<4x64xf32>
    %1013 = vector.shape_cast %987 : vector<4x1xi1> to vector<4x1xi1>
    %1014 = vector.broadcast %1013 : vector<4x1xi1> to vector<4x64xi1>
    %1015 = arith.select %1014, %1012, %930 : vector<4x64xi1>, vector<4x64xf32>
    %1016 = vector.shape_cast %987 : vector<4x1xi1> to vector<4x1xi1>
    %1017 = vector.broadcast %1016 : vector<4x1xi1> to vector<4x64xi1>
    %1018 = arith.select %1017, %1010, %933 : vector<4x64xi1>, vector<4x64xf32>
    %1019 = vector.broadcast %970 : i32 to vector<4x1xi32>
    %1020 = arith.cmpi sge, %1019, %25 : vector<4x1xi32>
    %1021 = vector.broadcast %970 : i32 to vector<4x1xi32>
    %1022 = arith.cmpi slt, %1021, %26 : vector<4x1xi32>
    %1023 = arith.andi %1020, %1022 : vector<4x1xi1>
    %1024 = vector.extract_strided_slice %982 {offsets = [0, 0], sizes = [4, 64], strides = [1, 1]} : vector<4x256xf32> to vector<4x64xf32>
    %1025 = arith.negf %1024 : vector<4x64xf32>
    %1026 = math.exp %1025 : vector<4x64xf32>
    %cst_186 = arith.constant 1.000000e+00 : f32
    %1027 = vector.broadcast %cst_186 : f32 to vector<4x64xf32>
    %1028 = arith.addf %1027, %1026 : vector<4x64xf32>
    %1029 = arith.divf %1027, %1028 : vector<4x64xf32>
    %1030 = vector.extract_strided_slice %982 {offsets = [0, 64], sizes = [4, 64], strides = [1, 1]} : vector<4x256xf32> to vector<4x64xf32>
    %1031 = arith.negf %1030 : vector<4x64xf32>
    %1032 = math.exp %1031 : vector<4x64xf32>
    %cst_187 = arith.constant 1.000000e+00 : f32
    %1033 = vector.broadcast %cst_187 : f32 to vector<4x64xf32>
    %1034 = arith.addf %1033, %1032 : vector<4x64xf32>
    %1035 = arith.divf %1033, %1034 : vector<4x64xf32>
    %1036 = vector.extract_strided_slice %982 {offsets = [0, 128], sizes = [4, 64], strides = [1, 1]} : vector<4x256xf32> to vector<4x64xf32>
    %1037 = math.tanh %1036 : vector<4x64xf32>
    %1038 = vector.extract_strided_slice %982 {offsets = [0, 192], sizes = [4, 64], strides = [1, 1]} : vector<4x256xf32> to vector<4x64xf32>
    %1039 = arith.negf %1038 : vector<4x64xf32>
    %1040 = math.exp %1039 : vector<4x64xf32>
    %cst_188 = arith.constant 1.000000e+00 : f32
    %1041 = vector.broadcast %cst_188 : f32 to vector<4x64xf32>
    %1042 = arith.addf %1041, %1040 : vector<4x64xf32>
    %1043 = arith.divf %1041, %1042 : vector<4x64xf32>
    %1044 = arith.mulf %1035, %969 : vector<4x64xf32>
    %1045 = arith.mulf %1029, %1037 : vector<4x64xf32>
    %1046 = arith.addf %1044, %1045 : vector<4x64xf32>
    %1047 = math.tanh %1046 : vector<4x64xf32>
    %1048 = arith.mulf %1043, %1047 : vector<4x64xf32>
    %1049 = vector.shape_cast %1023 : vector<4x1xi1> to vector<4x1xi1>
    %1050 = vector.broadcast %1049 : vector<4x1xi1> to vector<4x64xi1>
    %1051 = arith.select %1050, %1048, %966 : vector<4x64xi1>, vector<4x64xf32>
    %1052 = vector.shape_cast %1023 : vector<4x1xi1> to vector<4x1xi1>
    %1053 = vector.broadcast %1052 : vector<4x1xi1> to vector<4x64xi1>
    %1054 = arith.select %1053, %1046, %969 : vector<4x64xi1>, vector<4x64xf32>
    %c12_i32 = arith.constant 12 : i32
    %c15_i32_189 = arith.constant 15 : i32
    %1055 = arith.subi %c15_i32_189, %c12_i32 : i32
    %c4_i32_190 = arith.constant 4 : i32
    %1056 = arith.muli %c12_i32, %c4_i32_190 : i32
    %1057 = arith.index_cast %1056 : i32 to index
    %c0_191 = arith.constant 0 : index
    %1058 = vector.load %arg15[%1057, %c0_191] : memref<64x256xf32, #tpu.memory_space<vmem>>, vector<4x256xf32>
    %1059 = arith.truncf %1015 : vector<4x64xf32> to vector<4x64xbf16>
    %cst_192 = arith.constant dense<0.000000e+00> : vector<4x256xf32>
    %1060 = tpu.matmul %1059, %22, %cst_192 {dimension_numbers = #tpu.dot_dimension_numbers<[1], [0], [0], [1], [0, 0, 1, 1], [], []>} : vector<4x64xbf16>, vector<64x256xbf16>, vector<4x256xf32> -> vector<4x256xf32>
    %1061 = arith.addf %1058, %1060 : vector<4x256xf32>
    %c4_i32_193 = arith.constant 4 : i32
    %1062 = arith.muli %1055, %c4_i32_193 : i32
    %1063 = arith.index_cast %1062 : i32 to index
    %c0_194 = arith.constant 0 : index
    %1064 = vector.load %arg16[%1063, %c0_194] : memref<64x256xf32, #tpu.memory_space<vmem>>, vector<4x256xf32>
    %1065 = arith.truncf %1051 : vector<4x64xf32> to vector<4x64xbf16>
    %cst_195 = arith.constant dense<0.000000e+00> : vector<4x256xf32>
    %1066 = tpu.matmul %1065, %24, %cst_195 {dimension_numbers = #tpu.dot_dimension_numbers<[1], [0], [0], [1], [0, 0, 1, 1], [], []>} : vector<4x64xbf16>, vector<64x256xbf16>, vector<4x256xf32> -> vector<4x256xf32>
    %1067 = arith.addf %1064, %1066 : vector<4x256xf32>
    %1068 = vector.broadcast %c12_i32 : i32 to vector<4x1xi32>
    %1069 = arith.cmpi sge, %1068, %25 : vector<4x1xi32>
    %1070 = vector.broadcast %c12_i32 : i32 to vector<4x1xi32>
    %1071 = arith.cmpi slt, %1070, %26 : vector<4x1xi32>
    %1072 = arith.andi %1069, %1071 : vector<4x1xi1>
    %1073 = vector.extract_strided_slice %1061 {offsets = [0, 0], sizes = [4, 64], strides = [1, 1]} : vector<4x256xf32> to vector<4x64xf32>
    %1074 = arith.negf %1073 : vector<4x64xf32>
    %1075 = math.exp %1074 : vector<4x64xf32>
    %cst_196 = arith.constant 1.000000e+00 : f32
    %1076 = vector.broadcast %cst_196 : f32 to vector<4x64xf32>
    %1077 = arith.addf %1076, %1075 : vector<4x64xf32>
    %1078 = arith.divf %1076, %1077 : vector<4x64xf32>
    %1079 = vector.extract_strided_slice %1061 {offsets = [0, 64], sizes = [4, 64], strides = [1, 1]} : vector<4x256xf32> to vector<4x64xf32>
    %1080 = arith.negf %1079 : vector<4x64xf32>
    %1081 = math.exp %1080 : vector<4x64xf32>
    %cst_197 = arith.constant 1.000000e+00 : f32
    %1082 = vector.broadcast %cst_197 : f32 to vector<4x64xf32>
    %1083 = arith.addf %1082, %1081 : vector<4x64xf32>
    %1084 = arith.divf %1082, %1083 : vector<4x64xf32>
    %1085 = vector.extract_strided_slice %1061 {offsets = [0, 128], sizes = [4, 64], strides = [1, 1]} : vector<4x256xf32> to vector<4x64xf32>
    %1086 = math.tanh %1085 : vector<4x64xf32>
    %1087 = vector.extract_strided_slice %1061 {offsets = [0, 192], sizes = [4, 64], strides = [1, 1]} : vector<4x256xf32> to vector<4x64xf32>
    %1088 = arith.negf %1087 : vector<4x64xf32>
    %1089 = math.exp %1088 : vector<4x64xf32>
    %cst_198 = arith.constant 1.000000e+00 : f32
    %1090 = vector.broadcast %cst_198 : f32 to vector<4x64xf32>
    %1091 = arith.addf %1090, %1089 : vector<4x64xf32>
    %1092 = arith.divf %1090, %1091 : vector<4x64xf32>
    %1093 = arith.mulf %1084, %1018 : vector<4x64xf32>
    %1094 = arith.mulf %1078, %1086 : vector<4x64xf32>
    %1095 = arith.addf %1093, %1094 : vector<4x64xf32>
    %1096 = math.tanh %1095 : vector<4x64xf32>
    %1097 = arith.mulf %1092, %1096 : vector<4x64xf32>
    %1098 = vector.shape_cast %1072 : vector<4x1xi1> to vector<4x1xi1>
    %1099 = vector.broadcast %1098 : vector<4x1xi1> to vector<4x64xi1>
    %1100 = arith.select %1099, %1097, %1015 : vector<4x64xi1>, vector<4x64xf32>
    %1101 = vector.shape_cast %1072 : vector<4x1xi1> to vector<4x1xi1>
    %1102 = vector.broadcast %1101 : vector<4x1xi1> to vector<4x64xi1>
    %1103 = arith.select %1102, %1095, %1018 : vector<4x64xi1>, vector<4x64xf32>
    %1104 = vector.broadcast %1055 : i32 to vector<4x1xi32>
    %1105 = arith.cmpi sge, %1104, %25 : vector<4x1xi32>
    %1106 = vector.broadcast %1055 : i32 to vector<4x1xi32>
    %1107 = arith.cmpi slt, %1106, %26 : vector<4x1xi32>
    %1108 = arith.andi %1105, %1107 : vector<4x1xi1>
    %1109 = vector.extract_strided_slice %1067 {offsets = [0, 0], sizes = [4, 64], strides = [1, 1]} : vector<4x256xf32> to vector<4x64xf32>
    %1110 = arith.negf %1109 : vector<4x64xf32>
    %1111 = math.exp %1110 : vector<4x64xf32>
    %cst_199 = arith.constant 1.000000e+00 : f32
    %1112 = vector.broadcast %cst_199 : f32 to vector<4x64xf32>
    %1113 = arith.addf %1112, %1111 : vector<4x64xf32>
    %1114 = arith.divf %1112, %1113 : vector<4x64xf32>
    %1115 = vector.extract_strided_slice %1067 {offsets = [0, 64], sizes = [4, 64], strides = [1, 1]} : vector<4x256xf32> to vector<4x64xf32>
    %1116 = arith.negf %1115 : vector<4x64xf32>
    %1117 = math.exp %1116 : vector<4x64xf32>
    %cst_200 = arith.constant 1.000000e+00 : f32
    %1118 = vector.broadcast %cst_200 : f32 to vector<4x64xf32>
    %1119 = arith.addf %1118, %1117 : vector<4x64xf32>
    %1120 = arith.divf %1118, %1119 : vector<4x64xf32>
    %1121 = vector.extract_strided_slice %1067 {offsets = [0, 128], sizes = [4, 64], strides = [1, 1]} : vector<4x256xf32> to vector<4x64xf32>
    %1122 = math.tanh %1121 : vector<4x64xf32>
    %1123 = vector.extract_strided_slice %1067 {offsets = [0, 192], sizes = [4, 64], strides = [1, 1]} : vector<4x256xf32> to vector<4x64xf32>
    %1124 = arith.negf %1123 : vector<4x64xf32>
    %1125 = math.exp %1124 : vector<4x64xf32>
    %cst_201 = arith.constant 1.000000e+00 : f32
    %1126 = vector.broadcast %cst_201 : f32 to vector<4x64xf32>
    %1127 = arith.addf %1126, %1125 : vector<4x64xf32>
    %1128 = arith.divf %1126, %1127 : vector<4x64xf32>
    %1129 = arith.mulf %1120, %1054 : vector<4x64xf32>
    %1130 = arith.mulf %1114, %1122 : vector<4x64xf32>
    %1131 = arith.addf %1129, %1130 : vector<4x64xf32>
    %1132 = math.tanh %1131 : vector<4x64xf32>
    %1133 = arith.mulf %1128, %1132 : vector<4x64xf32>
    %1134 = vector.shape_cast %1108 : vector<4x1xi1> to vector<4x1xi1>
    %1135 = vector.broadcast %1134 : vector<4x1xi1> to vector<4x64xi1>
    %1136 = arith.select %1135, %1133, %1051 : vector<4x64xi1>, vector<4x64xf32>
    %1137 = vector.shape_cast %1108 : vector<4x1xi1> to vector<4x1xi1>
    %1138 = vector.broadcast %1137 : vector<4x1xi1> to vector<4x64xi1>
    %1139 = arith.select %1138, %1131, %1054 : vector<4x64xi1>, vector<4x64xf32>
    %c13_i32 = arith.constant 13 : i32
    %c15_i32_202 = arith.constant 15 : i32
    %1140 = arith.subi %c15_i32_202, %c13_i32 : i32
    %c4_i32_203 = arith.constant 4 : i32
    %1141 = arith.muli %c13_i32, %c4_i32_203 : i32
    %1142 = arith.index_cast %1141 : i32 to index
    %c0_204 = arith.constant 0 : index
    %1143 = vector.load %arg15[%1142, %c0_204] : memref<64x256xf32, #tpu.memory_space<vmem>>, vector<4x256xf32>
    %1144 = arith.truncf %1100 : vector<4x64xf32> to vector<4x64xbf16>
    %cst_205 = arith.constant dense<0.000000e+00> : vector<4x256xf32>
    %1145 = tpu.matmul %1144, %22, %cst_205 {dimension_numbers = #tpu.dot_dimension_numbers<[1], [0], [0], [1], [0, 0, 1, 1], [], []>} : vector<4x64xbf16>, vector<64x256xbf16>, vector<4x256xf32> -> vector<4x256xf32>
    %1146 = arith.addf %1143, %1145 : vector<4x256xf32>
    %c4_i32_206 = arith.constant 4 : i32
    %1147 = arith.muli %1140, %c4_i32_206 : i32
    %1148 = arith.index_cast %1147 : i32 to index
    %c0_207 = arith.constant 0 : index
    %1149 = vector.load %arg16[%1148, %c0_207] : memref<64x256xf32, #tpu.memory_space<vmem>>, vector<4x256xf32>
    %1150 = arith.truncf %1136 : vector<4x64xf32> to vector<4x64xbf16>
    %cst_208 = arith.constant dense<0.000000e+00> : vector<4x256xf32>
    %1151 = tpu.matmul %1150, %24, %cst_208 {dimension_numbers = #tpu.dot_dimension_numbers<[1], [0], [0], [1], [0, 0, 1, 1], [], []>} : vector<4x64xbf16>, vector<64x256xbf16>, vector<4x256xf32> -> vector<4x256xf32>
    %1152 = arith.addf %1149, %1151 : vector<4x256xf32>
    %1153 = vector.broadcast %c13_i32 : i32 to vector<4x1xi32>
    %1154 = arith.cmpi sge, %1153, %25 : vector<4x1xi32>
    %1155 = vector.broadcast %c13_i32 : i32 to vector<4x1xi32>
    %1156 = arith.cmpi slt, %1155, %26 : vector<4x1xi32>
    %1157 = arith.andi %1154, %1156 : vector<4x1xi1>
    %1158 = vector.extract_strided_slice %1146 {offsets = [0, 0], sizes = [4, 64], strides = [1, 1]} : vector<4x256xf32> to vector<4x64xf32>
    %1159 = arith.negf %1158 : vector<4x64xf32>
    %1160 = math.exp %1159 : vector<4x64xf32>
    %cst_209 = arith.constant 1.000000e+00 : f32
    %1161 = vector.broadcast %cst_209 : f32 to vector<4x64xf32>
    %1162 = arith.addf %1161, %1160 : vector<4x64xf32>
    %1163 = arith.divf %1161, %1162 : vector<4x64xf32>
    %1164 = vector.extract_strided_slice %1146 {offsets = [0, 64], sizes = [4, 64], strides = [1, 1]} : vector<4x256xf32> to vector<4x64xf32>
    %1165 = arith.negf %1164 : vector<4x64xf32>
    %1166 = math.exp %1165 : vector<4x64xf32>
    %cst_210 = arith.constant 1.000000e+00 : f32
    %1167 = vector.broadcast %cst_210 : f32 to vector<4x64xf32>
    %1168 = arith.addf %1167, %1166 : vector<4x64xf32>
    %1169 = arith.divf %1167, %1168 : vector<4x64xf32>
    %1170 = vector.extract_strided_slice %1146 {offsets = [0, 128], sizes = [4, 64], strides = [1, 1]} : vector<4x256xf32> to vector<4x64xf32>
    %1171 = math.tanh %1170 : vector<4x64xf32>
    %1172 = vector.extract_strided_slice %1146 {offsets = [0, 192], sizes = [4, 64], strides = [1, 1]} : vector<4x256xf32> to vector<4x64xf32>
    %1173 = arith.negf %1172 : vector<4x64xf32>
    %1174 = math.exp %1173 : vector<4x64xf32>
    %cst_211 = arith.constant 1.000000e+00 : f32
    %1175 = vector.broadcast %cst_211 : f32 to vector<4x64xf32>
    %1176 = arith.addf %1175, %1174 : vector<4x64xf32>
    %1177 = arith.divf %1175, %1176 : vector<4x64xf32>
    %1178 = arith.mulf %1169, %1103 : vector<4x64xf32>
    %1179 = arith.mulf %1163, %1171 : vector<4x64xf32>
    %1180 = arith.addf %1178, %1179 : vector<4x64xf32>
    %1181 = math.tanh %1180 : vector<4x64xf32>
    %1182 = arith.mulf %1177, %1181 : vector<4x64xf32>
    %1183 = vector.shape_cast %1157 : vector<4x1xi1> to vector<4x1xi1>
    %1184 = vector.broadcast %1183 : vector<4x1xi1> to vector<4x64xi1>
    %1185 = arith.select %1184, %1182, %1100 : vector<4x64xi1>, vector<4x64xf32>
    %1186 = vector.shape_cast %1157 : vector<4x1xi1> to vector<4x1xi1>
    %1187 = vector.broadcast %1186 : vector<4x1xi1> to vector<4x64xi1>
    %1188 = arith.select %1187, %1180, %1103 : vector<4x64xi1>, vector<4x64xf32>
    %1189 = vector.broadcast %1140 : i32 to vector<4x1xi32>
    %1190 = arith.cmpi sge, %1189, %25 : vector<4x1xi32>
    %1191 = vector.broadcast %1140 : i32 to vector<4x1xi32>
    %1192 = arith.cmpi slt, %1191, %26 : vector<4x1xi32>
    %1193 = arith.andi %1190, %1192 : vector<4x1xi1>
    %1194 = vector.extract_strided_slice %1152 {offsets = [0, 0], sizes = [4, 64], strides = [1, 1]} : vector<4x256xf32> to vector<4x64xf32>
    %1195 = arith.negf %1194 : vector<4x64xf32>
    %1196 = math.exp %1195 : vector<4x64xf32>
    %cst_212 = arith.constant 1.000000e+00 : f32
    %1197 = vector.broadcast %cst_212 : f32 to vector<4x64xf32>
    %1198 = arith.addf %1197, %1196 : vector<4x64xf32>
    %1199 = arith.divf %1197, %1198 : vector<4x64xf32>
    %1200 = vector.extract_strided_slice %1152 {offsets = [0, 64], sizes = [4, 64], strides = [1, 1]} : vector<4x256xf32> to vector<4x64xf32>
    %1201 = arith.negf %1200 : vector<4x64xf32>
    %1202 = math.exp %1201 : vector<4x64xf32>
    %cst_213 = arith.constant 1.000000e+00 : f32
    %1203 = vector.broadcast %cst_213 : f32 to vector<4x64xf32>
    %1204 = arith.addf %1203, %1202 : vector<4x64xf32>
    %1205 = arith.divf %1203, %1204 : vector<4x64xf32>
    %1206 = vector.extract_strided_slice %1152 {offsets = [0, 128], sizes = [4, 64], strides = [1, 1]} : vector<4x256xf32> to vector<4x64xf32>
    %1207 = math.tanh %1206 : vector<4x64xf32>
    %1208 = vector.extract_strided_slice %1152 {offsets = [0, 192], sizes = [4, 64], strides = [1, 1]} : vector<4x256xf32> to vector<4x64xf32>
    %1209 = arith.negf %1208 : vector<4x64xf32>
    %1210 = math.exp %1209 : vector<4x64xf32>
    %cst_214 = arith.constant 1.000000e+00 : f32
    %1211 = vector.broadcast %cst_214 : f32 to vector<4x64xf32>
    %1212 = arith.addf %1211, %1210 : vector<4x64xf32>
    %1213 = arith.divf %1211, %1212 : vector<4x64xf32>
    %1214 = arith.mulf %1205, %1139 : vector<4x64xf32>
    %1215 = arith.mulf %1199, %1207 : vector<4x64xf32>
    %1216 = arith.addf %1214, %1215 : vector<4x64xf32>
    %1217 = math.tanh %1216 : vector<4x64xf32>
    %1218 = arith.mulf %1213, %1217 : vector<4x64xf32>
    %1219 = vector.shape_cast %1193 : vector<4x1xi1> to vector<4x1xi1>
    %1220 = vector.broadcast %1219 : vector<4x1xi1> to vector<4x64xi1>
    %1221 = arith.select %1220, %1218, %1136 : vector<4x64xi1>, vector<4x64xf32>
    %1222 = vector.shape_cast %1193 : vector<4x1xi1> to vector<4x1xi1>
    %1223 = vector.broadcast %1222 : vector<4x1xi1> to vector<4x64xi1>
    %1224 = arith.select %1223, %1216, %1139 : vector<4x64xi1>, vector<4x64xf32>
    %c14_i32 = arith.constant 14 : i32
    %c15_i32_215 = arith.constant 15 : i32
    %1225 = arith.subi %c15_i32_215, %c14_i32 : i32
    %c4_i32_216 = arith.constant 4 : i32
    %1226 = arith.muli %c14_i32, %c4_i32_216 : i32
    %1227 = arith.index_cast %1226 : i32 to index
    %c0_217 = arith.constant 0 : index
    %1228 = vector.load %arg15[%1227, %c0_217] : memref<64x256xf32, #tpu.memory_space<vmem>>, vector<4x256xf32>
    %1229 = arith.truncf %1185 : vector<4x64xf32> to vector<4x64xbf16>
    %cst_218 = arith.constant dense<0.000000e+00> : vector<4x256xf32>
    %1230 = tpu.matmul %1229, %22, %cst_218 {dimension_numbers = #tpu.dot_dimension_numbers<[1], [0], [0], [1], [0, 0, 1, 1], [], []>} : vector<4x64xbf16>, vector<64x256xbf16>, vector<4x256xf32> -> vector<4x256xf32>
    %1231 = arith.addf %1228, %1230 : vector<4x256xf32>
    %c4_i32_219 = arith.constant 4 : i32
    %1232 = arith.muli %1225, %c4_i32_219 : i32
    %1233 = arith.index_cast %1232 : i32 to index
    %c0_220 = arith.constant 0 : index
    %1234 = vector.load %arg16[%1233, %c0_220] : memref<64x256xf32, #tpu.memory_space<vmem>>, vector<4x256xf32>
    %1235 = arith.truncf %1221 : vector<4x64xf32> to vector<4x64xbf16>
    %cst_221 = arith.constant dense<0.000000e+00> : vector<4x256xf32>
    %1236 = tpu.matmul %1235, %24, %cst_221 {dimension_numbers = #tpu.dot_dimension_numbers<[1], [0], [0], [1], [0, 0, 1, 1], [], []>} : vector<4x64xbf16>, vector<64x256xbf16>, vector<4x256xf32> -> vector<4x256xf32>
    %1237 = arith.addf %1234, %1236 : vector<4x256xf32>
    %1238 = vector.broadcast %c14_i32 : i32 to vector<4x1xi32>
    %1239 = arith.cmpi sge, %1238, %25 : vector<4x1xi32>
    %1240 = vector.broadcast %c14_i32 : i32 to vector<4x1xi32>
    %1241 = arith.cmpi slt, %1240, %26 : vector<4x1xi32>
    %1242 = arith.andi %1239, %1241 : vector<4x1xi1>
    %1243 = vector.extract_strided_slice %1231 {offsets = [0, 0], sizes = [4, 64], strides = [1, 1]} : vector<4x256xf32> to vector<4x64xf32>
    %1244 = arith.negf %1243 : vector<4x64xf32>
    %1245 = math.exp %1244 : vector<4x64xf32>
    %cst_222 = arith.constant 1.000000e+00 : f32
    %1246 = vector.broadcast %cst_222 : f32 to vector<4x64xf32>
    %1247 = arith.addf %1246, %1245 : vector<4x64xf32>
    %1248 = arith.divf %1246, %1247 : vector<4x64xf32>
    %1249 = vector.extract_strided_slice %1231 {offsets = [0, 64], sizes = [4, 64], strides = [1, 1]} : vector<4x256xf32> to vector<4x64xf32>
    %1250 = arith.negf %1249 : vector<4x64xf32>
    %1251 = math.exp %1250 : vector<4x64xf32>
    %cst_223 = arith.constant 1.000000e+00 : f32
    %1252 = vector.broadcast %cst_223 : f32 to vector<4x64xf32>
    %1253 = arith.addf %1252, %1251 : vector<4x64xf32>
    %1254 = arith.divf %1252, %1253 : vector<4x64xf32>
    %1255 = vector.extract_strided_slice %1231 {offsets = [0, 128], sizes = [4, 64], strides = [1, 1]} : vector<4x256xf32> to vector<4x64xf32>
    %1256 = math.tanh %1255 : vector<4x64xf32>
    %1257 = vector.extract_strided_slice %1231 {offsets = [0, 192], sizes = [4, 64], strides = [1, 1]} : vector<4x256xf32> to vector<4x64xf32>
    %1258 = arith.negf %1257 : vector<4x64xf32>
    %1259 = math.exp %1258 : vector<4x64xf32>
    %cst_224 = arith.constant 1.000000e+00 : f32
    %1260 = vector.broadcast %cst_224 : f32 to vector<4x64xf32>
    %1261 = arith.addf %1260, %1259 : vector<4x64xf32>
    %1262 = arith.divf %1260, %1261 : vector<4x64xf32>
    %1263 = arith.mulf %1254, %1188 : vector<4x64xf32>
    %1264 = arith.mulf %1248, %1256 : vector<4x64xf32>
    %1265 = arith.addf %1263, %1264 : vector<4x64xf32>
    %1266 = math.tanh %1265 : vector<4x64xf32>
    %1267 = arith.mulf %1262, %1266 : vector<4x64xf32>
    %1268 = vector.shape_cast %1242 : vector<4x1xi1> to vector<4x1xi1>
    %1269 = vector.broadcast %1268 : vector<4x1xi1> to vector<4x64xi1>
    %1270 = arith.select %1269, %1267, %1185 : vector<4x64xi1>, vector<4x64xf32>
    %1271 = vector.shape_cast %1242 : vector<4x1xi1> to vector<4x1xi1>
    %1272 = vector.broadcast %1271 : vector<4x1xi1> to vector<4x64xi1>
    %1273 = arith.select %1272, %1265, %1188 : vector<4x64xi1>, vector<4x64xf32>
    %1274 = vector.broadcast %1225 : i32 to vector<4x1xi32>
    %1275 = arith.cmpi sge, %1274, %25 : vector<4x1xi32>
    %1276 = vector.broadcast %1225 : i32 to vector<4x1xi32>
    %1277 = arith.cmpi slt, %1276, %26 : vector<4x1xi32>
    %1278 = arith.andi %1275, %1277 : vector<4x1xi1>
    %1279 = vector.extract_strided_slice %1237 {offsets = [0, 0], sizes = [4, 64], strides = [1, 1]} : vector<4x256xf32> to vector<4x64xf32>
    %1280 = arith.negf %1279 : vector<4x64xf32>
    %1281 = math.exp %1280 : vector<4x64xf32>
    %cst_225 = arith.constant 1.000000e+00 : f32
    %1282 = vector.broadcast %cst_225 : f32 to vector<4x64xf32>
    %1283 = arith.addf %1282, %1281 : vector<4x64xf32>
    %1284 = arith.divf %1282, %1283 : vector<4x64xf32>
    %1285 = vector.extract_strided_slice %1237 {offsets = [0, 64], sizes = [4, 64], strides = [1, 1]} : vector<4x256xf32> to vector<4x64xf32>
    %1286 = arith.negf %1285 : vector<4x64xf32>
    %1287 = math.exp %1286 : vector<4x64xf32>
    %cst_226 = arith.constant 1.000000e+00 : f32
    %1288 = vector.broadcast %cst_226 : f32 to vector<4x64xf32>
    %1289 = arith.addf %1288, %1287 : vector<4x64xf32>
    %1290 = arith.divf %1288, %1289 : vector<4x64xf32>
    %1291 = vector.extract_strided_slice %1237 {offsets = [0, 128], sizes = [4, 64], strides = [1, 1]} : vector<4x256xf32> to vector<4x64xf32>
    %1292 = math.tanh %1291 : vector<4x64xf32>
    %1293 = vector.extract_strided_slice %1237 {offsets = [0, 192], sizes = [4, 64], strides = [1, 1]} : vector<4x256xf32> to vector<4x64xf32>
    %1294 = arith.negf %1293 : vector<4x64xf32>
    %1295 = math.exp %1294 : vector<4x64xf32>
    %cst_227 = arith.constant 1.000000e+00 : f32
    %1296 = vector.broadcast %cst_227 : f32 to vector<4x64xf32>
    %1297 = arith.addf %1296, %1295 : vector<4x64xf32>
    %1298 = arith.divf %1296, %1297 : vector<4x64xf32>
    %1299 = arith.mulf %1290, %1224 : vector<4x64xf32>
    %1300 = arith.mulf %1284, %1292 : vector<4x64xf32>
    %1301 = arith.addf %1299, %1300 : vector<4x64xf32>
    %1302 = math.tanh %1301 : vector<4x64xf32>
    %1303 = arith.mulf %1298, %1302 : vector<4x64xf32>
    %1304 = vector.shape_cast %1278 : vector<4x1xi1> to vector<4x1xi1>
    %1305 = vector.broadcast %1304 : vector<4x1xi1> to vector<4x64xi1>
    %1306 = arith.select %1305, %1303, %1221 : vector<4x64xi1>, vector<4x64xf32>
    %1307 = vector.shape_cast %1278 : vector<4x1xi1> to vector<4x1xi1>
    %1308 = vector.broadcast %1307 : vector<4x1xi1> to vector<4x64xi1>
    %1309 = arith.select %1308, %1301, %1224 : vector<4x64xi1>, vector<4x64xf32>
    %c15_i32_228 = arith.constant 15 : i32
    %c15_i32_229 = arith.constant 15 : i32
    %1310 = arith.subi %c15_i32_229, %c15_i32_228 : i32
    %c4_i32_230 = arith.constant 4 : i32
    %1311 = arith.muli %c15_i32_228, %c4_i32_230 : i32
    %1312 = arith.index_cast %1311 : i32 to index
    %c0_231 = arith.constant 0 : index
    %1313 = vector.load %arg15[%1312, %c0_231] : memref<64x256xf32, #tpu.memory_space<vmem>>, vector<4x256xf32>
    %1314 = arith.truncf %1270 : vector<4x64xf32> to vector<4x64xbf16>
    %cst_232 = arith.constant dense<0.000000e+00> : vector<4x256xf32>
    %1315 = tpu.matmul %1314, %22, %cst_232 {dimension_numbers = #tpu.dot_dimension_numbers<[1], [0], [0], [1], [0, 0, 1, 1], [], []>} : vector<4x64xbf16>, vector<64x256xbf16>, vector<4x256xf32> -> vector<4x256xf32>
    %1316 = arith.addf %1313, %1315 : vector<4x256xf32>
    %c4_i32_233 = arith.constant 4 : i32
    %1317 = arith.muli %1310, %c4_i32_233 : i32
    %1318 = arith.index_cast %1317 : i32 to index
    %c0_234 = arith.constant 0 : index
    %1319 = vector.load %arg16[%1318, %c0_234] : memref<64x256xf32, #tpu.memory_space<vmem>>, vector<4x256xf32>
    %1320 = arith.truncf %1306 : vector<4x64xf32> to vector<4x64xbf16>
    %cst_235 = arith.constant dense<0.000000e+00> : vector<4x256xf32>
    %1321 = tpu.matmul %1320, %24, %cst_235 {dimension_numbers = #tpu.dot_dimension_numbers<[1], [0], [0], [1], [0, 0, 1, 1], [], []>} : vector<4x64xbf16>, vector<64x256xbf16>, vector<4x256xf32> -> vector<4x256xf32>
    %1322 = arith.addf %1319, %1321 : vector<4x256xf32>
    %1323 = vector.broadcast %c15_i32_228 : i32 to vector<4x1xi32>
    %1324 = arith.cmpi sge, %1323, %25 : vector<4x1xi32>
    %1325 = vector.broadcast %c15_i32_228 : i32 to vector<4x1xi32>
    %1326 = arith.cmpi slt, %1325, %26 : vector<4x1xi32>
    %1327 = arith.andi %1324, %1326 : vector<4x1xi1>
    %1328 = vector.extract_strided_slice %1316 {offsets = [0, 0], sizes = [4, 64], strides = [1, 1]} : vector<4x256xf32> to vector<4x64xf32>
    %1329 = arith.negf %1328 : vector<4x64xf32>
    %1330 = math.exp %1329 : vector<4x64xf32>
    %cst_236 = arith.constant 1.000000e+00 : f32
    %1331 = vector.broadcast %cst_236 : f32 to vector<4x64xf32>
    %1332 = arith.addf %1331, %1330 : vector<4x64xf32>
    %1333 = arith.divf %1331, %1332 : vector<4x64xf32>
    %1334 = vector.extract_strided_slice %1316 {offsets = [0, 64], sizes = [4, 64], strides = [1, 1]} : vector<4x256xf32> to vector<4x64xf32>
    %1335 = arith.negf %1334 : vector<4x64xf32>
    %1336 = math.exp %1335 : vector<4x64xf32>
    %cst_237 = arith.constant 1.000000e+00 : f32
    %1337 = vector.broadcast %cst_237 : f32 to vector<4x64xf32>
    %1338 = arith.addf %1337, %1336 : vector<4x64xf32>
    %1339 = arith.divf %1337, %1338 : vector<4x64xf32>
    %1340 = vector.extract_strided_slice %1316 {offsets = [0, 128], sizes = [4, 64], strides = [1, 1]} : vector<4x256xf32> to vector<4x64xf32>
    %1341 = math.tanh %1340 : vector<4x64xf32>
    %1342 = vector.extract_strided_slice %1316 {offsets = [0, 192], sizes = [4, 64], strides = [1, 1]} : vector<4x256xf32> to vector<4x64xf32>
    %1343 = arith.negf %1342 : vector<4x64xf32>
    %1344 = math.exp %1343 : vector<4x64xf32>
    %cst_238 = arith.constant 1.000000e+00 : f32
    %1345 = vector.broadcast %cst_238 : f32 to vector<4x64xf32>
    %1346 = arith.addf %1345, %1344 : vector<4x64xf32>
    %1347 = arith.divf %1345, %1346 : vector<4x64xf32>
    %1348 = arith.mulf %1339, %1273 : vector<4x64xf32>
    %1349 = arith.mulf %1333, %1341 : vector<4x64xf32>
    %1350 = arith.addf %1348, %1349 : vector<4x64xf32>
    %1351 = math.tanh %1350 : vector<4x64xf32>
    %1352 = arith.mulf %1347, %1351 : vector<4x64xf32>
    %1353 = vector.shape_cast %1327 : vector<4x1xi1> to vector<4x1xi1>
    %1354 = vector.broadcast %1353 : vector<4x1xi1> to vector<4x64xi1>
    %1355 = arith.select %1354, %1352, %1270 : vector<4x64xi1>, vector<4x64xf32>
    %1356 = vector.shape_cast %1327 : vector<4x1xi1> to vector<4x1xi1>
    %1357 = vector.broadcast %1356 : vector<4x1xi1> to vector<4x64xi1>
    %1358 = arith.select %1357, %1350, %1273 : vector<4x64xi1>, vector<4x64xf32>
    %1359 = vector.broadcast %1310 : i32 to vector<4x1xi32>
    %1360 = arith.cmpi sge, %1359, %25 : vector<4x1xi32>
    %1361 = vector.broadcast %1310 : i32 to vector<4x1xi32>
    %1362 = arith.cmpi slt, %1361, %26 : vector<4x1xi32>
    %1363 = arith.andi %1360, %1362 : vector<4x1xi1>
    %1364 = vector.extract_strided_slice %1322 {offsets = [0, 0], sizes = [4, 64], strides = [1, 1]} : vector<4x256xf32> to vector<4x64xf32>
    %1365 = arith.negf %1364 : vector<4x64xf32>
    %1366 = math.exp %1365 : vector<4x64xf32>
    %cst_239 = arith.constant 1.000000e+00 : f32
    %1367 = vector.broadcast %cst_239 : f32 to vector<4x64xf32>
    %1368 = arith.addf %1367, %1366 : vector<4x64xf32>
    %1369 = arith.divf %1367, %1368 : vector<4x64xf32>
    %1370 = vector.extract_strided_slice %1322 {offsets = [0, 64], sizes = [4, 64], strides = [1, 1]} : vector<4x256xf32> to vector<4x64xf32>
    %1371 = arith.negf %1370 : vector<4x64xf32>
    %1372 = math.exp %1371 : vector<4x64xf32>
    %cst_240 = arith.constant 1.000000e+00 : f32
    %1373 = vector.broadcast %cst_240 : f32 to vector<4x64xf32>
    %1374 = arith.addf %1373, %1372 : vector<4x64xf32>
    %1375 = arith.divf %1373, %1374 : vector<4x64xf32>
    %1376 = vector.extract_strided_slice %1322 {offsets = [0, 128], sizes = [4, 64], strides = [1, 1]} : vector<4x256xf32> to vector<4x64xf32>
    %1377 = math.tanh %1376 : vector<4x64xf32>
    %1378 = vector.extract_strided_slice %1322 {offsets = [0, 192], sizes = [4, 64], strides = [1, 1]} : vector<4x256xf32> to vector<4x64xf32>
    %1379 = arith.negf %1378 : vector<4x64xf32>
    %1380 = math.exp %1379 : vector<4x64xf32>
    %cst_241 = arith.constant 1.000000e+00 : f32
    %1381 = vector.broadcast %cst_241 : f32 to vector<4x64xf32>
    %1382 = arith.addf %1381, %1380 : vector<4x64xf32>
    %1383 = arith.divf %1381, %1382 : vector<4x64xf32>
    %1384 = arith.mulf %1375, %1309 : vector<4x64xf32>
    %1385 = arith.mulf %1369, %1377 : vector<4x64xf32>
    %1386 = arith.addf %1384, %1385 : vector<4x64xf32>
    %1387 = math.tanh %1386 : vector<4x64xf32>
    %1388 = arith.mulf %1383, %1387 : vector<4x64xf32>
    %1389 = vector.shape_cast %1363 : vector<4x1xi1> to vector<4x1xi1>
    %1390 = vector.broadcast %1389 : vector<4x1xi1> to vector<4x64xi1>
    %1391 = arith.select %1390, %1388, %1306 : vector<4x64xi1>, vector<4x64xf32>
    %1392 = vector.shape_cast %1363 : vector<4x1xi1> to vector<4x1xi1>
    %1393 = vector.broadcast %1392 : vector<4x1xi1> to vector<4x64xi1>
    %1394 = arith.select %1393, %1386, %1309 : vector<4x64xi1>, vector<4x64xf32>
    %c16_i32 = arith.constant 16 : i32
    %c0_242 = arith.constant 0 : index
    %c0_243 = arith.constant 0 : index
    %1395 = vector.load %arg0[%c0_242, %c0_243] : memref<64x128xf32, #tpu.memory_space<vmem>>, vector<2x128xf32>
    %c0_244 = arith.constant 0 : index
    %c0_245 = arith.constant 0 : index
    %1396 = vector.load %arg10[%c0_244, %c0_245] : memref<384x128xf32, #tpu.memory_space<vmem>>, vector<384x128xf32>
    %1397 = arith.truncf %1396 : vector<384x128xf32> to vector<384x128xbf16>
    %1398 = arith.truncf %1395 : vector<2x128xf32> to vector<2x128xbf16>
    %1399 = vector.extract_strided_slice %1397 {offsets = [0, 0], sizes = [128, 128], strides = [1, 1]} : vector<384x128xbf16> to vector<128x128xbf16>
    %cst_246 = arith.constant dense<0.000000e+00> : vector<2x128xf32>
    %1400 = tpu.matmul %1398, %1399, %cst_246 {dimension_numbers = #tpu.dot_dimension_numbers<[1], [0], [0], [1], [0, 0, 1, 1], [], []>} : vector<2x128xbf16>, vector<128x128xbf16>, vector<2x128xf32> -> vector<2x128xf32>
    %1401 = vector.extract_strided_slice %1355 {offsets = [0, 0], sizes = [2, 64], strides = [1, 1]} : vector<4x64xf32> to vector<2x64xf32>
    %1402 = arith.truncf %1401 : vector<2x64xf32> to vector<2x64xbf16>
    %1403 = vector.extract_strided_slice %1397 {offsets = [128, 0], sizes = [64, 128], strides = [1, 1]} : vector<384x128xbf16> to vector<64x128xbf16>
    %cst_247 = arith.constant dense<0.000000e+00> : vector<2x128xf32>
    %1404 = tpu.matmul %1402, %1403, %cst_247 {dimension_numbers = #tpu.dot_dimension_numbers<[1], [0], [0], [1], [0, 0, 1, 1], [], []>} : vector<2x64xbf16>, vector<64x128xbf16>, vector<2x128xf32> -> vector<2x128xf32>
    %1405 = arith.addf %1400, %1404 : vector<2x128xf32>
    %1406 = vector.extract_strided_slice %1391 {offsets = [0, 0], sizes = [2, 64], strides = [1, 1]} : vector<4x64xf32> to vector<2x64xf32>
    %1407 = arith.truncf %1406 : vector<2x64xf32> to vector<2x64xbf16>
    %1408 = vector.extract_strided_slice %1397 {offsets = [192, 0], sizes = [64, 128], strides = [1, 1]} : vector<384x128xbf16> to vector<64x128xbf16>
    %cst_248 = arith.constant dense<0.000000e+00> : vector<2x128xf32>
    %1409 = tpu.matmul %1407, %1408, %cst_248 {dimension_numbers = #tpu.dot_dimension_numbers<[1], [0], [0], [1], [0, 0, 1, 1], [], []>} : vector<2x64xbf16>, vector<64x128xbf16>, vector<2x128xf32> -> vector<2x128xf32>
    %1410 = arith.addf %1405, %1409 : vector<2x128xf32>
    %1411 = vector.extract_strided_slice %1355 {offsets = [2, 0], sizes = [2, 64], strides = [1, 1]} : vector<4x64xf32> to vector<2x64xf32>
    %1412 = arith.truncf %1411 : vector<2x64xf32> to vector<2x64xbf16>
    %1413 = vector.extract_strided_slice %1397 {offsets = [256, 0], sizes = [64, 128], strides = [1, 1]} : vector<384x128xbf16> to vector<64x128xbf16>
    %cst_249 = arith.constant dense<0.000000e+00> : vector<2x128xf32>
    %1414 = tpu.matmul %1412, %1413, %cst_249 {dimension_numbers = #tpu.dot_dimension_numbers<[1], [0], [0], [1], [0, 0, 1, 1], [], []>} : vector<2x64xbf16>, vector<64x128xbf16>, vector<2x128xf32> -> vector<2x128xf32>
    %1415 = arith.addf %1410, %1414 : vector<2x128xf32>
    %1416 = vector.extract_strided_slice %1391 {offsets = [2, 0], sizes = [2, 64], strides = [1, 1]} : vector<4x64xf32> to vector<2x64xf32>
    %1417 = arith.truncf %1416 : vector<2x64xf32> to vector<2x64xbf16>
    %1418 = vector.extract_strided_slice %1397 {offsets = [320, 0], sizes = [64, 128], strides = [1, 1]} : vector<384x128xbf16> to vector<64x128xbf16>
    %cst_250 = arith.constant dense<0.000000e+00> : vector<2x128xf32>
    %1419 = tpu.matmul %1417, %1418, %cst_250 {dimension_numbers = #tpu.dot_dimension_numbers<[1], [0], [0], [1], [0, 0, 1, 1], [], []>} : vector<2x64xbf16>, vector<64x128xbf16>, vector<2x128xf32> -> vector<2x128xf32>
    %1420 = arith.addf %1415, %1419 : vector<2x128xf32>
    %c0_251 = arith.constant 0 : index
    %c0_252 = arith.constant 0 : index
    %1421 = vector.load %arg11[%c0_251, %c0_252] : memref<1x128xf32, #tpu.memory_space<vmem>>, vector<1x128xf32>
    %1422 = vector.broadcast %1421 : vector<1x128xf32> to vector<2x128xf32>
    %1423 = arith.addf %1420, %1422 : vector<2x128xf32>
    %cst_253 = arith.constant 0.000000e+00 : f32
    %1424 = vector.broadcast %cst_253 : f32 to vector<2x128xf32>
    %1425 = arith.maximumf %1423, %1424 : vector<2x128xf32>
    %1426 = arith.truncf %1425 : vector<2x128xf32> to vector<2x128xbf16>
    %c0_254 = arith.constant 0 : index
    %c0_255 = arith.constant 0 : index
    %1427 = vector.load %arg12[%c0_254, %c0_255] : memref<128x1xf32, #tpu.memory_space<vmem>>, vector<128x1xf32>
    %1428 = arith.truncf %1427 : vector<128x1xf32> to vector<128x1xbf16>
    %cst_256 = arith.constant dense<0.000000e+00> : vector<2x1xf32>
    %1429 = tpu.matmul %1426, %1428, %cst_256 {dimension_numbers = #tpu.dot_dimension_numbers<[1], [0], [0], [1], [0, 0, 1, 1], [], []>} : vector<2x128xbf16>, vector<128x1xbf16>, vector<2x1xf32> -> vector<2x1xf32>
    %c0_257 = arith.constant 0 : index
    %c0_258 = arith.constant 0 : index
    %1430 = vector.load %arg13[%c0_257, %c0_258] : memref<1x1xf32, #tpu.memory_space<vmem>>, vector<1x1xf32>
    %1431 = vector.broadcast %1430 : vector<1x1xf32> to vector<2x1xf32>
    %1432 = arith.addf %1429, %1431 : vector<2x1xf32>
    %1433 = arith.negf %1432 : vector<2x1xf32>
    %1434 = math.exp %1433 : vector<2x1xf32>
    %cst_259 = arith.constant 1.000000e+00 : f32
    %1435 = vector.broadcast %cst_259 : f32 to vector<2x1xf32>
    %1436 = arith.addf %1435, %1434 : vector<2x1xf32>
    %1437 = arith.divf %1435, %1436 : vector<2x1xf32>
    %c0_260 = arith.constant 0 : index
    %c0_261 = arith.constant 0 : index
    %1438 = vector.load %arg14[%c0_260, %c0_261] : memref<2x1xf32, #tpu.memory_space<vmem>>, vector<2x1xf32>
    tpu.vector_store %arg14[%c0_260, %c0_261], %1437 {strides = array<i32>} : memref<2x1xf32, #tpu.memory_space<vmem>>, vector<2x1xf32>,
    return
  }
}

</mosaic_0001>

<llo_original>
// kernel: tpu_custom_call.1
$region0: #{tpu_custom_call.1}
  #allocation0 [shape = 'u32[]', space=smem, size = 0x4, offset = 0x4, fixed_abs, tag = 'smem constant byte address 0x4 - core index']
  #allocation1 [shape = 'u32[144,128]{1,0:T(1,128)}', space=vmem, size = 0x12000, scoped, tag = 'internal scratch']
  #allocation2 [shape = 'f32[64,256]{1,0:T(8,128)}', space=vmem, size = 0x10000, scoped, tag = 'scratch operand']
  #allocation3 [shape = 'f32[64,256]{1,0:T(8,128)}', space=vmem, size = 0x10000, scoped, tag = 'scratch operand']
  #allocation4 [shape = 'f32[1,1]{1,0:T(1,128)S(1)}', space=vmem, size = 0x200, scoped, tag = 'scoped memory for tpu_custom_call.1']
  %s0 = inlined_call_operand.hbm [shape: f32[64,128], index: 0, kind: input, shape index: {}]
  %s1 = inlined_call_operand.hbm [shape: f32[64,64], index: 1, kind: input, shape index: {}]
  %s2 = inlined_call_operand.vmem [shape: s32[4,2], index: 2, kind: input, shape index: {}]
  %s3 = inlined_call_operand.vmem [shape: f32[4,4,64], index: 3, kind: input, shape index: {}]
  %s4 = inlined_call_operand.hbm [shape: f32[128,256], index: 4, kind: input, shape index: {}]
  %s5 = inlined_call_operand.vmem [shape: f32[64,256], index: 5, kind: input, shape index: {}]
  %s6 = inlined_call_operand.vmem [shape: f32[1,256], index: 6, kind: input, shape index: {}]
  %s7 = inlined_call_operand.hbm [shape: f32[128,256], index: 7, kind: input, shape index: {}]
  %s8 = inlined_call_operand.hbm [shape: f32[64,256], index: 8, kind: input, shape index: {}]
  %s9 = inlined_call_operand.vmem [shape: f32[1,256], index: 9, kind: input, shape index: {}]
  %s10 = inlined_call_operand.hbm [shape: f32[384,128], index: 10, kind: input, shape index: {}]
  %s11 = inlined_call_operand.vmem [shape: f32[1,128], index: 11, kind: input, shape index: {}]
  %s12 = inlined_call_operand.vmem [shape: f32[128,1], index: 12, kind: input, shape index: {}]
  %s13 = inlined_call_operand.<no memory space> [shape: f32[1,1], index: 13, kind: input, shape index: {}]
  %s14 = inlined_call_operand.vmem [shape: f32[2,1], index: 14, kind: output, shape index: {}]
  %s15 = sld [smem:[#allocation0]]
  $region90: #{tpu_custom_call.1} parent=0
    _
  %s17 = ssub.s32 1, %s15
  %s18 = scalar_select 0, %s17, %s15
  %v19 = vstv %s13
  %20 = vst [vmem:[#allocation4] sm:$0x1] %v19
  $region1: #{tpu_custom_call.1} parent=0
    #allocation5 [shape = 'u8[32768]{0}', space=vmem, size = 0x8000, scoped, tag = 'input window, operand 0, single buffered']
    #allocation6 [shape = 's32[1]{0}', space=sflag, size = 0x4, scoped, tag = 'scoped memory for tpu_custom_call.1']
    #allocation7 [shape = 'u8[32768]{0}', space=vmem, size = 0x8000, scoped, tag = 'input window, operand 1, single buffered']
    #allocation8 [shape = 's32[1]{0}', space=sflag, size = 0x4, scoped, tag = 'scoped memory for tpu_custom_call.1']
    #allocation9 [shape = 'u8[131072]{0}', space=vmem, size = 0x20000, scoped, tag = 'input window, operand 4, single buffered']
    #allocation10 [shape = 'u8[131072]{0}', space=vmem, size = 0x20000, scoped, tag = 'input window, operand 7, single buffered']
    #allocation11 [shape = 's32[1]{0}', space=sflag, size = 0x4, scoped, tag = 'scoped memory for tpu_custom_call.1']
    #allocation12 [shape = 'u8[65536]{0}', space=vmem, size = 0x10000, scoped, tag = 'input window, operand 8, single buffered']
    #allocation13 [shape = 'u8[196608]{0}', space=vmem, size = 0x30000, scoped, tag = 'input window, operand 10, single buffered']
    #allocation14 [shape = 's32[1]{0}', space=sflag, size = 0x4, scoped, tag = 'scoped memory for tpu_custom_call.1']
    %21 = vsyncpa [#allocation6], 0
    %22 = vsyncpa [#allocation8], 0
    %23 = vsyncpa [#allocation11], 0
    %24 = vsyncpa [#allocation14], 0
    // Predicated region
    $region2: #{tpu_custom_call.1} parent=1 // pred_check
      _
    $region3: #{tpu_custom_call.1} parent=1 // pred_check_branch
      %26 = sbr.rel (0) target = $region5
    $region4: #{tpu_custom_call.1} parent=1 // pred_region
      %s28 = ssub.s32 1024, 1024
      %29 = vsyncadd [#allocation6], %s28
      %s30 = sshll.u32 [#allocation5], 4
      %s31 = int_to_ptr.vmem [resolvable:$true] %s30
      %36 = dma.hbm_to_vmem [thread:$0]  %s0, 1024, %s31, [#allocation6], 128, 128, 8
    $region5: #{tpu_custom_call.1} parent=1 // pred_fallthru
      _
    // Predicated region
    $region6: #{tpu_custom_call.1} parent=1 // pred_check
      _
    $region7: #{tpu_custom_call.1} parent=1 // pred_check_branch
      %38 = sbr.rel (0) target = $region9
    $region8: #{tpu_custom_call.1} parent=1 // pred_region
      %s40 = ssub.s32 1024, 1024
      %41 = vsyncadd [#allocation8], %s40
      %s42 = sshll.u32 [#allocation7], 4
      %s43 = int_to_ptr.vmem [resolvable:$true] %s42
      %48 = dma.hbm_to_vmem [thread:$0]  %s1, 1024, %s43, [#allocation8], 128, 128, 8
    $region9: #{tpu_custom_call.1} parent=1 // pred_fallthru
      _
    // Predicated region
    $region10: #{tpu_custom_call.1} parent=1 // pred_check
      _
    $region11: #{tpu_custom_call.1} parent=1 // pred_check_branch
      %50 = sbr.rel (0) target = $region13
    $region12: #{tpu_custom_call.1} parent=1 // pred_region
      _
    $region13: #{tpu_custom_call.1} parent=1 // pred_fallthru
      _
    // Predicated region
    $region14: #{tpu_custom_call.1} parent=1 // pred_check
      _
    $region15: #{tpu_custom_call.1} parent=1 // pred_check_branch
      %52 = sbr.rel (0) target = $region17
    $region16: #{tpu_custom_call.1} parent=1 // pred_region
      _
    $region17: #{tpu_custom_call.1} parent=1 // pred_fallthru
      _
    // Predicated region
    $region18: #{tpu_custom_call.1} parent=1 // pred_check
      _
    $region19: #{tpu_custom_call.1} parent=1 // pred_check_branch
      %54 = sbr.rel (0) target = $region21
    $region20: #{tpu_custom_call.1} parent=1 // pred_region
      %s56 = ssub.s32 4096, 4096
      %57 = vsyncadd [#allocation8], %s56
      %s58 = sshll.u32 [#allocation9], 4
      %s59 = int_to_ptr.vmem [resolvable:$true] %s58
      %64 = dma.hbm_to_vmem [thread:$0]  %s4, 4096, %s59, [#allocation8], 256, 256, 16
    $region21: #{tpu_custom_call.1} parent=1 // pred_fallthru
      _
    // Predicated region
    $region22: #{tpu_custom_call.1} parent=1 // pred_check
      _
    $region23: #{tpu_custom_call.1} parent=1 // pred_check_branch
      %66 = sbr.rel (0) target = $region25
    $region24: #{tpu_custom_call.1} parent=1 // pred_region
      _
    $region25: #{tpu_custom_call.1} parent=1 // pred_fallthru
      _
    // Predicated region
    $region26: #{tpu_custom_call.1} parent=1 // pred_check
      _
    $region27: #{tpu_custom_call.1} parent=1 // pred_check_branch
      %68 = sbr.rel (0) target = $region29
    $region28: #{tpu_custom_call.1} parent=1 // pred_region
      _
    $region29: #{tpu_custom_call.1} parent=1 // pred_fallthru
      _
    // Predicated region
    $region30: #{tpu_custom_call.1} parent=1 // pred_check
      _
    $region31: #{tpu_custom_call.1} parent=1 // pred_check_branch
      %70 = sbr.rel (0) target = $region33
    $region32: #{tpu_custom_call.1} parent=1 // pred_region
      %s72 = ssub.s32 4096, 4096
      %73 = vsyncadd [#allocation11], %s72
      %s74 = sshll.u32 [#allocation10], 4
      %s75 = int_to_ptr.vmem [resolvable:$true] %s74
      %80 = dma.hbm_to_vmem [thread:$0]  %s7, 4096, %s75, [#allocation11], 256, 256, 16
    $region33: #{tpu_custom_call.1} parent=1 // pred_fallthru
      _
    // Predicated region
    $region34: #{tpu_custom_call.1} parent=1 // pred_check
      _
    $region35: #{tpu_custom_call.1} parent=1 // pred_check_branch
      %82 = sbr.rel (0) target = $region37
    $region36: #{tpu_custom_call.1} parent=1 // pred_region
      %s84 = ssub.s32 2048, 2048
      %85 = vsyncadd [#allocation11], %s84
      %s86 = sshll.u32 [#allocation12], 4
      %s87 = int_to_ptr.vmem [resolvable:$true] %s86
      %92 = dma.hbm_to_vmem [thread:$0]  %s8, 2048, %s87, [#allocation11], 256, 256, 16
    $region37: #{tpu_custom_call.1} parent=1 // pred_fallthru
      _
    // Predicated region
    $region38: #{tpu_custom_call.1} parent=1 // pred_check
      _
    $region39: #{tpu_custom_call.1} parent=1 // pred_check_branch
      %94 = sbr.rel (0) target = $region41
    $region40: #{tpu_custom_call.1} parent=1 // pred_region
      _
    $region41: #{tpu_custom_call.1} parent=1 // pred_fallthru
      _
    // Predicated region
    $region42: #{tpu_custom_call.1} parent=1 // pred_check
      _
    $region43: #{tpu_custom_call.1} parent=1 // pred_check_branch
      %96 = sbr.rel (0) target = $region45
    $region44: #{tpu_custom_call.1} parent=1 // pred_region
      %s98 = ssub.s32 6144, 6144
      %99 = vsyncadd [#allocation14], %s98
      %s100 = sshll.u32 [#allocation13], 4
      %s101 = int_to_ptr.vmem [resolvable:$true] %s100
      %106 = dma.hbm_to_vmem [thread:$0]  %s10, 6144, %s101, [#allocation14], 128, 128, 8
    $region45: #{tpu_custom_call.1} parent=1 // pred_fallthru
      _
    // Predicated region
    $region46: #{tpu_custom_call.1} parent=1 // pred_check
      _
    $region47: #{tpu_custom_call.1} parent=1 // pred_check_branch
      %108 = sbr.rel (0) target = $region49
    $region48: #{tpu_custom_call.1} parent=1 // pred_region
      _
    $region49: #{tpu_custom_call.1} parent=1 // pred_fallthru
      _
    // Predicated region
    $region50: #{tpu_custom_call.1} parent=1 // pred_check
      _
    $region51: #{tpu_custom_call.1} parent=1 // pred_check_branch
      %110 = sbr.rel (0) target = $region53
    $region52: #{tpu_custom_call.1} parent=1 // pred_region
      _
    $region53: #{tpu_custom_call.1} parent=1 // pred_fallthru
      _
    // Predicated region
    $region54: #{tpu_custom_call.1} parent=1 // pred_check
      _
    $region55: #{tpu_custom_call.1} parent=1 // pred_check_branch
      %112 = sbr.rel (0) target = $region57
    $region56: #{tpu_custom_call.1} parent=1 // pred_region
      _
    $region57: #{tpu_custom_call.1} parent=1 // pred_fallthru
      _
    // Predicated region
    $region58: #{tpu_custom_call.1} parent=1 // pred_check
      _
    $region59: #{tpu_custom_call.1} parent=1 // pred_check_branch
      %114 = sbr.rel (0) target = $region61
    $region60: #{tpu_custom_call.1} parent=1 // pred_region
      %115 = dma.done [#allocation6], 1024
    $region61: #{tpu_custom_call.1} parent=1 // pred_fallthru
      _
    // Predicated region
    $region62: #{tpu_custom_call.1} parent=1 // pred_check
      _
    $region63: #{tpu_custom_call.1} parent=1 // pred_check_branch
      %117 = sbr.rel (0) target = $region65
    $region64: #{tpu_custom_call.1} parent=1 // pred_region
      %118 = dma.done [#allocation8], 1024
    $region65: #{tpu_custom_call.1} parent=1 // pred_fallthru
      _
    // Predicated region
    $region66: #{tpu_custom_call.1} parent=1 // pred_check
      _
    $region67: #{tpu_custom_call.1} parent=1 // pred_check_branch
      %120 = sbr.rel (0) target = $region69
    $region68: #{tpu_custom_call.1} parent=1 // pred_region
      %121 = dma.done [#allocation8], 4096
    $region69: #{tpu_custom_call.1} parent=1 // pred_fallthru
      _
    // Predicated region
    $region70: #{tpu_custom_call.1} parent=1 // pred_check
      _
    $region71: #{tpu_custom_call.1} parent=1 // pred_check_branch
      %123 = sbr.rel (0) target = $region73
    $region72: #{tpu_custom_call.1} parent=1 // pred_region
      %124 = dma.done [#allocation11], 4096
    $region73: #{tpu_custom_call.1} parent=1 // pred_fallthru
      _
    // Predicated region
    $region74: #{tpu_custom_call.1} parent=1 // pred_check
      _
    $region75: #{tpu_custom_call.1} parent=1 // pred_check_branch
      %126 = sbr.rel (0) target = $region77
    $region76: #{tpu_custom_call.1} parent=1 // pred_region
      %127 = dma.done [#allocation11], 2048
    $region77: #{tpu_custom_call.1} parent=1 // pred_fallthru
      _
    // Predicated region
    $region78: #{tpu_custom_call.1} parent=1 // pred_check
      _
    $region79: #{tpu_custom_call.1} parent=1 // pred_check_branch
      %129 = sbr.rel (0) target = $region81
    $region80: #{tpu_custom_call.1} parent=1 // pred_region
      %130 = dma.done [#allocation14], 6144
    $region81: #{tpu_custom_call.1} parent=1 // pred_fallthru
      _
    %v132 = vld [vmem:[#allocation5] sm:$0xff]
    %v133 = vld [vmem:[#allocation5 + $0x8] sm:$0xff]
    %v134 = vld [vmem:[#allocation5 + $0x10] sm:$0xff]
    %v135 = vld [vmem:[#allocation5 + $0x18] sm:$0xff]
    %v136 = vld [vmem:[#allocation5 + $0x20] sm:$0xff]
    %v137 = vld [vmem:[#allocation5 + $0x28] sm:$0xff]
    %v138 = vld [vmem:[#allocation5 + $0x30] sm:$0xff]
    %v139 = vld [vmem:[#allocation5 + $0x38] sm:$0xff]
    %v140 = vld [vmem:[#allocation7] sm:$0xff]
    %v141 = vld [vmem:[#allocation7 + $0x8] sm:$0xff]
    %v142 = vld [vmem:[#allocation7 + $0x10] sm:$0xff]
    %v143 = vld [vmem:[#allocation7 + $0x18] sm:$0xff]
    %v144 = vld [vmem:[#allocation7 + $0x20] sm:$0xff]
    %v145 = vld [vmem:[#allocation7 + $0x28] sm:$0xff]
    %v146 = vld [vmem:[#allocation7 + $0x30] sm:$0xff]
    %v147 = vld [vmem:[#allocation7 + $0x38] sm:$0xff]
    %v148 = vpack.c.bf16 %v141, %v140
    %v149 = vpack.c.bf16 %v143, %v142
    %v150 = vpack.c.bf16 %v145, %v144
    %v151 = vpack.c.bf16 %v147, %v146
    %v152 = vpack.c.bf16 %v133, %v132
    %v153 = vpack.c.bf16 %v135, %v134
    %v154 = vpack.c.bf16 %v137, %v136
    %v155 = vpack.c.bf16 %v139, %v138
    %vm156 = vcmask 523264
    %v158 = vsel %vm156, %v148, 0
    %v161 = vsel %vm156, %v149, 0
    %v164 = vsel %vm156, %v150, 0
    %v167 = vsel %vm156, %v151, 0
    %169 = vmatprep.subr.bf16.mxu0 0
    %170 = vmatpush1.bf16.msra.mxu0 %v152
    %171 = vmatprep.subr.bf16.mxu0 0
    %172 = vmatpush1.bf16.msra.mxu0 %v153
    %173 = vmatprep.subr.bf16.mxu0 0
    %174 = vmatpush1.bf16.msra.mxu0 %v154
    %175 = vmatprep.subr.bf16.mxu0 0
    %176 = vmatpush1.bf16.msra.mxu0 %v155
    %177 = vmatprep.subr.bf16.mxu0 0
    %178 = vmatpush1.bf16.msra.mxu0 0
    %179 = vmatprep.subr.bf16.mxu0 0
    %180 = vmatpush1.bf16.msra.mxu0 0
    %181 = vmatprep.subr.bf16.mxu0 0
    %182 = vmatpush1.bf16.msra.mxu0 0
    %183 = vmatprep.subr.bf16.mxu0 0
    %184 = vmatpush1.bf16.msra.mxu0 0
    %185 = vmatprep.subr.bf16.mxu0 0
    %186 = vmatpush1.bf16.msra.mxu0 0
    %187 = vmatprep.subr.bf16.mxu0 0
    %188 = vmatpush1.bf16.msra.mxu0 0
    %189 = vmatprep.subr.bf16.mxu0 0
    %190 = vmatpush1.bf16.msra.mxu0 0
    %191 = vmatprep.subr.bf16.mxu0 0
    %192 = vmatpush1.bf16.msra.mxu0 0
    %193 = vmatprep.subr.bf16.mxu0 0
    %194 = vmatpush1.bf16.msra.mxu0 0
    %195 = vmatprep.subr.bf16.mxu0 0
    %196 = vmatpush1.bf16.msra.mxu0 0
    %197 = vmatprep.subr.bf16.mxu0 0
    %198 = vmatpush1.bf16.msra.mxu0 0
    %199 = vmatprep.subr.bf16.mxu0 0
    %200 = vmatpush1.bf16.msra.mxu0 0
    %201 = vmatprep.mubr.bf16.mxu0 0
    %202 = vmatmul.mubr.bf16.gmra.mrb[0].mxu0 %v158
    %v203 = vpop.f32.mrb[0].mxu0
    %v204 = vadd.f32 0.0, %v203
    %v205 = vpop.f32.mrb[0].mxu0
    %v206 = vpop.f32.mrb[0].mxu0
    %v207 = vadd.f32 0.0, %v206
    %v208 = vpop.f32.mrb[0].mxu0
    %209 = vmatprep.mubr.bf16.mxu0 0
    %210 = vmatmul.mubr.bf16.gmra.mrb[0].mxu0 %v161
    %v211 = vpop.f32.mrb[0].mxu0
    %v212 = vadd.f32 0.0, %v211
    %v213 = vpop.f32.mrb[0].mxu0
    %v214 = vpop.f32.mrb[0].mxu0
    %v215 = vadd.f32 0.0, %v214
    %v216 = vpop.f32.mrb[0].mxu0
    %217 = vmatprep.mubr.bf16.mxu0 0
    %218 = vmatmul.mubr.bf16.gmra.mrb[0].mxu0 %v164
    %v219 = vpop.f32.mrb[0].mxu0
    %v220 = vadd.f32 0.0, %v219
    %v221 = vpop.f32.mrb[0].mxu0
    %v222 = vpop.f32.mrb[0].mxu0
    %v223 = vadd.f32 0.0, %v222
    %v224 = vpop.f32.mrb[0].mxu0
    %225 = vmatprep.mubr.bf16.mxu0 0
    %226 = vmatmul.mubr.bf16.gmra.mrb[0].mxu0 %v167
    %v227 = vpop.f32.mrb[0].mxu0
    %v228 = vadd.f32 0.0, %v227
    %v229 = vpop.f32.mrb[0].mxu0
    %v230 = vpop.f32.mrb[0].mxu0
    %v231 = vadd.f32 0.0, %v230
    %v232 = vpop.f32.mrb[0].mxu0
    %233 = vdwg.mxu0
    %v234 = vmul.f32 %v132, %v204
    %v235 = vmul.f32 %v133, %v207
    %v236 = vmul.f32 %v134, %v212
    %v237 = vmul.f32 %v135, %v215
    %v238 = vmul.f32 %v136, %v220
    %v239 = vmul.f32 %v137, %v223
    %v240 = vmul.f32 %v138, %v228
    %v241 = vmul.f32 %v139, %v231
    %v242 = vpack.c.bf16 %v235, %v234
    %v243 = vpack.c.bf16 %v237, %v236
    %v244 = vpack.c.bf16 %v239, %v238
    %v245 = vpack.c.bf16 %v241, %v240
    %v246 = vld [vmem:[#allocation9] sm:$0xff]
    %v247 = vld [vmem:[#allocation9 + $0x8] sm:$0xff]
    %v248 = vld [vmem:[#allocation9 + $0x10] sm:$0xff]
    %v249 = vld [vmem:[#allocation9 + $0x18] sm:$0xff]
    %v250 = vld [vmem:[#allocation9 + $0x20] sm:$0xff]
    %v251 = vld [vmem:[#allocation9 + $0x28] sm:$0xff]
    %v252 = vld [vmem:[#allocation9 + $0x30] sm:$0xff]
    %v253 = vld [vmem:[#allocation9 + $0x38] sm:$0xff]
    %v254 = vld [vmem:[#allocation9 + $0x40] sm:$0xff]
    %v255 = vld [vmem:[#allocation9 + $0x48] sm:$0xff]
    %v256 = vld [vmem:[#allocation9 + $0x50] sm:$0xff]
    %v257 = vld [vmem:[#allocation9 + $0x58] sm:$0xff]
    %v258 = vld [vmem:[#allocation9 + $0x60] sm:$0xff]
    %v259 = vld [vmem:[#allocation9 + $0x68] sm:$0xff]
    %v260 = vld [vmem:[#allocation9 + $0x70] sm:$0xff]
    %v261 = vld [vmem:[#allocation9 + $0x78] sm:$0xff]
    %v262 = vld [vmem:[#allocation9 + $0x80] sm:$0xff]
    %v263 = vld [vmem:[#allocation9 + $0x88] sm:$0xff]
    %v264 = vld [vmem:[#allocation9 + $0x90] sm:$0xff]
    %v265 = vld [vmem:[#allocation9 + $0x98] sm:$0xff]
    %v266 = vld [vmem:[#allocation9 + $0xa0] sm:$0xff]
    %v267 = vld [vmem:[#allocation9 + $0xa8] sm:$0xff]
    %v268 = vld [vmem:[#allocation9 + $0xb0] sm:$0xff]
    %v269 = vld [vmem:[#allocation9 + $0xb8] sm:$0xff]
    %v270 = vld [vmem:[#allocation9 + $0xc0] sm:$0xff]
    %v271 = vld [vmem:[#allocation9 + $0xc8] sm:$0xff]
    %v272 = vld [vmem:[#allocation9 + $0xd0] sm:$0xff]
    %v273 = vld [vmem:[#allocation9 + $0xd8] sm:$0xff]
    %v274 = vld [vmem:[#allocation9 + $0xe0] sm:$0xff]
    %v275 = vld [vmem:[#allocation9 + $0xe8] sm:$0xff]
    %v276 = vld [vmem:[#allocation9 + $0xf0] sm:$0xff]
    %v277 = vld [vmem:[#allocation9 + $0xf8] sm:$0xff]
    %v278 = vpack.c.bf16 %v248, %v246
    %v279 = vpack.c.bf16 %v249, %v247
    %v280 = vpack.c.bf16 %v252, %v250
    %v281 = vpack.c.bf16 %v253, %v251
    %v282 = vpack.c.bf16 %v256, %v254
    %v283 = vpack.c.bf16 %v257, %v255
    %v284 = vpack.c.bf16 %v260, %v258
    %v285 = vpack.c.bf16 %v261, %v259
    %v286 = vpack.c.bf16 %v264, %v262
    %v287 = vpack.c.bf16 %v265, %v263
    %v288 = vpack.c.bf16 %v268, %v266
    %v289 = vpack.c.bf16 %v269, %v267
    %v290 = vpack.c.bf16 %v272, %v270
    %v291 = vpack.c.bf16 %v273, %v271
    %v292 = vpack.c.bf16 %v276, %v274
    %v293 = vpack.c.bf16 %v277, %v275
    %v294 = vld [vmem:[%s6] sm:$0x3]
    %v296 = vlaneseq
    %v297 = vshrl.u32 %v296, 7
    %v298 = vsub.s32 0, %v297
    %v299 = vrot.slane %v294, %v298
    %v300 = vlaneseq
    %v301 = vshrl.u32 %v300, 7
    %v302 = vsub.s32 1, %v301
    %v303 = vrot.slane %v294, %v302
    %306 = vmatprep.subr.bf16.mxu0 %v279
    %307 = vmatpush1.bf16.msra.mxu0 %v278
    %308 = vmatprep.subr.bf16.mxu0 %v281
    %309 = vmatpush1.bf16.msra.mxu0 %v280
    %310 = vmatprep.subr.bf16.mxu0 %v283
    %311 = vmatpush1.bf16.msra.mxu0 %v282
    %312 = vmatprep.subr.bf16.mxu0 %v285
    %313 = vmatpush1.bf16.msra.mxu0 %v284
    %314 = vmatprep.subr.bf16.mxu0 %v287
    %315 = vmatpush1.bf16.msra.mxu0 %v286
    %316 = vmatprep.subr.bf16.mxu0 %v289
    %317 = vmatpush1.bf16.msra.mxu0 %v288
    %318 = vmatprep.subr.bf16.mxu0 %v291
    %319 = vmatpush1.bf16.msra.mxu0 %v290
    %320 = vmatprep.subr.bf16.mxu0 %v293
    %321 = vmatpush1.bf16.msra.mxu0 %v292
    %322 = vmatprep.subr.bf16.mxu0 0
    %323 = vmatpush1.bf16.msra.mxu0 0
    %324 = vmatprep.subr.bf16.mxu0 0
    %325 = vmatpush1.bf16.msra.mxu0 0
    %326 = vmatprep.subr.bf16.mxu0 0
    %327 = vmatpush1.bf16.msra.mxu0 0
    %328 = vmatprep.subr.bf16.mxu0 0
    %329 = vmatpush1.bf16.msra.mxu0 0
    %330 = vmatprep.subr.bf16.mxu0 0
    %331 = vmatpush1.bf16.msra.mxu0 0
    %332 = vmatprep.subr.bf16.mxu0 0
    %333 = vmatpush1.bf16.msra.mxu0 0
    %334 = vmatprep.subr.bf16.mxu0 0
    %335 = vmatpush1.bf16.msra.mxu0 0
    %336 = vmatprep.subr.bf16.mxu0 0
    %337 = vmatpush1.bf16.msra.mxu0 0
    %338 = vmatprep.mubr.bf16.mxu0 0
    %339 = vmatmul.mubr.bf16.gmra.mrb[0].mxu0 %v242
    %v340 = vpop.f32.mrb[0].mxu0
    %v341 = vadd.f32 %v299, %v340
    %v342 = vpop.f32.mrb[0].mxu0
    %v343 = vadd.f32 %v303, %v342
    %v344 = vpop.f32.mrb[0].mxu0
    %v345 = vadd.f32 %v299, %v344
    %v346 = vpop.f32.mrb[0].mxu0
    %v347 = vadd.f32 %v303, %v346
    %348 = vmatprep.mubr.bf16.mxu0 0
    %349 = vmatmul.mubr.bf16.gmra.mrb[0].mxu0 %v243
    %v350 = vpop.f32.mrb[0].mxu0
    %v351 = vadd.f32 %v299, %v350
    %v352 = vpop.f32.mrb[0].mxu0
    %v353 = vadd.f32 %v303, %v352
    %v354 = vpop.f32.mrb[0].mxu0
    %v355 = vadd.f32 %v299, %v354
    %v356 = vpop.f32.mrb[0].mxu0
    %v357 = vadd.f32 %v303, %v356
    %358 = vmatprep.mubr.bf16.mxu0 0
    %359 = vmatmul.mubr.bf16.gmra.mrb[0].mxu0 %v244
    %v360 = vpop.f32.mrb[0].mxu0
    %v361 = vadd.f32 %v299, %v360
    %v362 = vpop.f32.mrb[0].mxu0
    %v363 = vadd.f32 %v303, %v362
    %v364 = vpop.f32.mrb[0].mxu0
    %v365 = vadd.f32 %v299, %v364
    %v366 = vpop.f32.mrb[0].mxu0
    %v367 = vadd.f32 %v303, %v366
    %368 = vmatprep.mubr.bf16.mxu0 0
    %369 = vmatmul.mubr.bf16.gmra.mrb[0].mxu0 %v245
    %v370 = vpop.f32.mrb[0].mxu0
    %v371 = vadd.f32 %v299, %v370
    %v372 = vpop.f32.mrb[0].mxu0
    %v373 = vadd.f32 %v303, %v372
    %v374 = vpop.f32.mrb[0].mxu0
    %v375 = vadd.f32 %v299, %v374
    %v376 = vpop.f32.mrb[0].mxu0
    %v377 = vadd.f32 %v303, %v376
    %378 = vdwg.mxu0
    %379 = vst [vmem:[#allocation2] sm:$0xff] %v341
    %380 = vst [vmem:[#allocation2 + $0x8] sm:$0xff] %v343
    %381 = vst [vmem:[#allocation2 + $0x10] sm:$0xff] %v345
    %382 = vst [vmem:[#allocation2 + $0x18] sm:$0xff] %v347
    %383 = vst [vmem:[#allocation2 + $0x20] sm:$0xff] %v351
    %384 = vst [vmem:[#allocation2 + $0x28] sm:$0xff] %v353
    %385 = vst [vmem:[#allocation2 + $0x30] sm:$0xff] %v355
    %386 = vst [vmem:[#allocation2 + $0x38] sm:$0xff] %v357
    %387 = vst [vmem:[#allocation2 + $0x40] sm:$0xff] %v361
    %388 = vst [vmem:[#allocation2 + $0x48] sm:$0xff] %v363
    %389 = vst [vmem:[#allocation2 + $0x50] sm:$0xff] %v365
    %390 = vst [vmem:[#allocation2 + $0x58] sm:$0xff] %v367
    %391 = vst [vmem:[#allocation2 + $0x60] sm:$0xff] %v371
    %392 = vst [vmem:[#allocation2 + $0x68] sm:$0xff] %v373
    %393 = vst [vmem:[#allocation2 + $0x70] sm:$0xff] %v375
    %394 = vst [vmem:[#allocation2 + $0x78] sm:$0xff] %v377
    %v395 = vld [vmem:[#allocation10] sm:$0xff]
    %v396 = vld [vmem:[#allocation10 + $0x8] sm:$0xff]
    %v397 = vld [vmem:[#allocation10 + $0x10] sm:$0xff]
    %v398 = vld [vmem:[#allocation10 + $0x18] sm:$0xff]
    %v399 = vld [vmem:[#allocation10 + $0x20] sm:$0xff]
    %v400 = vld [vmem:[#allocation10 + $0x28] sm:$0xff]
    %v401 = vld [vmem:[#allocation10 + $0x30] sm:$0xff]
    %v402 = vld [vmem:[#allocation10 + $0x38] sm:$0xff]
    %v403 = vld [vmem:[#allocation10 + $0x40] sm:$0xff]
    %v404 = vld [vmem:[#allocation10 + $0x48] sm:$0xff]
    %v405 = vld [vmem:[#allocation10 + $0x50] sm:$0xff]
    %v406 = vld [vmem:[#allocation10 + $0x58] sm:$0xff]
    %v407 = vld [vmem:[#allocation10 + $0x60] sm:$0xff]
    %v408 = vld [vmem:[#allocation10 + $0x68] sm:$0xff]
    %v409 = vld [vmem:[#allocation10 + $0x70] sm:$0xff]
    %v410 = vld [vmem:[#allocation10 + $0x78] sm:$0xff]
    %v411 = vld [vmem:[#allocation10 + $0x80] sm:$0xff]
    %v412 = vld [vmem:[#allocation10 + $0x88] sm:$0xff]
    %v413 = vld [vmem:[#allocation10 + $0x90] sm:$0xff]
    %v414 = vld [vmem:[#allocation10 + $0x98] sm:$0xff]
    %v415 = vld [vmem:[#allocation10 + $0xa0] sm:$0xff]
    %v416 = vld [vmem:[#allocation10 + $0xa8] sm:$0xff]
    %v417 = vld [vmem:[#allocation10 + $0xb0] sm:$0xff]
    %v418 = vld [vmem:[#allocation10 + $0xb8] sm:$0xff]
    %v419 = vld [vmem:[#allocation10 + $0xc0] sm:$0xff]
    %v420 = vld [vmem:[#allocation10 + $0xc8] sm:$0xff]
    %v421 = vld [vmem:[#allocation10 + $0xd0] sm:$0xff]
    %v422 = vld [vmem:[#allocation10 + $0xd8] sm:$0xff]
    %v423 = vld [vmem:[#allocation10 + $0xe0] sm:$0xff]
    %v424 = vld [vmem:[#allocation10 + $0xe8] sm:$0xff]
    %v425 = vld [vmem:[#allocation10 + $0xf0] sm:$0xff]
    %v426 = vld [vmem:[#allocation10 + $0xf8] sm:$0xff]
    %v427 = vpack.c.bf16 %v397, %v395
    %v428 = vpack.c.bf16 %v398, %v396
    %v429 = vpack.c.bf16 %v401, %v399
    %v430 = vpack.c.bf16 %v402, %v400
    %v431 = vpack.c.bf16 %v405, %v403
    %v432 = vpack.c.bf16 %v406, %v404
    %v433 = vpack.c.bf16 %v409, %v407
    %v434 = vpack.c.bf16 %v410, %v408
    %v435 = vpack.c.bf16 %v413, %v411
    %v436 = vpack.c.bf16 %v414, %v412
    %v437 = vpack.c.bf16 %v417, %v415
    %v438 = vpack.c.bf16 %v418, %v416
    %v439 = vpack.c.bf16 %v421, %v419
    %v440 = vpack.c.bf16 %v422, %v420
    %v441 = vpack.c.bf16 %v425, %v423
    %v442 = vpack.c.bf16 %v426, %v424
    %v443 = vld [vmem:[%s9] sm:$0x3]
    %v445 = vlaneseq
    %v446 = vshrl.u32 %v445, 7
    %v447 = vsub.s32 0, %v446
    %v448 = vrot.slane %v443, %v447
    %v449 = vlaneseq
    %v450 = vshrl.u32 %v449, 7
    %v451 = vsub.s32 1, %v450
    %v452 = vrot.slane %v443, %v451
    %455 = vmatprep.subr.bf16.mxu0 %v428
    %456 = vmatpush1.bf16.msra.mxu0 %v427
    %457 = vmatprep.subr.bf16.mxu0 %v430
    %458 = vmatpush1.bf16.msra.mxu0 %v429
    %459 = vmatprep.subr.bf16.mxu0 %v432
    %460 = vmatpush1.bf16.msra.mxu0 %v431
    %461 = vmatprep.subr.bf16.mxu0 %v434
    %462 = vmatpush1.bf16.msra.mxu0 %v433
    %463 = vmatprep.subr.bf16.mxu0 %v436
    %464 = vmatpush1.bf16.msra.mxu0 %v435
    %465 = vmatprep.subr.bf16.mxu0 %v438
    %466 = vmatpush1.bf16.msra.mxu0 %v437
    %467 = vmatprep.subr.bf16.mxu0 %v440
    %468 = vmatpush1.bf16.msra.mxu0 %v439
    %469 = vmatprep.subr.bf16.mxu0 %v442
    %470 = vmatpush1.bf16.msra.mxu0 %v441
    %471 = vmatprep.subr.bf16.mxu0 0
    %472 = vmatpush1.bf16.msra.mxu0 0
    %473 = vmatprep.subr.bf16.mxu0 0
    %474 = vmatpush1.bf16.msra.mxu0 0
    %475 = vmatprep.subr.bf16.mxu0 0
    %476 = vmatpush1.bf16.msra.mxu0 0
    %477 = vmatprep.subr.bf16.mxu0 0
    %478 = vmatpush1.bf16.msra.mxu0 0
    %479 = vmatprep.subr.bf16.mxu0 0
    %480 = vmatpush1.bf16.msra.mxu0 0
    %481 = vmatprep.subr.bf16.mxu0 0
    %482 = vmatpush1.bf16.msra.mxu0 0
    %483 = vmatprep.subr.bf16.mxu0 0
    %484 = vmatpush1.bf16.msra.mxu0 0
    %485 = vmatprep.subr.bf16.mxu0 0
    %486 = vmatpush1.bf16.msra.mxu0 0
    %487 = vmatprep.mubr.bf16.mxu0 0
    %488 = vmatmul.mubr.bf16.gmra.mrb[0].mxu0 %v242
    %v489 = vpop.f32.mrb[0].mxu0
    %v490 = vadd.f32 %v448, %v489
    %v491 = vpop.f32.mrb[0].mxu0
    %v492 = vadd.f32 %v452, %v491
    %v493 = vpop.f32.mrb[0].mxu0
    %v494 = vadd.f32 %v448, %v493
    %v495 = vpop.f32.mrb[0].mxu0
    %v496 = vadd.f32 %v452, %v495
    %497 = vmatprep.mubr.bf16.mxu0 0
    %498 = vmatmul.mubr.bf16.gmra.mrb[0].mxu0 %v243
    %v499 = vpop.f32.mrb[0].mxu0
    %v500 = vadd.f32 %v448, %v499
    %v501 = vpop.f32.mrb[0].mxu0
    %v502 = vadd.f32 %v452, %v501
    %v503 = vpop.f32.mrb[0].mxu0
    %v504 = vadd.f32 %v448, %v503
    %v505 = vpop.f32.mrb[0].mxu0
    %v506 = vadd.f32 %v452, %v505
    %507 = vmatprep.mubr.bf16.mxu0 0
    %508 = vmatmul.mubr.bf16.gmra.mrb[0].mxu0 %v244
    %v509 = vpop.f32.mrb[0].mxu0
    %v510 = vadd.f32 %v448, %v509
    %v511 = vpop.f32.mrb[0].mxu0
    %v512 = vadd.f32 %v452, %v511
    %v513 = vpop.f32.mrb[0].mxu0
    %v514 = vadd.f32 %v448, %v513
    %v515 = vpop.f32.mrb[0].mxu0
    %v516 = vadd.f32 %v452, %v515
    %517 = vmatprep.mubr.bf16.mxu0 0
    %518 = vmatmul.mubr.bf16.gmra.mrb[0].mxu0 %v245
    %v519 = vpop.f32.mrb[0].mxu0
    %v520 = vadd.f32 %v448, %v519
    %v521 = vpop.f32.mrb[0].mxu0
    %v522 = vadd.f32 %v452, %v521
    %v523 = vpop.f32.mrb[0].mxu0
    %v524 = vadd.f32 %v448, %v523
    %v525 = vpop.f32.mrb[0].mxu0
    %v526 = vadd.f32 %v452, %v525
    %527 = vdwg.mxu0
    %528 = vst [vmem:[#allocation3] sm:$0xff] %v490
    %529 = vst [vmem:[#allocation3 + $0x8] sm:$0xff] %v492
    %530 = vst [vmem:[#allocation3 + $0x10] sm:$0xff] %v494
    %531 = vst [vmem:[#allocation3 + $0x18] sm:$0xff] %v496
    %532 = vst [vmem:[#allocation3 + $0x20] sm:$0xff] %v500
    %533 = vst [vmem:[#allocation3 + $0x28] sm:$0xff] %v502
    %534 = vst [vmem:[#allocation3 + $0x30] sm:$0xff] %v504
    %535 = vst [vmem:[#allocation3 + $0x38] sm:$0xff] %v506
    %536 = vst [vmem:[#allocation3 + $0x40] sm:$0xff] %v510
    %537 = vst [vmem:[#allocation3 + $0x48] sm:$0xff] %v512
    %538 = vst [vmem:[#allocation3 + $0x50] sm:$0xff] %v514
    %539 = vst [vmem:[#allocation3 + $0x58] sm:$0xff] %v516
    %540 = vst [vmem:[#allocation3 + $0x60] sm:$0xff] %v520
    %541 = vst [vmem:[#allocation3 + $0x68] sm:$0xff] %v522
    %542 = vst [vmem:[#allocation3 + $0x70] sm:$0xff] %v524
    %543 = vst [vmem:[#allocation3 + $0x78] sm:$0xff] %v526
    %v544 = vld [vmem:[%s5] sm:$0xff]
    %v545 = vld [vmem:[%s5 + $0x8] sm:$0xff]
    %v546 = vld [vmem:[%s5 + $0x10] sm:$0xff]
    %v547 = vld [vmem:[%s5 + $0x18] sm:$0xff]
    %v548 = vld [vmem:[%s5 + $0x20] sm:$0xff]
    %v549 = vld [vmem:[%s5 + $0x28] sm:$0xff]
    %v550 = vld [vmem:[%s5 + $0x30] sm:$0xff]
    %v551 = vld [vmem:[%s5 + $0x38] sm:$0xff]
    %v552 = vld [vmem:[%s5 + $0x40] sm:$0xff]
    %v553 = vld [vmem:[%s5 + $0x48] sm:$0xff]
    %v554 = vld [vmem:[%s5 + $0x50] sm:$0xff]
    %v555 = vld [vmem:[%s5 + $0x58] sm:$0xff]
    %v556 = vld [vmem:[%s5 + $0x60] sm:$0xff]
    %v557 = vld [vmem:[%s5 + $0x68] sm:$0xff]
    %v558 = vld [vmem:[%s5 + $0x70] sm:$0xff]
    %v559 = vld [vmem:[%s5 + $0x78] sm:$0xff]
    %v560 = vpack.c.bf16 %v546, %v544
    %v561 = vpack.c.bf16 %v547, %v545
    %v562 = vpack.c.bf16 %v550, %v548
    %v563 = vpack.c.bf16 %v551, %v549
    %v564 = vpack.c.bf16 %v554, %v552
    %v565 = vpack.c.bf16 %v555, %v553
    %v566 = vpack.c.bf16 %v558, %v556
    %v567 = vpack.c.bf16 %v559, %v557
    %v568 = vld [vmem:[#allocation12] sm:$0xff]
    %v569 = vld [vmem:[#allocation12 + $0x8] sm:$0xff]
    %v570 = vld [vmem:[#allocation12 + $0x10] sm:$0xff]
    %v571 = vld [vmem:[#allocation12 + $0x18] sm:$0xff]
    %v572 = vld [vmem:[#allocation12 + $0x20] sm:$0xff]
    %v573 = vld [vmem:[#allocation12 + $0x28] sm:$0xff]
    %v574 = vld [vmem:[#allocation12 + $0x30] sm:$0xff]
    %v575 = vld [vmem:[#allocation12 + $0x38] sm:$0xff]
    %v576 = vld [vmem:[#allocation12 + $0x40] sm:$0xff]
    %v577 = vld [vmem:[#allocation12 + $0x48] sm:$0xff]
    %v578 = vld [vmem:[#allocation12 + $0x50] sm:$0xff]
    %v579 = vld [vmem:[#allocation12 + $0x58] sm:$0xff]
    %v580 = vld [vmem:[#allocation12 + $0x60] sm:$0xff]
    %v581 = vld [vmem:[#allocation12 + $0x68] sm:$0xff]
    %v582 = vld [vmem:[#allocation12 + $0x70] sm:$0xff]
    %v583 = vld [vmem:[#allocation12 + $0x78] sm:$0xff]
    %v584 = vpack.c.bf16 %v570, %v568
    %v585 = vpack.c.bf16 %v571, %v569
    %v586 = vpack.c.bf16 %v574, %v572
    %v587 = vpack.c.bf16 %v575, %v573
    %v588 = vpack.c.bf16 %v578, %v576
    %v589 = vpack.c.bf16 %v579, %v577
    %v590 = vpack.c.bf16 %v582, %v580
    %v591 = vpack.c.bf16 %v583, %v581
    %v592 = vld [vmem:[%s2] sm:$0xf]
    %v593 = vld [vmem:[%s3] sm:$0xf]
    %s594 = scalar_lea.vmem %s3, 4
    %v595 = vld [vmem:[%s594] sm:$0xf]
    %s596 = scalar_lea.vmem %s3, 8
    %v597 = vld [vmem:[%s596] sm:$0xf]
    %s598 = scalar_lea.vmem %s3, 12
    %v599 = vld [vmem:[%s598] sm:$0xf]
    %v600 = vld [vmem:[#allocation2] sm:$0xf]
    %v601 = vld [vmem:[#allocation2 + $0x8] sm:$0xf]
    %v602 = vpack.c.bf16 %v593, %v593
    %v604 = vsel %vm156, %v602, 0
    %606 = vmatprep.subr.bf16.mxu0 %v561
    %607 = vmatpush1.bf16.msra.mxu0 %v560
    %608 = vmatprep.subr.bf16.mxu0 %v563
    %609 = vmatpush1.bf16.msra.mxu0 %v562
    %610 = vmatprep.subr.bf16.mxu0 %v565
    %611 = vmatpush1.bf16.msra.mxu0 %v564
    %612 = vmatprep.subr.bf16.mxu0 %v567
    %613 = vmatpush1.bf16.msra.mxu0 %v566
    %614 = vmatprep.subr.bf16.mxu0 0
    %615 = vmatpush1.bf16.msra.mxu0 0
    %616 = vmatprep.subr.bf16.mxu0 0
    %617 = vmatpush1.bf16.msra.mxu0 0
    %618 = vmatprep.subr.bf16.mxu0 0
    %619 = vmatpush1.bf16.msra.mxu0 0
    %620 = vmatprep.subr.bf16.mxu0 0
    %621 = vmatpush1.bf16.msra.mxu0 0
    %622 = vmatprep.subr.bf16.mxu0 0
    %623 = vmatpush1.bf16.msra.mxu0 0
    %624 = vmatprep.subr.bf16.mxu0 0
    %625 = vmatpush1.bf16.msra.mxu0 0
    %626 = vmatprep.subr.bf16.mxu0 0
    %627 = vmatpush1.bf16.msra.mxu0 0
    %628 = vmatprep.subr.bf16.mxu0 0
    %629 = vmatpush1.bf16.msra.mxu0 0
    %630 = vmatprep.subr.bf16.mxu0 0
    %631 = vmatpush1.bf16.msra.mxu0 0
    %632 = vmatprep.subr.bf16.mxu0 0
    %633 = vmatpush1.bf16.msra.mxu0 0
    %634 = vmatprep.subr.bf16.mxu0 0
    %635 = vmatpush1.bf16.msra.mxu0 0
    %636 = vmatprep.subr.bf16.mxu0 0
    %637 = vmatpush1.bf16.msra.mxu0 0
    %638 = vmatprep.mubr.bf16.mxu0 0
    %639 = vmatmul.mubr.bf16.gmra.mrb[0].mxu0 %v604
    %v640 = vpop.f32.mrb[0].mxu0
    %v641 = vadd.f32 0.0, %v640
    %v642 = vpop.f32.mrb[0].mxu0
    %v643 = vadd.f32 0.0, %v642
    %v644 = vpop.f32.mrb[0].mxu0
    %v645 = vpop.f32.mrb[0].mxu0
    %646 = vdwg.mxu0
    %v647 = vadd.f32 %v600, %v641
    %v648 = vadd.f32 %v601, %v643
    %v649 = vld [vmem:[#allocation3 + $0x70] sm:$0xf0]
    %v650 = vld [vmem:[#allocation3 + $0x78] sm:$0xf0]
    %v651 = vpack.c.bf16 %v597, %v597
    %v653 = vsel %vm156, %v651, 0
    %655 = vmatprep.subr.bf16.mxu0 %v585
    %656 = vmatpush1.bf16.msra.mxu0 %v584
    %657 = vmatprep.subr.bf16.mxu0 %v587
    %658 = vmatpush1.bf16.msra.mxu0 %v586
    %659 = vmatprep.subr.bf16.mxu0 %v589
    %660 = vmatpush1.bf16.msra.mxu0 %v588
    %661 = vmatprep.subr.bf16.mxu0 %v591
    %662 = vmatpush1.bf16.msra.mxu0 %v590
    %663 = vmatprep.subr.bf16.mxu0 0
    %664 = vmatpush1.bf16.msra.mxu0 0
    %665 = vmatprep.subr.bf16.mxu0 0
    %666 = vmatpush1.bf16.msra.mxu0 0
    %667 = vmatprep.subr.bf16.mxu0 0
    %668 = vmatpush1.bf16.msra.mxu0 0
    %669 = vmatprep.subr.bf16.mxu0 0
    %670 = vmatpush1.bf16.msra.mxu0 0
    %671 = vmatprep.subr.bf16.mxu0 0
    %672 = vmatpush1.bf16.msra.mxu0 0
    %673 = vmatprep.subr.bf16.mxu0 0
    %674 = vmatpush1.bf16.msra.mxu0 0
    %675 = vmatprep.subr.bf16.mxu0 0
    %676 = vmatpush1.bf16.msra.mxu0 0
    %677 = vmatprep.subr.bf16.mxu0 0
    %678 = vmatpush1.bf16.msra.mxu0 0
    %679 = vmatprep.subr.bf16.mxu0 0
    %680 = vmatpush1.bf16.msra.mxu0 0
    %681 = vmatprep.subr.bf16.mxu0 0
    %682 = vmatpush1.bf16.msra.mxu0 0
    %683 = vmatprep.subr.bf16.mxu0 0
    %684 = vmatpush1.bf16.msra.mxu0 0
    %685 = vmatprep.subr.bf16.mxu0 0
    %686 = vmatpush1.bf16.msra.mxu0 0
    %687 = vmatprep.mubr.bf16.mxu0 0
    %688 = vmatmul.mubr.bf16.gmra.mrb[0].mxu0 %v653
    %v689 = vpop.f32.mrb[0].mxu0
    %v690 = vadd.f32 0.0, %v689
    %v691 = vpop.f32.mrb[0].mxu0
    %v692 = vadd.f32 0.0, %v691
    %v693 = vpop.f32.mrb[0].mxu0
    %v694 = vpop.f32.mrb[0].mxu0
    %695 = vdwg.mxu0
    %v698 = vrot.slane %v690, 4
    %v699 = vrot.slane %v692, 4
    %v702 = vadd.f32 %v649, %v698
    %v703 = vadd.f32 %v650, %v699
    %vm704 = vcmp.le.s32.totalorder %v592, 0
    %vm705 = vcmp.gt.s32.totalorder %v592, 0
    %v706 = vsel %vm705, 1, 0
    %707 = vrot.lane.b32.xlu0 %v706, 127
    %v708 = vpop.permute.xlu0 %707
    %vm709 = vcmp.ne.s32.totalorder %v708, 0
    %vm710 = vmand %vm704, %vm709
    %v711 = vxor.u32 %v647, 2147483648
    %v712 = vmul.f32 %v711, 1.442695
    %v713 = vpow.pop %v712
    %v714 = vadd.f32 %v713, 1.0
    %v715 = vrcp.pop %v714
    %v716 = vmul.f32 1.0, %v715
    %v717 = vtanh.pop %v648
    %v718 = vxor.u32 %v648, 2147483648
    %v719 = vmul.f32 %v718, 1.442695
    %v720 = vpow.pop %v719
    %v721 = vadd.f32 %v720, 1.0
    %v722 = vrcp.pop %v721
    %v723 = vmul.f32 1.0, %v722
    %725 = vrot.lane.b32.xlu0 %v595, 64
    %v726 = vpop.permute.xlu0 %725
    %v728 = vmul.f32 %v716, %v726
    %v729 = vmul.f32 %v716, %v717
    %731 = vrot.lane.b32.xlu0 %v729, 64
    %v732 = vpop.permute.xlu0 %731
    %v734 = vadd.f32 %v728, %v732
    %v735 = vtanh.pop %v734
    %v736 = vmul.f32 %v723, %v735
    %v737 = vsel %vm710, 1, 0
    %738 = vset.pattern.permute.xlu0 0
    %739 = vperm.xlu0 %738, %v737
    %v740 = vpop.permute.xlu0 %739
    %vm741 = vcmp.eq.s32.totalorder %v740, 1
    %743 = vrot.lane.b32.xlu0 %v593, 64
    %v744 = vpop.permute.xlu0 %743
    %v746 = vsel %vm741, %v736, %v744
    %v747 = vsel %vm741, %v734, %v726
    %vm748 = vcmp.le.s32.totalorder %v592, 15
    %vm749 = vcmp.gt.s32.totalorder %v592, 15
    %v750 = vsel %vm749, 1, 0
    %751 = vrot.lane.b32.xlu0 %v750, 127
    %v752 = vpop.permute.xlu0 %751
    %vm753 = vcmp.ne.s32.totalorder %v752, 0
    %vm754 = vmand %vm748, %vm753
    %v755 = vxor.u32 %v702, 2147483648
    %v756 = vmul.f32 %v755, 1.442695
    %v757 = vpow.pop %v756
    %v758 = vadd.f32 %v757, 1.0
    %v759 = vrcp.pop %v758
    %v760 = vmul.f32 1.0, %v759
    %v761 = vtanh.pop %v703
    %v762 = vxor.u32 %v703, 2147483648
    %v763 = vmul.f32 %v762, 1.442695
    %v764 = vpow.pop %v763
    %v765 = vadd.f32 %v764, 1.0
    %v766 = vrcp.pop %v765
    %v767 = vmul.f32 1.0, %v766
    %v769 = vrot.slane %v599, 4
    %770 = vrot.lane.b32.xlu0 %v769, 64
    %v771 = vpop.permute.xlu0 %770
    %v773 = vmul.f32 %v760, %v771
    %v774 = vmul.f32 %v760, %v761
    %776 = vrot.lane.b32.xlu0 %v774, 64
    %v777 = vpop.permute.xlu0 %776
    %v779 = vadd.f32 %v773, %v777
    %v780 = vtanh.pop %v779
    %v781 = vmul.f32 %v767, %v780
    %v782 = vsel %vm754, 1, 0
    %783 = vset.pattern.permute.xlu0 0
    %784 = vperm.xlu0 %783, %v782
    %v785 = vpop.permute.xlu0 %784
    %vm786 = vcmp.eq.s32.totalorder %v785, 1
    %v788 = vrot.slane %v781, 4
    %789 = vrot.lane.b32.xlu0 %v788, 64
    %v790 = vpop.permute.xlu0 %789
    %v792 = vsel %vm786, %v790, %v597
    %v794 = vrot.slane %v779, 4
    %795 = vrot.lane.b32.xlu0 %v794, 64
    %v796 = vpop.permute.xlu0 %795
    %v798 = vsel %vm786, %v796, %v599
    %v799 = vld [vmem:[#allocation2] sm:$0xf0]
    %v800 = vld [vmem:[#allocation2 + $0x8] sm:$0xf0]
    %v801 = vpack.c.bf16 %v746, %v746
    %803 = vrot.lane.b32.xlu0 %v801, 64
    %v804 = vpop.permute.xlu0 %803
    %v806 = vsel %vm156, %v804, 0
    %808 = vmatprep.subr.bf16.mxu0 %v561
    %809 = vmatpush1.bf16.msra.mxu0 %v560
    %810 = vmatprep.subr.bf16.mxu0 %v563
    %811 = vmatpush1.bf16.msra.mxu0 %v562
    %812 = vmatprep.subr.bf16.mxu0 %v565
    %813 = vmatpush1.bf16.msra.mxu0 %v564
    %814 = vmatprep.subr.bf16.mxu0 %v567
    %815 = vmatpush1.bf16.msra.mxu0 %v566
    %816 = vmatprep.subr.bf16.mxu0 0
    %817 = vmatpush1.bf16.msra.mxu0 0
    %818 = vmatprep.subr.bf16.mxu0 0
    %819 = vmatpush1.bf16.msra.mxu0 0
    %820 = vmatprep.subr.bf16.mxu0 0
    %821 = vmatpush1.bf16.msra.mxu0 0
    %822 = vmatprep.subr.bf16.mxu0 0
    %823 = vmatpush1.bf16.msra.mxu0 0
    %824 = vmatprep.subr.bf16.mxu0 0
    %825 = vmatpush1.bf16.msra.mxu0 0
    %826 = vmatprep.subr.bf16.mxu0 0
    %827 = vmatpush1.bf16.msra.mxu0 0
    %828 = vmatprep.subr.bf16.mxu0 0
    %829 = vmatpush1.bf16.msra.mxu0 0
    %830 = vmatprep.subr.bf16.mxu0 0
    %831 = vmatpush1.bf16.msra.mxu0 0
    %832 = vmatprep.subr.bf16.mxu0 0
    %833 = vmatpush1.bf16.msra.mxu0 0
    %834 = vmatprep.subr.bf16.mxu0 0
    %835 = vmatpush1.bf16.msra.mxu0 0
    %836 = vmatprep.subr.bf16.mxu0 0
    %837 = vmatpush1.bf16.msra.mxu0 0
    %838 = vmatprep.subr.bf16.mxu0 0
    %839 = vmatpush1.bf16.msra.mxu0 0
    %840 = vmatprep.mubr.bf16.mxu0 0
    %841 = vmatmul.mubr.bf16.gmra.mrb[0].mxu0 %v806
    %v842 = vpop.f32.mrb[0].mxu0
    %v843 = vadd.f32 0.0, %v842
    %v844 = vpop.f32.mrb[0].mxu0
    %v845 = vadd.f32 0.0, %v844
    %v846 = vpop.f32.mrb[0].mxu0
    %v847 = vpop.f32.mrb[0].mxu0
    %848 = vdwg.mxu0
    %v851 = vrot.slane %v843, 4
    %v852 = vrot.slane %v845, 4
    %v855 = vadd.f32 %v799, %v851
    %v856 = vadd.f32 %v800, %v852
    %v857 = vld [vmem:[#allocation3 + $0x70] sm:$0xf]
    %v858 = vld [vmem:[#allocation3 + $0x78] sm:$0xf]
    %v859 = vpack.c.bf16 %v792, %v792
    %v861 = vsel %vm156, %v859, 0
    %863 = vmatprep.subr.bf16.mxu0 %v585
    %864 = vmatpush1.bf16.msra.mxu0 %v584
    %865 = vmatprep.subr.bf16.mxu0 %v587
    %866 = vmatpush1.bf16.msra.mxu0 %v586
    %867 = vmatprep.subr.bf16.mxu0 %v589
    %868 = vmatpush1.bf16.msra.mxu0 %v588
    %869 = vmatprep.subr.bf16.mxu0 %v591
    %870 = vmatpush1.bf16.msra.mxu0 %v590
    %871 = vmatprep.subr.bf16.mxu0 0
    %872 = vmatpush1.bf16.msra.mxu0 0
    %873 = vmatprep.subr.bf16.mxu0 0
    %874 = vmatpush1.bf16.msra.mxu0 0
    %875 = vmatprep.subr.bf16.mxu0 0
    %876 = vmatpush1.bf16.msra.mxu0 0
    %877 = vmatprep.subr.bf16.mxu0 0
    %878 = vmatpush1.bf16.msra.mxu0 0
    %879 = vmatprep.subr.bf16.mxu0 0
    %880 = vmatpush1.bf16.msra.mxu0 0
    %881 = vmatprep.subr.bf16.mxu0 0
    %882 = vmatpush1.bf16.msra.mxu0 0
    %883 = vmatprep.subr.bf16.mxu0 0
    %884 = vmatpush1.bf16.msra.mxu0 0
    %885 = vmatprep.subr.bf16.mxu0 0
    %886 = vmatpush1.bf16.msra.mxu0 0
    %887 = vmatprep.subr.bf16.mxu0 0
    %888 = vmatpush1.bf16.msra.mxu0 0
    %889 = vmatprep.subr.bf16.mxu0 0
    %890 = vmatpush1.bf16.msra.mxu0 0
    %891 = vmatprep.subr.bf16.mxu0 0
    %892 = vmatpush1.bf16.msra.mxu0 0
    %893 = vmatprep.subr.bf16.mxu0 0
    %894 = vmatpush1.bf16.msra.mxu0 0
    %895 = vmatprep.mubr.bf16.mxu0 0
    %896 = vmatmul.mubr.bf16.gmra.mrb[0].mxu0 %v861
    %v897 = vpop.f32.mrb[0].mxu0
    %v898 = vadd.f32 0.0, %v897
    %v899 = vpop.f32.mrb[0].mxu0
    %v900 = vadd.f32 0.0, %v899
    %v901 = vpop.f32.mrb[0].mxu0
    %v902 = vpop.f32.mrb[0].mxu0
    %903 = vdwg.mxu0
    %v904 = vadd.f32 %v857, %v898
    %v905 = vadd.f32 %v858, %v900
    %vm906 = vcmp.le.s32.totalorder %v592, 1
    %vm907 = vcmp.gt.s32.totalorder %v592, 1
    %v908 = vsel %vm907, 1, 0
    %909 = vrot.lane.b32.xlu0 %v908, 127
    %v910 = vpop.permute.xlu0 %909
    %vm911 = vcmp.ne.s32.totalorder %v910, 0
    %vm912 = vmand %vm906, %vm911
    %v913 = vxor.u32 %v855, 2147483648
    %v914 = vmul.f32 %v913, 1.442695
    %v915 = vpow.pop %v914
    %v916 = vadd.f32 %v915, 1.0
    %v917 = vrcp.pop %v916
    %v918 = vmul.f32 1.0, %v917
    %v919 = vtanh.pop %v856
    %v920 = vxor.u32 %v856, 2147483648
    %v921 = vmul.f32 %v920, 1.442695
    %v922 = vpow.pop %v921
    %v923 = vadd.f32 %v922, 1.0
    %v924 = vrcp.pop %v923
    %v925 = vmul.f32 1.0, %v924
    %v927 = vrot.slane %v747, 4
    %v929 = vmul.f32 %v918, %v927
    %v930 = vmul.f32 %v918, %v919
    %932 = vrot.lane.b32.xlu0 %v930, 64
    %v933 = vpop.permute.xlu0 %932
    %v935 = vadd.f32 %v929, %v933
    %v936 = vtanh.pop %v935
    %v937 = vmul.f32 %v925, %v936
    %v938 = vsel %vm912, 1, 0
    %939 = vset.pattern.permute.xlu0 0
    %940 = vperm.xlu0 %939, %v938
    %v941 = vpop.permute.xlu0 %940
    %vm942 = vcmp.eq.s32.totalorder %v941, 1
    %v944 = vrot.slane %v937, 4
    %945 = vrot.lane.b32.xlu0 %v944, 64
    %v946 = vpop.permute.xlu0 %945
    %949 = vrot.lane.b32.xlu0 %v746, 64
    %v950 = vpop.permute.xlu0 %949
    %v952 = vsel %vm942, %v946, %v950
    %v954 = vrot.slane %v935, 4
    %955 = vrot.lane.b32.xlu0 %v954, 64
    %v956 = vpop.permute.xlu0 %955
    %958 = vrot.lane.b32.xlu0 %v747, 64
    %v959 = vpop.permute.xlu0 %958
    %v961 = vsel %vm942, %v956, %v959
    %vm962 = vcmp.le.s32.totalorder %v592, 14
    %vm963 = vcmp.gt.s32.totalorder %v592, 14
    %v964 = vsel %vm963, 1, 0
    %965 = vrot.lane.b32.xlu0 %v964, 127
    %v966 = vpop.permute.xlu0 %965
    %vm967 = vcmp.ne.s32.totalorder %v966, 0
    %vm968 = vmand %vm962, %vm967
    %v969 = vxor.u32 %v904, 2147483648
    %v970 = vmul.f32 %v969, 1.442695
    %v971 = vpow.pop %v970
    %v972 = vadd.f32 %v971, 1.0
    %v973 = vrcp.pop %v972
    %v974 = vmul.f32 1.0, %v973
    %v975 = vtanh.pop %v905
    %v976 = vxor.u32 %v905, 2147483648
    %v977 = vmul.f32 %v976, 1.442695
    %v978 = vpow.pop %v977
    %v979 = vadd.f32 %v978, 1.0
    %v980 = vrcp.pop %v979
    %v981 = vmul.f32 1.0, %v980
    %983 = vrot.lane.b32.xlu0 %v798, 64
    %v984 = vpop.permute.xlu0 %983
    %v986 = vmul.f32 %v974, %v984
    %v987 = vmul.f32 %v974, %v975
    %989 = vrot.lane.b32.xlu0 %v987, 64
    %v990 = vpop.permute.xlu0 %989
    %v992 = vadd.f32 %v986, %v990
    %v993 = vtanh.pop %v992
    %v994 = vmul.f32 %v981, %v993
    %v995 = vsel %vm968, 1, 0
    %996 = vset.pattern.permute.xlu0 0
    %997 = vperm.xlu0 %996, %v995
    %v998 = vpop.permute.xlu0 %997
    %vm999 = vcmp.eq.s32.totalorder %v998, 1
    %1001 = vrot.lane.b32.xlu0 %v792, 64
    %v1002 = vpop.permute.xlu0 %1001
    %v1004 = vsel %vm999, %v994, %v1002
    %v1005 = vsel %vm999, %v992, %v984
    %v1006 = vld [vmem:[#allocation2 + $0x10] sm:$0xf]
    %v1007 = vld [vmem:[#allocation2 + $0x18] sm:$0xf]
    %v1008 = vpack.c.bf16 %v952, %v952
    %v1010 = vsel %vm156, %v1008, 0
    %1012 = vmatprep.subr.bf16.mxu0 %v561
    %1013 = vmatpush1.bf16.msra.mxu0 %v560
    %1014 = vmatprep.subr.bf16.mxu0 %v563
    %1015 = vmatpush1.bf16.msra.mxu0 %v562
    %1016 = vmatprep.subr.bf16.mxu0 %v565
    %1017 = vmatpush1.bf16.msra.mxu0 %v564
    %1018 = vmatprep.subr.bf16.mxu0 %v567
    %1019 = vmatpush1.bf16.msra.mxu0 %v566
    %1020 = vmatprep.subr.bf16.mxu0 0
    %1021 = vmatpush1.bf16.msra.mxu0 0
    %1022 = vmatprep.subr.bf16.mxu0 0
    %1023 = vmatpush1.bf16.msra.mxu0 0
    %1024 = vmatprep.subr.bf16.mxu0 0
    %1025 = vmatpush1.bf16.msra.mxu0 0
    %1026 = vmatprep.subr.bf16.mxu0 0
    %1027 = vmatpush1.bf16.msra.mxu0 0
    %1028 = vmatprep.subr.bf16.mxu0 0
    %1029 = vmatpush1.bf16.msra.mxu0 0
    %1030 = vmatprep.subr.bf16.mxu0 0
    %1031 = vmatpush1.bf16.msra.mxu0 0
    %1032 = vmatprep.subr.bf16.mxu0 0
    %1033 = vmatpush1.bf16.msra.mxu0 0
    %1034 = vmatprep.subr.bf16.mxu0 0
    %1035 = vmatpush1.bf16.msra.mxu0 0
    %1036 = vmatprep.subr.bf16.mxu0 0
    %1037 = vmatpush1.bf16.msra.mxu0 0
    %1038 = vmatprep.subr.bf16.mxu0 0
    %1039 = vmatpush1.bf16.msra.mxu0 0
    %1040 = vmatprep.subr.bf16.mxu0 0
    %1041 = vmatpush1.bf16.msra.mxu0 0
    %1042 = vmatprep.subr.bf16.mxu0 0
    %1043 = vmatpush1.bf16.msra.mxu0 0
    %1044 = vmatprep.mubr.bf16.mxu0 0
    %1045 = vmatmul.mubr.bf16.gmra.mrb[0].mxu0 %v1010
    %v1046 = vpop.f32.mrb[0].mxu0
    %v1047 = vadd.f32 0.0, %v1046
    %v1048 = vpop.f32.mrb[0].mxu0
    %v1049 = vadd.f32 0.0, %v1048
    %v1050 = vpop.f32.mrb[0].mxu0
    %v1051 = vpop.f32.mrb[0].mxu0
    %1052 = vdwg.mxu0
    %v1053 = vadd.f32 %v1006, %v1047
    %v1054 = vadd.f32 %v1007, %v1049
    %v1055 = vld [vmem:[#allocation3 + $0x60] sm:$0xf0]
    %v1056 = vld [vmem:[#allocation3 + $0x68] sm:$0xf0]
    %v1057 = vpack.c.bf16 %v1004, %v1004
    %1059 = vrot.lane.b32.xlu0 %v1057, 64
    %v1060 = vpop.permute.xlu0 %1059
    %v1062 = vsel %vm156, %v1060, 0
    %1064 = vmatprep.subr.bf16.mxu0 %v585
    %1065 = vmatpush1.bf16.msra.mxu0 %v584
    %1066 = vmatprep.subr.bf16.mxu0 %v587
    %1067 = vmatpush1.bf16.msra.mxu0 %v586
    %1068 = vmatprep.subr.bf16.mxu0 %v589
    %1069 = vmatpush1.bf16.msra.mxu0 %v588
    %1070 = vmatprep.subr.bf16.mxu0 %v591
    %1071 = vmatpush1.bf16.msra.mxu0 %v590
    %1072 = vmatprep.subr.bf16.mxu0 0
    %1073 = vmatpush1.bf16.msra.mxu0 0
    %1074 = vmatprep.subr.bf16.mxu0 0
    %1075 = vmatpush1.bf16.msra.mxu0 0
    %1076 = vmatprep.subr.bf16.mxu0 0
    %1077 = vmatpush1.bf16.msra.mxu0 0
    %1078 = vmatprep.subr.bf16.mxu0 0
    %1079 = vmatpush1.bf16.msra.mxu0 0
    %1080 = vmatprep.subr.bf16.mxu0 0
    %1081 = vmatpush1.bf16.msra.mxu0 0
    %1082 = vmatprep.subr.bf16.mxu0 0
    %1083 = vmatpush1.bf16.msra.mxu0 0
    %1084 = vmatprep.subr.bf16.mxu0 0
    %1085 = vmatpush1.bf16.msra.mxu0 0
    %1086 = vmatprep.subr.bf16.mxu0 0
    %1087 = vmatpush1.bf16.msra.mxu0 0
    %1088 = vmatprep.subr.bf16.mxu0 0
    %1089 = vmatpush1.bf16.msra.mxu0 0
    %1090 = vmatprep.subr.bf16.mxu0 0
    %1091 = vmatpush1.bf16.msra.mxu0 0
    %1092 = vmatprep.subr.bf16.mxu0 0
    %1093 = vmatpush1.bf16.msra.mxu0 0
    %1094 = vmatprep.subr.bf16.mxu0 0
    %1095 = vmatpush1.bf16.msra.mxu0 0
    %1096 = vmatprep.mubr.bf16.mxu0 0
    %1097 = vmatmul.mubr.bf16.gmra.mrb[0].mxu0 %v1062
    %v1098 = vpop.f32.mrb[0].mxu0
    %v1099 = vadd.f32 0.0, %v1098
    %v1100 = vpop.f32.mrb[0].mxu0
    %v1101 = vadd.f32 0.0, %v1100
    %v1102 = vpop.f32.mrb[0].mxu0
    %v1103 = vpop.f32.mrb[0].mxu0
    %1104 = vdwg.mxu0
    %v1107 = vrot.slane %v1099, 4
    %v1108 = vrot.slane %v1101, 4
    %v1111 = vadd.f32 %v1055, %v1107
    %v1112 = vadd.f32 %v1056, %v1108
    %vm1113 = vcmp.le.s32.totalorder %v592, 2
    %vm1114 = vcmp.gt.s32.totalorder %v592, 2
    %v1115 = vsel %vm1114, 1, 0
    %1116 = vrot.lane.b32.xlu0 %v1115, 127
    %v1117 = vpop.permute.xlu0 %1116
    %vm1118 = vcmp.ne.s32.totalorder %v1117, 0
    %vm1119 = vmand %vm1113, %vm1118
    %v1120 = vxor.u32 %v1053, 2147483648
    %v1121 = vmul.f32 %v1120, 1.442695
    %v1122 = vpow.pop %v1121
    %v1123 = vadd.f32 %v1122, 1.0
    %v1124 = vrcp.pop %v1123
    %v1125 = vmul.f32 1.0, %v1124
    %v1126 = vtanh.pop %v1054
    %v1127 = vxor.u32 %v1054, 2147483648
    %v1128 = vmul.f32 %v1127, 1.442695
    %v1129 = vpow.pop %v1128
    %v1130 = vadd.f32 %v1129, 1.0
    %v1131 = vrcp.pop %v1130
    %v1132 = vmul.f32 1.0, %v1131
    %1134 = vrot.lane.b32.xlu0 %v961, 64
    %v1135 = vpop.permute.xlu0 %1134
    %v1137 = vmul.f32 %v1125, %v1135
    %v1138 = vmul.f32 %v1125, %v1126
    %1140 = vrot.lane.b32.xlu0 %v1138, 64
    %v1141 = vpop.permute.xlu0 %1140
    %v1143 = vadd.f32 %v1137, %v1141
    %v1144 = vtanh.pop %v1143
    %v1145 = vmul.f32 %v1132, %v1144
    %v1146 = vsel %vm1119, 1, 0
    %1147 = vset.pattern.permute.xlu0 0
    %1148 = vperm.xlu0 %1147, %v1146
    %v1149 = vpop.permute.xlu0 %1148
    %vm1150 = vcmp.eq.s32.totalorder %v1149, 1
    %1152 = vrot.lane.b32.xlu0 %v952, 64
    %v1153 = vpop.permute.xlu0 %1152
    %v1155 = vsel %vm1150, %v1145, %v1153
    %v1156 = vsel %vm1150, %v1143, %v1135
    %vm1157 = vcmp.le.s32.totalorder %v592, 13
    %vm1158 = vcmp.gt.s32.totalorder %v592, 13
    %v1159 = vsel %vm1158, 1, 0
    %1160 = vrot.lane.b32.xlu0 %v1159, 127
    %v1161 = vpop.permute.xlu0 %1160
    %vm1162 = vcmp.ne.s32.totalorder %v1161, 0
    %vm1163 = vmand %vm1157, %vm1162
    %v1164 = vxor.u32 %v1111, 2147483648
    %v1165 = vmul.f32 %v1164, 1.442695
    %v1166 = vpow.pop %v1165
    %v1167 = vadd.f32 %v1166, 1.0
    %v1168 = vrcp.pop %v1167
    %v1169 = vmul.f32 1.0, %v1168
    %v1170 = vtanh.pop %v1112
    %v1171 = vxor.u32 %v1112, 2147483648
    %v1172 = vmul.f32 %v1171, 1.442695
    %v1173 = vpow.pop %v1172
    %v1174 = vadd.f32 %v1173, 1.0
    %v1175 = vrcp.pop %v1174
    %v1176 = vmul.f32 1.0, %v1175
    %v1178 = vrot.slane %v1005, 4
    %v1180 = vmul.f32 %v1169, %v1178
    %v1181 = vmul.f32 %v1169, %v1170
    %1183 = vrot.lane.b32.xlu0 %v1181, 64
    %v1184 = vpop.permute.xlu0 %1183
    %v1186 = vadd.f32 %v1180, %v1184
    %v1187 = vtanh.pop %v1186
    %v1188 = vmul.f32 %v1176, %v1187
    %v1189 = vsel %vm1163, 1, 0
    %1190 = vset.pattern.permute.xlu0 0
    %1191 = vperm.xlu0 %1190, %v1189
    %v1192 = vpop.permute.xlu0 %1191
    %vm1193 = vcmp.eq.s32.totalorder %v1192, 1
    %v1195 = vrot.slane %v1188, 4
    %1196 = vrot.lane.b32.xlu0 %v1195, 64
    %v1197 = vpop.permute.xlu0 %1196
    %1200 = vrot.lane.b32.xlu0 %v1004, 64
    %v1201 = vpop.permute.xlu0 %1200
    %v1203 = vsel %vm1193, %v1197, %v1201
    %v1205 = vrot.slane %v1186, 4
    %1206 = vrot.lane.b32.xlu0 %v1205, 64
    %v1207 = vpop.permute.xlu0 %1206
    %1209 = vrot.lane.b32.xlu0 %v1005, 64
    %v1210 = vpop.permute.xlu0 %1209
    %v1212 = vsel %vm1193, %v1207, %v1210
    %v1213 = vld [vmem:[#allocation2 + $0x10] sm:$0xf0]
    %v1214 = vld [vmem:[#allocation2 + $0x18] sm:$0xf0]
    %v1215 = vpack.c.bf16 %v1155, %v1155
    %1217 = vrot.lane.b32.xlu0 %v1215, 64
    %v1218 = vpop.permute.xlu0 %1217
    %v1220 = vsel %vm156, %v1218, 0
    %1222 = vmatprep.subr.bf16.mxu0 %v561
    %1223 = vmatpush1.bf16.msra.mxu0 %v560
    %1224 = vmatprep.subr.bf16.mxu0 %v563
    %1225 = vmatpush1.bf16.msra.mxu0 %v562
    %1226 = vmatprep.subr.bf16.mxu0 %v565
    %1227 = vmatpush1.bf16.msra.mxu0 %v564
    %1228 = vmatprep.subr.bf16.mxu0 %v567
    %1229 = vmatpush1.bf16.msra.mxu0 %v566
    %1230 = vmatprep.subr.bf16.mxu0 0
    %1231 = vmatpush1.bf16.msra.mxu0 0
    %1232 = vmatprep.subr.bf16.mxu0 0
    %1233 = vmatpush1.bf16.msra.mxu0 0
    %1234 = vmatprep.subr.bf16.mxu0 0
    %1235 = vmatpush1.bf16.msra.mxu0 0
    %1236 = vmatprep.subr.bf16.mxu0 0
    %1237 = vmatpush1.bf16.msra.mxu0 0
    %1238 = vmatprep.subr.bf16.mxu0 0
    %1239 = vmatpush1.bf16.msra.mxu0 0
    %1240 = vmatprep.subr.bf16.mxu0 0
    %1241 = vmatpush1.bf16.msra.mxu0 0
    %1242 = vmatprep.subr.bf16.mxu0 0
    %1243 = vmatpush1.bf16.msra.mxu0 0
    %1244 = vmatprep.subr.bf16.mxu0 0
    %1245 = vmatpush1.bf16.msra.mxu0 0
    %1246 = vmatprep.subr.bf16.mxu0 0
    %1247 = vmatpush1.bf16.msra.mxu0 0
    %1248 = vmatprep.subr.bf16.mxu0 0
    %1249 = vmatpush1.bf16.msra.mxu0 0
    %1250 = vmatprep.subr.bf16.mxu0 0
    %1251 = vmatpush1.bf16.msra.mxu0 0
    %1252 = vmatprep.subr.bf16.mxu0 0
    %1253 = vmatpush1.bf16.msra.mxu0 0
    %1254 = vmatprep.mubr.bf16.mxu0 0
    %1255 = vmatmul.mubr.bf16.gmra.mrb[0].mxu0 %v1220
    %v1256 = vpop.f32.mrb[0].mxu0
    %v1257 = vadd.f32 0.0, %v1256
    %v1258 = vpop.f32.mrb[0].mxu0
    %v1259 = vadd.f32 0.0, %v1258
    %v1260 = vpop.f32.mrb[0].mxu0
    %v1261 = vpop.f32.mrb[0].mxu0
    %1262 = vdwg.mxu0
    %v1265 = vrot.slane %v1257, 4
    %v1266 = vrot.slane %v1259, 4
    %v1269 = vadd.f32 %v1213, %v1265
    %v1270 = vadd.f32 %v1214, %v1266
    %v1271 = vld [vmem:[#allocation3 + $0x60] sm:$0xf]
    %v1272 = vld [vmem:[#allocation3 + $0x68] sm:$0xf]
    %v1273 = vpack.c.bf16 %v1203, %v1203
    %v1275 = vsel %vm156, %v1273, 0
    %1277 = vmatprep.subr.bf16.mxu0 %v585
    %1278 = vmatpush1.bf16.msra.mxu0 %v584
    %1279 = vmatprep.subr.bf16.mxu0 %v587
    %1280 = vmatpush1.bf16.msra.mxu0 %v586
    %1281 = vmatprep.subr.bf16.mxu0 %v589
    %1282 = vmatpush1.bf16.msra.mxu0 %v588
    %1283 = vmatprep.subr.bf16.mxu0 %v591
    %1284 = vmatpush1.bf16.msra.mxu0 %v590
    %1285 = vmatprep.subr.bf16.mxu0 0
    %1286 = vmatpush1.bf16.msra.mxu0 0
    %1287 = vmatprep.subr.bf16.mxu0 0
    %1288 = vmatpush1.bf16.msra.mxu0 0
    %1289 = vmatprep.subr.bf16.mxu0 0
    %1290 = vmatpush1.bf16.msra.mxu0 0
    %1291 = vmatprep.subr.bf16.mxu0 0
    %1292 = vmatpush1.bf16.msra.mxu0 0
    %1293 = vmatprep.subr.bf16.mxu0 0
    %1294 = vmatpush1.bf16.msra.mxu0 0
    %1295 = vmatprep.subr.bf16.mxu0 0
    %1296 = vmatpush1.bf16.msra.mxu0 0
    %1297 = vmatprep.subr.bf16.mxu0 0
    %1298 = vmatpush1.bf16.msra.mxu0 0
    %1299 = vmatprep.subr.bf16.mxu0 0
    %1300 = vmatpush1.bf16.msra.mxu0 0
    %1301 = vmatprep.subr.bf16.mxu0 0
    %1302 = vmatpush1.bf16.msra.mxu0 0
    %1303 = vmatprep.subr.bf16.mxu0 0
    %1304 = vmatpush1.bf16.msra.mxu0 0
    %1305 = vmatprep.subr.bf16.mxu0 0
    %1306 = vmatpush1.bf16.msra.mxu0 0
    %1307 = vmatprep.subr.bf16.mxu0 0
    %1308 = vmatpush1.bf16.msra.mxu0 0
    %1309 = vmatprep.mubr.bf16.mxu0 0
    %1310 = vmatmul.mubr.bf16.gmra.mrb[0].mxu0 %v1275
    %v1311 = vpop.f32.mrb[0].mxu0
    %v1312 = vadd.f32 0.0, %v1311
    %v1313 = vpop.f32.mrb[0].mxu0
    %v1314 = vadd.f32 0.0, %v1313
    %v1315 = vpop.f32.mrb[0].mxu0
    %v1316 = vpop.f32.mrb[0].mxu0
    %1317 = vdwg.mxu0
    %v1318 = vadd.f32 %v1271, %v1312
    %v1319 = vadd.f32 %v1272, %v1314
    %vm1320 = vcmp.le.s32.totalorder %v592, 3
    %vm1321 = vcmp.gt.s32.totalorder %v592, 3
    %v1322 = vsel %vm1321, 1, 0
    %1323 = vrot.lane.b32.xlu0 %v1322, 127
    %v1324 = vpop.permute.xlu0 %1323
    %vm1325 = vcmp.ne.s32.totalorder %v1324, 0
    %vm1326 = vmand %vm1320, %vm1325
    %v1327 = vxor.u32 %v1269, 2147483648
    %v1328 = vmul.f32 %v1327, 1.442695
    %v1329 = vpow.pop %v1328
    %v1330 = vadd.f32 %v1329, 1.0
    %v1331 = vrcp.pop %v1330
    %v1332 = vmul.f32 1.0, %v1331
    %v1333 = vtanh.pop %v1270
    %v1334 = vxor.u32 %v1270, 2147483648
    %v1335 = vmul.f32 %v1334, 1.442695
    %v1336 = vpow.pop %v1335
    %v1337 = vadd.f32 %v1336, 1.0
    %v1338 = vrcp.pop %v1337
    %v1339 = vmul.f32 1.0, %v1338
    %v1341 = vrot.slane %v1156, 4
    %v1343 = vmul.f32 %v1332, %v1341
    %v1344 = vmul.f32 %v1332, %v1333
    %1346 = vrot.lane.b32.xlu0 %v1344, 64
    %v1347 = vpop.permute.xlu0 %1346
    %v1349 = vadd.f32 %v1343, %v1347
    %v1350 = vtanh.pop %v1349
    %v1351 = vmul.f32 %v1339, %v1350
    %v1352 = vsel %vm1326, 1, 0
    %1353 = vset.pattern.permute.xlu0 0
    %1354 = vperm.xlu0 %1353, %v1352
    %v1355 = vpop.permute.xlu0 %1354
    %vm1356 = vcmp.eq.s32.totalorder %v1355, 1
    %v1358 = vrot.slane %v1351, 4
    %1359 = vrot.lane.b32.xlu0 %v1358, 64
    %v1360 = vpop.permute.xlu0 %1359
    %1363 = vrot.lane.b32.xlu0 %v1155, 64
    %v1364 = vpop.permute.xlu0 %1363
    %v1366 = vsel %vm1356, %v1360, %v1364
    %v1368 = vrot.slane %v1349, 4
    %1369 = vrot.lane.b32.xlu0 %v1368, 64
    %v1370 = vpop.permute.xlu0 %1369
    %1372 = vrot.lane.b32.xlu0 %v1156, 64
    %v1373 = vpop.permute.xlu0 %1372
    %v1375 = vsel %vm1356, %v1370, %v1373
    %vm1376 = vcmp.le.s32.totalorder %v592, 12
    %vm1377 = vcmp.gt.s32.totalorder %v592, 12
    %v1378 = vsel %vm1377, 1, 0
    %1379 = vrot.lane.b32.xlu0 %v1378, 127
    %v1380 = vpop.permute.xlu0 %1379
    %vm1381 = vcmp.ne.s32.totalorder %v1380, 0
    %vm1382 = vmand %vm1376, %vm1381
    %v1383 = vxor.u32 %v1318, 2147483648
    %v1384 = vmul.f32 %v1383, 1.442695
    %v1385 = vpow.pop %v1384
    %v1386 = vadd.f32 %v1385, 1.0
    %v1387 = vrcp.pop %v1386
    %v1388 = vmul.f32 1.0, %v1387
    %v1389 = vtanh.pop %v1319
    %v1390 = vxor.u32 %v1319, 2147483648
    %v1391 = vmul.f32 %v1390, 1.442695
    %v1392 = vpow.pop %v1391
    %v1393 = vadd.f32 %v1392, 1.0
    %v1394 = vrcp.pop %v1393
    %v1395 = vmul.f32 1.0, %v1394
    %1397 = vrot.lane.b32.xlu0 %v1212, 64
    %v1398 = vpop.permute.xlu0 %1397
    %v1400 = vmul.f32 %v1388, %v1398
    %v1401 = vmul.f32 %v1388, %v1389
    %1403 = vrot.lane.b32.xlu0 %v1401, 64
    %v1404 = vpop.permute.xlu0 %1403
    %v1406 = vadd.f32 %v1400, %v1404
    %v1407 = vtanh.pop %v1406
    %v1408 = vmul.f32 %v1395, %v1407
    %v1409 = vsel %vm1382, 1, 0
    %1410 = vset.pattern.permute.xlu0 0
    %1411 = vperm.xlu0 %1410, %v1409
    %v1412 = vpop.permute.xlu0 %1411
    %vm1413 = vcmp.eq.s32.totalorder %v1412, 1
    %1415 = vrot.lane.b32.xlu0 %v1203, 64
    %v1416 = vpop.permute.xlu0 %1415
    %v1418 = vsel %vm1413, %v1408, %v1416
    %v1419 = vsel %vm1413, %v1406, %v1398
    %v1420 = vld [vmem:[#allocation2 + $0x20] sm:$0xf]
    %v1421 = vld [vmem:[#allocation2 + $0x28] sm:$0xf]
    %v1422 = vpack.c.bf16 %v1366, %v1366
    %v1424 = vsel %vm156, %v1422, 0
    %1426 = vmatprep.subr.bf16.mxu0 %v561
    %1427 = vmatpush1.bf16.msra.mxu0 %v560
    %1428 = vmatprep.subr.bf16.mxu0 %v563
    %1429 = vmatpush1.bf16.msra.mxu0 %v562
    %1430 = vmatprep.subr.bf16.mxu0 %v565
    %1431 = vmatpush1.bf16.msra.mxu0 %v564
    %1432 = vmatprep.subr.bf16.mxu0 %v567
    %1433 = vmatpush1.bf16.msra.mxu0 %v566
    %1434 = vmatprep.subr.bf16.mxu0 0
    %1435 = vmatpush1.bf16.msra.mxu0 0
    %1436 = vmatprep.subr.bf16.mxu0 0
    %1437 = vmatpush1.bf16.msra.mxu0 0
    %1438 = vmatprep.subr.bf16.mxu0 0
    %1439 = vmatpush1.bf16.msra.mxu0 0
    %1440 = vmatprep.subr.bf16.mxu0 0
    %1441 = vmatpush1.bf16.msra.mxu0 0
    %1442 = vmatprep.subr.bf16.mxu0 0
    %1443 = vmatpush1.bf16.msra.mxu0 0
    %1444 = vmatprep.subr.bf16.mxu0 0
    %1445 = vmatpush1.bf16.msra.mxu0 0
    %1446 = vmatprep.subr.bf16.mxu0 0
    %1447 = vmatpush1.bf16.msra.mxu0 0
    %1448 = vmatprep.subr.bf16.mxu0 0
    %1449 = vmatpush1.bf16.msra.mxu0 0
    %1450 = vmatprep.subr.bf16.mxu0 0
    %1451 = vmatpush1.bf16.msra.mxu0 0
    %1452 = vmatprep.subr.bf16.mxu0 0
    %1453 = vmatpush1.bf16.msra.mxu0 0
    %1454 = vmatprep.subr.bf16.mxu0 0
    %1455 = vmatpush1.bf16.msra.mxu0 0
    %1456 = vmatprep.subr.bf16.mxu0 0
    %1457 = vmatpush1.bf16.msra.mxu0 0
    %1458 = vmatprep.mubr.bf16.mxu0 0
    %1459 = vmatmul.mubr.bf16.gmra.mrb[0].mxu0 %v1424
    %v1460 = vpop.f32.mrb[0].mxu0
    %v1461 = vadd.f32 0.0, %v1460
    %v1462 = vpop.f32.mrb[0].mxu0
    %v1463 = vadd.f32 0.0, %v1462
    %v1464 = vpop.f32.mrb[0].mxu0
    %v1465 = vpop.f32.mrb[0].mxu0
    %1466 = vdwg.mxu0
    %v1467 = vadd.f32 %v1420, %v1461
    %v1468 = vadd.f32 %v1421, %v1463
    %v1469 = vld [vmem:[#allocation3 + $0x50] sm:$0xf0]
    %v1470 = vld [vmem:[#allocation3 + $0x58] sm:$0xf0]
    %v1471 = vpack.c.bf16 %v1418, %v1418
    %1473 = vrot.lane.b32.xlu0 %v1471, 64
    %v1474 = vpop.permute.xlu0 %1473
    %v1476 = vsel %vm156, %v1474, 0
    %1478 = vmatprep.subr.bf16.mxu0 %v585
    %1479 = vmatpush1.bf16.msra.mxu0 %v584
    %1480 = vmatprep.subr.bf16.mxu0 %v587
    %1481 = vmatpush1.bf16.msra.mxu0 %v586
    %1482 = vmatprep.subr.bf16.mxu0 %v589
    %1483 = vmatpush1.bf16.msra.mxu0 %v588
    %1484 = vmatprep.subr.bf16.mxu0 %v591
    %1485 = vmatpush1.bf16.msra.mxu0 %v590
    %1486 = vmatprep.subr.bf16.mxu0 0
    %1487 = vmatpush1.bf16.msra.mxu0 0
    %1488 = vmatprep.subr.bf16.mxu0 0
    %1489 = vmatpush1.bf16.msra.mxu0 0
    %1490 = vmatprep.subr.bf16.mxu0 0
    %1491 = vmatpush1.bf16.msra.mxu0 0
    %1492 = vmatprep.subr.bf16.mxu0 0
    %1493 = vmatpush1.bf16.msra.mxu0 0
    %1494 = vmatprep.subr.bf16.mxu0 0
    %1495 = vmatpush1.bf16.msra.mxu0 0
    %1496 = vmatprep.subr.bf16.mxu0 0
    %1497 = vmatpush1.bf16.msra.mxu0 0
    %1498 = vmatprep.subr.bf16.mxu0 0
    %1499 = vmatpush1.bf16.msra.mxu0 0
    %1500 = vmatprep.subr.bf16.mxu0 0
    %1501 = vmatpush1.bf16.msra.mxu0 0
    %1502 = vmatprep.subr.bf16.mxu0 0
    %1503 = vmatpush1.bf16.msra.mxu0 0
    %1504 = vmatprep.subr.bf16.mxu0 0
    %1505 = vmatpush1.bf16.msra.mxu0 0
    %1506 = vmatprep.subr.bf16.mxu0 0
    %1507 = vmatpush1.bf16.msra.mxu0 0
    %1508 = vmatprep.subr.bf16.mxu0 0
    %1509 = vmatpush1.bf16.msra.mxu0 0
    %1510 = vmatprep.mubr.bf16.mxu0 0
    %1511 = vmatmul.mubr.bf16.gmra.mrb[0].mxu0 %v1476
    %v1512 = vpop.f32.mrb[0].mxu0
    %v1513 = vadd.f32 0.0, %v1512
    %v1514 = vpop.f32.mrb[0].mxu0
    %v1515 = vadd.f32 0.0, %v1514
    %v1516 = vpop.f32.mrb[0].mxu0
    %v1517 = vpop.f32.mrb[0].mxu0
    %1518 = vdwg.mxu0
    %v1521 = vrot.slane %v1513, 4
    %v1522 = vrot.slane %v1515, 4
    %v1525 = vadd.f32 %v1469, %v1521
    %v1526 = vadd.f32 %v1470, %v1522
    %vm1527 = vcmp.le.s32.totalorder %v592, 4
    %vm1528 = vcmp.gt.s32.totalorder %v592, 4
    %v1529 = vsel %vm1528, 1, 0
    %1530 = vrot.lane.b32.xlu0 %v1529, 127
    %v1531 = vpop.permute.xlu0 %1530
    %vm1532 = vcmp.ne.s32.totalorder %v1531, 0
    %vm1533 = vmand %vm1527, %vm1532
    %v1534 = vxor.u32 %v1467, 2147483648
    %v1535 = vmul.f32 %v1534, 1.442695
    %v1536 = vpow.pop %v1535
    %v1537 = vadd.f32 %v1536, 1.0
    %v1538 = vrcp.pop %v1537
    %v1539 = vmul.f32 1.0, %v1538
    %v1540 = vtanh.pop %v1468
    %v1541 = vxor.u32 %v1468, 2147483648
    %v1542 = vmul.f32 %v1541, 1.442695
    %v1543 = vpow.pop %v1542
    %v1544 = vadd.f32 %v1543, 1.0
    %v1545 = vrcp.pop %v1544
    %v1546 = vmul.f32 1.0, %v1545
    %1548 = vrot.lane.b32.xlu0 %v1375, 64
    %v1549 = vpop.permute.xlu0 %1548
    %v1551 = vmul.f32 %v1539, %v1549
    %v1552 = vmul.f32 %v1539, %v1540
    %1554 = vrot.lane.b32.xlu0 %v1552, 64
    %v1555 = vpop.permute.xlu0 %1554
    %v1557 = vadd.f32 %v1551, %v1555
    %v1558 = vtanh.pop %v1557
    %v1559 = vmul.f32 %v1546, %v1558
    %v1560 = vsel %vm1533, 1, 0
    %1561 = vset.pattern.permute.xlu0 0
    %1562 = vperm.xlu0 %1561, %v1560
    %v1563 = vpop.permute.xlu0 %1562
    %vm1564 = vcmp.eq.s32.totalorder %v1563, 1
    %1566 = vrot.lane.b32.xlu0 %v1366, 64
    %v1567 = vpop.permute.xlu0 %1566
    %v1569 = vsel %vm1564, %v1559, %v1567
    %v1570 = vsel %vm1564, %v1557, %v1549
    %vm1571 = vcmp.le.s32.totalorder %v592, 11
    %vm1572 = vcmp.gt.s32.totalorder %v592, 11
    %v1573 = vsel %vm1572, 1, 0
    %1574 = vrot.lane.b32.xlu0 %v1573, 127
    %v1575 = vpop.permute.xlu0 %1574
    %vm1576 = vcmp.ne.s32.totalorder %v1575, 0
    %vm1577 = vmand %vm1571, %vm1576
    %v1578 = vxor.u32 %v1525, 2147483648
    %v1579 = vmul.f32 %v1578, 1.442695
    %v1580 = vpow.pop %v1579
    %v1581 = vadd.f32 %v1580, 1.0
    %v1582 = vrcp.pop %v1581
    %v1583 = vmul.f32 1.0, %v1582
    %v1584 = vtanh.pop %v1526
    %v1585 = vxor.u32 %v1526, 2147483648
    %v1586 = vmul.f32 %v1585, 1.442695
    %v1587 = vpow.pop %v1586
    %v1588 = vadd.f32 %v1587, 1.0
    %v1589 = vrcp.pop %v1588
    %v1590 = vmul.f32 1.0, %v1589
    %v1592 = vrot.slane %v1419, 4
    %v1594 = vmul.f32 %v1583, %v1592
    %v1595 = vmul.f32 %v1583, %v1584
    %1597 = vrot.lane.b32.xlu0 %v1595, 64
    %v1598 = vpop.permute.xlu0 %1597
    %v1600 = vadd.f32 %v1594, %v1598
    %v1601 = vtanh.pop %v1600
    %v1602 = vmul.f32 %v1590, %v1601
    %v1603 = vsel %vm1577, 1, 0
    %1604 = vset.pattern.permute.xlu0 0
    %1605 = vperm.xlu0 %1604, %v1603
    %v1606 = vpop.permute.xlu0 %1605
    %vm1607 = vcmp.eq.s32.totalorder %v1606, 1
    %v1609 = vrot.slane %v1602, 4
    %1610 = vrot.lane.b32.xlu0 %v1609, 64
    %v1611 = vpop.permute.xlu0 %1610
    %1614 = vrot.lane.b32.xlu0 %v1418, 64
    %v1615 = vpop.permute.xlu0 %1614
    %v1617 = vsel %vm1607, %v1611, %v1615
    %v1619 = vrot.slane %v1600, 4
    %1620 = vrot.lane.b32.xlu0 %v1619, 64
    %v1621 = vpop.permute.xlu0 %1620
    %1623 = vrot.lane.b32.xlu0 %v1419, 64
    %v1624 = vpop.permute.xlu0 %1623
    %v1626 = vsel %vm1607, %v1621, %v1624
    %v1627 = vld [vmem:[#allocation2 + $0x20] sm:$0xf0]
    %v1628 = vld [vmem:[#allocation2 + $0x28] sm:$0xf0]
    %v1629 = vpack.c.bf16 %v1569, %v1569
    %1631 = vrot.lane.b32.xlu0 %v1629, 64
    %v1632 = vpop.permute.xlu0 %1631
    %v1634 = vsel %vm156, %v1632, 0
    %1636 = vmatprep.subr.bf16.mxu0 %v561
    %1637 = vmatpush1.bf16.msra.mxu0 %v560
    %1638 = vmatprep.subr.bf16.mxu0 %v563
    %1639 = vmatpush1.bf16.msra.mxu0 %v562
    %1640 = vmatprep.subr.bf16.mxu0 %v565
    %1641 = vmatpush1.bf16.msra.mxu0 %v564
    %1642 = vmatprep.subr.bf16.mxu0 %v567
    %1643 = vmatpush1.bf16.msra.mxu0 %v566
    %1644 = vmatprep.subr.bf16.mxu0 0
    %1645 = vmatpush1.bf16.msra.mxu0 0
    %1646 = vmatprep.subr.bf16.mxu0 0
    %1647 = vmatpush1.bf16.msra.mxu0 0
    %1648 = vmatprep.subr.bf16.mxu0 0
    %1649 = vmatpush1.bf16.msra.mxu0 0
    %1650 = vmatprep.subr.bf16.mxu0 0
    %1651 = vmatpush1.bf16.msra.mxu0 0
    %1652 = vmatprep.subr.bf16.mxu0 0
    %1653 = vmatpush1.bf16.msra.mxu0 0
    %1654 = vmatprep.subr.bf16.mxu0 0
    %1655 = vmatpush1.bf16.msra.mxu0 0
    %1656 = vmatprep.subr.bf16.mxu0 0
    %1657 = vmatpush1.bf16.msra.mxu0 0
    %1658 = vmatprep.subr.bf16.mxu0 0
    %1659 = vmatpush1.bf16.msra.mxu0 0
    %1660 = vmatprep.subr.bf16.mxu0 0
    %1661 = vmatpush1.bf16.msra.mxu0 0
    %1662 = vmatprep.subr.bf16.mxu0 0
    %1663 = vmatpush1.bf16.msra.mxu0 0
    %1664 = vmatprep.subr.bf16.mxu0 0
    %1665 = vmatpush1.bf16.msra.mxu0 0
    %1666 = vmatprep.subr.bf16.mxu0 0
    %1667 = vmatpush1.bf16.msra.mxu0 0
    %1668 = vmatprep.mubr.bf16.mxu0 0
    %1669 = vmatmul.mubr.bf16.gmra.mrb[0].mxu0 %v1634
    %v1670 = vpop.f32.mrb[0].mxu0
    %v1671 = vadd.f32 0.0, %v1670
    %v1672 = vpop.f32.mrb[0].mxu0
    %v1673 = vadd.f32 0.0, %v1672
    %v1674 = vpop.f32.mrb[0].mxu0
    %v1675 = vpop.f32.mrb[0].mxu0
    %1676 = vdwg.mxu0
    %v1679 = vrot.slane %v1671, 4
    %v1680 = vrot.slane %v1673, 4
    %v1683 = vadd.f32 %v1627, %v1679
    %v1684 = vadd.f32 %v1628, %v1680
    %v1685 = vld [vmem:[#allocation3 + $0x50] sm:$0xf]
    %v1686 = vld [vmem:[#allocation3 + $0x58] sm:$0xf]
    %v1687 = vpack.c.bf16 %v1617, %v1617
    %v1689 = vsel %vm156, %v1687, 0
    %1691 = vmatprep.subr.bf16.mxu0 %v585
    %1692 = vmatpush1.bf16.msra.mxu0 %v584
    %1693 = vmatprep.subr.bf16.mxu0 %v587
    %1694 = vmatpush1.bf16.msra.mxu0 %v586
    %1695 = vmatprep.subr.bf16.mxu0 %v589
    %1696 = vmatpush1.bf16.msra.mxu0 %v588
    %1697 = vmatprep.subr.bf16.mxu0 %v591
    %1698 = vmatpush1.bf16.msra.mxu0 %v590
    %1699 = vmatprep.subr.bf16.mxu0 0
    %1700 = vmatpush1.bf16.msra.mxu0 0
    %1701 = vmatprep.subr.bf16.mxu0 0
    %1702 = vmatpush1.bf16.msra.mxu0 0
    %1703 = vmatprep.subr.bf16.mxu0 0
    %1704 = vmatpush1.bf16.msra.mxu0 0
    %1705 = vmatprep.subr.bf16.mxu0 0
    %1706 = vmatpush1.bf16.msra.mxu0 0
    %1707 = vmatprep.subr.bf16.mxu0 0
    %1708 = vmatpush1.bf16.msra.mxu0 0
    %1709 = vmatprep.subr.bf16.mxu0 0
    %1710 = vmatpush1.bf16.msra.mxu0 0
    %1711 = vmatprep.subr.bf16.mxu0 0
    %1712 = vmatpush1.bf16.msra.mxu0 0
    %1713 = vmatprep.subr.bf16.mxu0 0
    %1714 = vmatpush1.bf16.msra.mxu0 0
    %1715 = vmatprep.subr.bf16.mxu0 0
    %1716 = vmatpush1.bf16.msra.mxu0 0
    %1717 = vmatprep.subr.bf16.mxu0 0
    %1718 = vmatpush1.bf16.msra.mxu0 0
    %1719 = vmatprep.subr.bf16.mxu0 0
    %1720 = vmatpush1.bf16.msra.mxu0 0
    %1721 = vmatprep.subr.bf16.mxu0 0
    %1722 = vmatpush1.bf16.msra.mxu0 0
    %1723 = vmatprep.mubr.bf16.mxu0 0
    %1724 = vmatmul.mubr.bf16.gmra.mrb[0].mxu0 %v1689
    %v1725 = vpop.f32.mrb[0].mxu0
    %v1726 = vadd.f32 0.0, %v1725
    %v1727 = vpop.f32.mrb[0].mxu0
    %v1728 = vadd.f32 0.0, %v1727
    %v1729 = vpop.f32.mrb[0].mxu0
    %v1730 = vpop.f32.mrb[0].mxu0
    %1731 = vdwg.mxu0
    %v1732 = vadd.f32 %v1685, %v1726
    %v1733 = vadd.f32 %v1686, %v1728
    %vm1734 = vcmp.le.s32.totalorder %v592, 5
    %vm1735 = vcmp.gt.s32.totalorder %v592, 5
    %v1736 = vsel %vm1735, 1, 0
    %1737 = vrot.lane.b32.xlu0 %v1736, 127
    %v1738 = vpop.permute.xlu0 %1737
    %vm1739 = vcmp.ne.s32.totalorder %v1738, 0
    %vm1740 = vmand %vm1734, %vm1739
    %v1741 = vxor.u32 %v1683, 2147483648
    %v1742 = vmul.f32 %v1741, 1.442695
    %v1743 = vpow.pop %v1742
    %v1744 = vadd.f32 %v1743, 1.0
    %v1745 = vrcp.pop %v1744
    %v1746 = vmul.f32 1.0, %v1745
    %v1747 = vtanh.pop %v1684
    %v1748 = vxor.u32 %v1684, 2147483648
    %v1749 = vmul.f32 %v1748, 1.442695
    %v1750 = vpow.pop %v1749
    %v1751 = vadd.f32 %v1750, 1.0
    %v1752 = vrcp.pop %v1751
    %v1753 = vmul.f32 1.0, %v1752
    %v1755 = vrot.slane %v1570, 4
    %v1757 = vmul.f32 %v1746, %v1755
    %v1758 = vmul.f32 %v1746, %v1747
    %1760 = vrot.lane.b32.xlu0 %v1758, 64
    %v1761 = vpop.permute.xlu0 %1760
    %v1763 = vadd.f32 %v1757, %v1761
    %v1764 = vtanh.pop %v1763
    %v1765 = vmul.f32 %v1753, %v1764
    %v1766 = vsel %vm1740, 1, 0
    %1767 = vset.pattern.permute.xlu0 0
    %1768 = vperm.xlu0 %1767, %v1766
    %v1769 = vpop.permute.xlu0 %1768
    %vm1770 = vcmp.eq.s32.totalorder %v1769, 1
    %v1772 = vrot.slane %v1765, 4
    %1773 = vrot.lane.b32.xlu0 %v1772, 64
    %v1774 = vpop.permute.xlu0 %1773
    %1777 = vrot.lane.b32.xlu0 %v1569, 64
    %v1778 = vpop.permute.xlu0 %1777
    %v1780 = vsel %vm1770, %v1774, %v1778
    %v1782 = vrot.slane %v1763, 4
    %1783 = vrot.lane.b32.xlu0 %v1782, 64
    %v1784 = vpop.permute.xlu0 %1783
    %1786 = vrot.lane.b32.xlu0 %v1570, 64
    %v1787 = vpop.permute.xlu0 %1786
    %v1789 = vsel %vm1770, %v1784, %v1787
    %vm1790 = vcmp.le.s32.totalorder %v592, 10
    %vm1791 = vcmp.gt.s32.totalorder %v592, 10
    %v1792 = vsel %vm1791, 1, 0
    %1793 = vrot.lane.b32.xlu0 %v1792, 127
    %v1794 = vpop.permute.xlu0 %1793
    %vm1795 = vcmp.ne.s32.totalorder %v1794, 0
    %vm1796 = vmand %vm1790, %vm1795
    %v1797 = vxor.u32 %v1732, 2147483648
    %v1798 = vmul.f32 %v1797, 1.442695
    %v1799 = vpow.pop %v1798
    %v1800 = vadd.f32 %v1799, 1.0
    %v1801 = vrcp.pop %v1800
    %v1802 = vmul.f32 1.0, %v1801
    %v1803 = vtanh.pop %v1733
    %v1804 = vxor.u32 %v1733, 2147483648
    %v1805 = vmul.f32 %v1804, 1.442695
    %v1806 = vpow.pop %v1805
    %v1807 = vadd.f32 %v1806, 1.0
    %v1808 = vrcp.pop %v1807
    %v1809 = vmul.f32 1.0, %v1808
    %1811 = vrot.lane.b32.xlu0 %v1626, 64
    %v1812 = vpop.permute.xlu0 %1811
    %v1814 = vmul.f32 %v1802, %v1812
    %v1815 = vmul.f32 %v1802, %v1803
    %1817 = vrot.lane.b32.xlu0 %v1815, 64
    %v1818 = vpop.permute.xlu0 %1817
    %v1820 = vadd.f32 %v1814, %v1818
    %v1821 = vtanh.pop %v1820
    %v1822 = vmul.f32 %v1809, %v1821
    %v1823 = vsel %vm1796, 1, 0
    %1824 = vset.pattern.permute.xlu0 0
    %1825 = vperm.xlu0 %1824, %v1823
    %v1826 = vpop.permute.xlu0 %1825
    %vm1827 = vcmp.eq.s32.totalorder %v1826, 1
    %1829 = vrot.lane.b32.xlu0 %v1617, 64
    %v1830 = vpop.permute.xlu0 %1829
    %v1832 = vsel %vm1827, %v1822, %v1830
    %v1833 = vsel %vm1827, %v1820, %v1812
    %v1834 = vld [vmem:[#allocation2 + $0x30] sm:$0xf]
    %v1835 = vld [vmem:[#allocation2 + $0x38] sm:$0xf]
    %v1836 = vpack.c.bf16 %v1780, %v1780
    %v1838 = vsel %vm156, %v1836, 0
    %1840 = vmatprep.subr.bf16.mxu0 %v561
    %1841 = vmatpush1.bf16.msra.mxu0 %v560
    %1842 = vmatprep.subr.bf16.mxu0 %v563
    %1843 = vmatpush1.bf16.msra.mxu0 %v562
    %1844 = vmatprep.subr.bf16.mxu0 %v565
    %1845 = vmatpush1.bf16.msra.mxu0 %v564
    %1846 = vmatprep.subr.bf16.mxu0 %v567
    %1847 = vmatpush1.bf16.msra.mxu0 %v566
    %1848 = vmatprep.subr.bf16.mxu0 0
    %1849 = vmatpush1.bf16.msra.mxu0 0
    %1850 = vmatprep.subr.bf16.mxu0 0
    %1851 = vmatpush1.bf16.msra.mxu0 0
    %1852 = vmatprep.subr.bf16.mxu0 0
    %1853 = vmatpush1.bf16.msra.mxu0 0
    %1854 = vmatprep.subr.bf16.mxu0 0
    %1855 = vmatpush1.bf16.msra.mxu0 0
    %1856 = vmatprep.subr.bf16.mxu0 0
    %1857 = vmatpush1.bf16.msra.mxu0 0
    %1858 = vmatprep.subr.bf16.mxu0 0
    %1859 = vmatpush1.bf16.msra.mxu0 0
    %1860 = vmatprep.subr.bf16.mxu0 0
    %1861 = vmatpush1.bf16.msra.mxu0 0
    %1862 = vmatprep.subr.bf16.mxu0 0
    %1863 = vmatpush1.bf16.msra.mxu0 0
    %1864 = vmatprep.subr.bf16.mxu0 0
    %1865 = vmatpush1.bf16.msra.mxu0 0
    %1866 = vmatprep.subr.bf16.mxu0 0
    %1867 = vmatpush1.bf16.msra.mxu0 0
    %1868 = vmatprep.subr.bf16.mxu0 0
    %1869 = vmatpush1.bf16.msra.mxu0 0
    %1870 = vmatprep.subr.bf16.mxu0 0
    %1871 = vmatpush1.bf16.msra.mxu0 0
    %1872 = vmatprep.mubr.bf16.mxu0 0
    %1873 = vmatmul.mubr.bf16.gmra.mrb[0].mxu0 %v1838
    %v1874 = vpop.f32.mrb[0].mxu0
    %v1875 = vadd.f32 0.0, %v1874
    %v1876 = vpop.f32.mrb[0].mxu0
    %v1877 = vadd.f32 0.0, %v1876
    %v1878 = vpop.f32.mrb[0].mxu0
    %v1879 = vpop.f32.mrb[0].mxu0
    %1880 = vdwg.mxu0
    %v1881 = vadd.f32 %v1834, %v1875
    %v1882 = vadd.f32 %v1835, %v1877
    %v1883 = vld [vmem:[#allocation3 + $0x40] sm:$0xf0]
    %v1884 = vld [vmem:[#allocation3 + $0x48] sm:$0xf0]
    %v1885 = vpack.c.bf16 %v1832, %v1832
    %1887 = vrot.lane.b32.xlu0 %v1885, 64
    %v1888 = vpop.permute.xlu0 %1887
    %v1890 = vsel %vm156, %v1888, 0
    %1892 = vmatprep.subr.bf16.mxu0 %v585
    %1893 = vmatpush1.bf16.msra.mxu0 %v584
    %1894 = vmatprep.subr.bf16.mxu0 %v587
    %1895 = vmatpush1.bf16.msra.mxu0 %v586
    %1896 = vmatprep.subr.bf16.mxu0 %v589
    %1897 = vmatpush1.bf16.msra.mxu0 %v588
    %1898 = vmatprep.subr.bf16.mxu0 %v591
    %1899 = vmatpush1.bf16.msra.mxu0 %v590
    %1900 = vmatprep.subr.bf16.mxu0 0
    %1901 = vmatpush1.bf16.msra.mxu0 0
    %1902 = vmatprep.subr.bf16.mxu0 0
    %1903 = vmatpush1.bf16.msra.mxu0 0
    %1904 = vmatprep.subr.bf16.mxu0 0
    %1905 = vmatpush1.bf16.msra.mxu0 0
    %1906 = vmatprep.subr.bf16.mxu0 0
    %1907 = vmatpush1.bf16.msra.mxu0 0
    %1908 = vmatprep.subr.bf16.mxu0 0
    %1909 = vmatpush1.bf16.msra.mxu0 0
    %1910 = vmatprep.subr.bf16.mxu0 0
    %1911 = vmatpush1.bf16.msra.mxu0 0
    %1912 = vmatprep.subr.bf16.mxu0 0
    %1913 = vmatpush1.bf16.msra.mxu0 0
    %1914 = vmatprep.subr.bf16.mxu0 0
    %1915 = vmatpush1.bf16.msra.mxu0 0
    %1916 = vmatprep.subr.bf16.mxu0 0
    %1917 = vmatpush1.bf16.msra.mxu0 0
    %1918 = vmatprep.subr.bf16.mxu0 0
    %1919 = vmatpush1.bf16.msra.mxu0 0
    %1920 = vmatprep.subr.bf16.mxu0 0
    %1921 = vmatpush1.bf16.msra.mxu0 0
    %1922 = vmatprep.subr.bf16.mxu0 0
    %1923 = vmatpush1.bf16.msra.mxu0 0
    %1924 = vmatprep.mubr.bf16.mxu0 0
    %1925 = vmatmul.mubr.bf16.gmra.mrb[0].mxu0 %v1890
    %v1926 = vpop.f32.mrb[0].mxu0
    %v1927 = vadd.f32 0.0, %v1926
    %v1928 = vpop.f32.mrb[0].mxu0
    %v1929 = vadd.f32 0.0, %v1928
    %v1930 = vpop.f32.mrb[0].mxu0
    %v1931 = vpop.f32.mrb[0].mxu0
    %1932 = vdwg.mxu0
    %v1935 = vrot.slane %v1927, 4
    %v1936 = vrot.slane %v1929, 4
    %v1939 = vadd.f32 %v1883, %v1935
    %v1940 = vadd.f32 %v1884, %v1936
    %vm1941 = vcmp.le.s32.totalorder %v592, 6
    %vm1942 = vcmp.gt.s32.totalorder %v592, 6
    %v1943 = vsel %vm1942, 1, 0
    %1944 = vrot.lane.b32.xlu0 %v1943, 127
    %v1945 = vpop.permute.xlu0 %1944
    %vm1946 = vcmp.ne.s32.totalorder %v1945, 0
    %vm1947 = vmand %vm1941, %vm1946
    %v1948 = vxor.u32 %v1881, 2147483648
    %v1949 = vmul.f32 %v1948, 1.442695
    %v1950 = vpow.pop %v1949
    %v1951 = vadd.f32 %v1950, 1.0
    %v1952 = vrcp.pop %v1951
    %v1953 = vmul.f32 1.0, %v1952
    %v1954 = vtanh.pop %v1882
    %v1955 = vxor.u32 %v1882, 2147483648
    %v1956 = vmul.f32 %v1955, 1.442695
    %v1957 = vpow.pop %v1956
    %v1958 = vadd.f32 %v1957, 1.0
    %v1959 = vrcp.pop %v1958
    %v1960 = vmul.f32 1.0, %v1959
    %1962 = vrot.lane.b32.xlu0 %v1789, 64
    %v1963 = vpop.permute.xlu0 %1962
    %v1965 = vmul.f32 %v1953, %v1963
    %v1966 = vmul.f32 %v1953, %v1954
    %1968 = vrot.lane.b32.xlu0 %v1966, 64
    %v1969 = vpop.permute.xlu0 %1968
    %v1971 = vadd.f32 %v1965, %v1969
    %v1972 = vtanh.pop %v1971
    %v1973 = vmul.f32 %v1960, %v1972
    %v1974 = vsel %vm1947, 1, 0
    %1975 = vset.pattern.permute.xlu0 0
    %1976 = vperm.xlu0 %1975, %v1974
    %v1977 = vpop.permute.xlu0 %1976
    %vm1978 = vcmp.eq.s32.totalorder %v1977, 1
    %1980 = vrot.lane.b32.xlu0 %v1780, 64
    %v1981 = vpop.permute.xlu0 %1980
    %v1983 = vsel %vm1978, %v1973, %v1981
    %v1984 = vsel %vm1978, %v1971, %v1963
    %vm1985 = vcmp.le.s32.totalorder %v592, 9
    %vm1986 = vcmp.gt.s32.totalorder %v592, 9
    %v1987 = vsel %vm1986, 1, 0
    %1988 = vrot.lane.b32.xlu0 %v1987, 127
    %v1989 = vpop.permute.xlu0 %1988
    %vm1990 = vcmp.ne.s32.totalorder %v1989, 0
    %vm1991 = vmand %vm1985, %vm1990
    %v1992 = vxor.u32 %v1939, 2147483648
    %v1993 = vmul.f32 %v1992, 1.442695
    %v1994 = vpow.pop %v1993
    %v1995 = vadd.f32 %v1994, 1.0
    %v1996 = vrcp.pop %v1995
    %v1997 = vmul.f32 1.0, %v1996
    %v1998 = vtanh.pop %v1940
    %v1999 = vxor.u32 %v1940, 2147483648
    %v2000 = vmul.f32 %v1999, 1.442695
    %v2001 = vpow.pop %v2000
    %v2002 = vadd.f32 %v2001, 1.0
    %v2003 = vrcp.pop %v2002
    %v2004 = vmul.f32 1.0, %v2003
    %v2006 = vrot.slane %v1833, 4
    %v2008 = vmul.f32 %v1997, %v2006
    %v2009 = vmul.f32 %v1997, %v1998
    %2011 = vrot.lane.b32.xlu0 %v2009, 64
    %v2012 = vpop.permute.xlu0 %2011
    %v2014 = vadd.f32 %v2008, %v2012
    %v2015 = vtanh.pop %v2014
    %v2016 = vmul.f32 %v2004, %v2015
    %v2017 = vsel %vm1991, 1, 0
    %2018 = vset.pattern.permute.xlu0 0
    %2019 = vperm.xlu0 %2018, %v2017
    %v2020 = vpop.permute.xlu0 %2019
    %vm2021 = vcmp.eq.s32.totalorder %v2020, 1
    %v2023 = vrot.slane %v2016, 4
    %2024 = vrot.lane.b32.xlu0 %v2023, 64
    %v2025 = vpop.permute.xlu0 %2024
    %2028 = vrot.lane.b32.xlu0 %v1832, 64
    %v2029 = vpop.permute.xlu0 %2028
    %v2031 = vsel %vm2021, %v2025, %v2029
    %v2033 = vrot.slane %v2014, 4
    %2034 = vrot.lane.b32.xlu0 %v2033, 64
    %v2035 = vpop.permute.xlu0 %2034
    %2037 = vrot.lane.b32.xlu0 %v1833, 64
    %v2038 = vpop.permute.xlu0 %2037
    %v2040 = vsel %vm2021, %v2035, %v2038
    %v2041 = vld [vmem:[#allocation2 + $0x30] sm:$0xf0]
    %v2042 = vld [vmem:[#allocation2 + $0x38] sm:$0xf0]
    %v2043 = vpack.c.bf16 %v1983, %v1983
    %2045 = vrot.lane.b32.xlu0 %v2043, 64
    %v2046 = vpop.permute.xlu0 %2045
    %v2048 = vsel %vm156, %v2046, 0
    %2050 = vmatprep.subr.bf16.mxu0 %v561
    %2051 = vmatpush1.bf16.msra.mxu0 %v560
    %2052 = vmatprep.subr.bf16.mxu0 %v563
    %2053 = vmatpush1.bf16.msra.mxu0 %v562
    %2054 = vmatprep.subr.bf16.mxu0 %v565
    %2055 = vmatpush1.bf16.msra.mxu0 %v564
    %2056 = vmatprep.subr.bf16.mxu0 %v567
    %2057 = vmatpush1.bf16.msra.mxu0 %v566
    %2058 = vmatprep.subr.bf16.mxu0 0
    %2059 = vmatpush1.bf16.msra.mxu0 0
    %2060 = vmatprep.subr.bf16.mxu0 0
    %2061 = vmatpush1.bf16.msra.mxu0 0
    %2062 = vmatprep.subr.bf16.mxu0 0
    %2063 = vmatpush1.bf16.msra.mxu0 0
    %2064 = vmatprep.subr.bf16.mxu0 0
    %2065 = vmatpush1.bf16.msra.mxu0 0
    %2066 = vmatprep.subr.bf16.mxu0 0
    %2067 = vmatpush1.bf16.msra.mxu0 0
    %2068 = vmatprep.subr.bf16.mxu0 0
    %2069 = vmatpush1.bf16.msra.mxu0 0
    %2070 = vmatprep.subr.bf16.mxu0 0
    %2071 = vmatpush1.bf16.msra.mxu0 0
    %2072 = vmatprep.subr.bf16.mxu0 0
    %2073 = vmatpush1.bf16.msra.mxu0 0
    %2074 = vmatprep.subr.bf16.mxu0 0
    %2075 = vmatpush1.bf16.msra.mxu0 0
    %2076 = vmatprep.subr.bf16.mxu0 0
    %2077 = vmatpush1.bf16.msra.mxu0 0
    %2078 = vmatprep.subr.bf16.mxu0 0
    %2079 = vmatpush1.bf16.msra.mxu0 0
    %2080 = vmatprep.subr.bf16.mxu0 0
    %2081 = vmatpush1.bf16.msra.mxu0 0
    %2082 = vmatprep.mubr.bf16.mxu0 0
    %2083 = vmatmul.mubr.bf16.gmra.mrb[0].mxu0 %v2048
    %v2084 = vpop.f32.mrb[0].mxu0
    %v2085 = vadd.f32 0.0, %v2084
    %v2086 = vpop.f32.mrb[0].mxu0
    %v2087 = vadd.f32 0.0, %v2086
    %v2088 = vpop.f32.mrb[0].mxu0
    %v2089 = vpop.f32.mrb[0].mxu0
    %2090 = vdwg.mxu0
    %v2093 = vrot.slane %v2085, 4
    %v2094 = vrot.slane %v2087, 4
    %v2097 = vadd.f32 %v2041, %v2093
    %v2098 = vadd.f32 %v2042, %v2094
    %v2099 = vld [vmem:[#allocation3 + $0x40] sm:$0xf]
    %v2100 = vld [vmem:[#allocation3 + $0x48] sm:$0xf]
    %v2101 = vpack.c.bf16 %v2031, %v2031
    %v2103 = vsel %vm156, %v2101, 0
    %2105 = vmatprep.subr.bf16.mxu0 %v585
    %2106 = vmatpush1.bf16.msra.mxu0 %v584
    %2107 = vmatprep.subr.bf16.mxu0 %v587
    %2108 = vmatpush1.bf16.msra.mxu0 %v586
    %2109 = vmatprep.subr.bf16.mxu0 %v589
    %2110 = vmatpush1.bf16.msra.mxu0 %v588
    %2111 = vmatprep.subr.bf16.mxu0 %v591
    %2112 = vmatpush1.bf16.msra.mxu0 %v590
    %2113 = vmatprep.subr.bf16.mxu0 0
    %2114 = vmatpush1.bf16.msra.mxu0 0
    %2115 = vmatprep.subr.bf16.mxu0 0
    %2116 = vmatpush1.bf16.msra.mxu0 0
    %2117 = vmatprep.subr.bf16.mxu0 0
    %2118 = vmatpush1.bf16.msra.mxu0 0
    %2119 = vmatprep.subr.bf16.mxu0 0
    %2120 = vmatpush1.bf16.msra.mxu0 0
    %2121 = vmatprep.subr.bf16.mxu0 0
    %2122 = vmatpush1.bf16.msra.mxu0 0
    %2123 = vmatprep.subr.bf16.mxu0 0
    %2124 = vmatpush1.bf16.msra.mxu0 0
    %2125 = vmatprep.subr.bf16.mxu0 0
    %2126 = vmatpush1.bf16.msra.mxu0 0
    %2127 = vmatprep.subr.bf16.mxu0 0
    %2128 = vmatpush1.bf16.msra.mxu0 0
    %2129 = vmatprep.subr.bf16.mxu0 0
    %2130 = vmatpush1.bf16.msra.mxu0 0
    %2131 = vmatprep.subr.bf16.mxu0 0
    %2132 = vmatpush1.bf16.msra.mxu0 0
    %2133 = vmatprep.subr.bf16.mxu0 0
    %2134 = vmatpush1.bf16.msra.mxu0 0
    %2135 = vmatprep.subr.bf16.mxu0 0
    %2136 = vmatpush1.bf16.msra.mxu0 0
    %2137 = vmatprep.mubr.bf16.mxu0 0
    %2138 = vmatmul.mubr.bf16.gmra.mrb[0].mxu0 %v2103
    %v2139 = vpop.f32.mrb[0].mxu0
    %v2140 = vadd.f32 0.0, %v2139
    %v2141 = vpop.f32.mrb[0].mxu0
    %v2142 = vadd.f32 0.0, %v2141
    %v2143 = vpop.f32.mrb[0].mxu0
    %v2144 = vpop.f32.mrb[0].mxu0
    %2145 = vdwg.mxu0
    %v2146 = vadd.f32 %v2099, %v2140
    %v2147 = vadd.f32 %v2100, %v2142
    %vm2148 = vcmp.le.s32.totalorder %v592, 7
    %vm2149 = vcmp.gt.s32.totalorder %v592, 7
    %v2150 = vsel %vm2149, 1, 0
    %2151 = vrot.lane.b32.xlu0 %v2150, 127
    %v2152 = vpop.permute.xlu0 %2151
    %vm2153 = vcmp.ne.s32.totalorder %v2152, 0
    %vm2154 = vmand %vm2148, %vm2153
    %v2155 = vxor.u32 %v2097, 2147483648
    %v2156 = vmul.f32 %v2155, 1.442695
    %v2157 = vpow.pop %v2156
    %v2158 = vadd.f32 %v2157, 1.0
    %v2159 = vrcp.pop %v2158
    %v2160 = vmul.f32 1.0, %v2159
    %v2161 = vtanh.pop %v2098
    %v2162 = vxor.u32 %v2098, 2147483648
    %v2163 = vmul.f32 %v2162, 1.442695
    %v2164 = vpow.pop %v2163
    %v2165 = vadd.f32 %v2164, 1.0
    %v2166 = vrcp.pop %v2165
    %v2167 = vmul.f32 1.0, %v2166
    %v2169 = vrot.slane %v1984, 4
    %v2171 = vmul.f32 %v2160, %v2169
    %v2172 = vmul.f32 %v2160, %v2161
    %2174 = vrot.lane.b32.xlu0 %v2172, 64
    %v2175 = vpop.permute.xlu0 %2174
    %v2177 = vadd.f32 %v2171, %v2175
    %v2178 = vtanh.pop %v2177
    %v2179 = vmul.f32 %v2167, %v2178
    %v2180 = vsel %vm2154, 1, 0
    %2181 = vset.pattern.permute.xlu0 0
    %2182 = vperm.xlu0 %2181, %v2180
    %v2183 = vpop.permute.xlu0 %2182
    %vm2184 = vcmp.eq.s32.totalorder %v2183, 1
    %v2186 = vrot.slane %v2179, 4
    %2187 = vrot.lane.b32.xlu0 %v2186, 64
    %v2188 = vpop.permute.xlu0 %2187
    %2191 = vrot.lane.b32.xlu0 %v1983, 64
    %v2192 = vpop.permute.xlu0 %2191
    %v2194 = vsel %vm2184, %v2188, %v2192
    %v2196 = vrot.slane %v2177, 4
    %2197 = vrot.lane.b32.xlu0 %v2196, 64
    %v2198 = vpop.permute.xlu0 %2197
    %2200 = vrot.lane.b32.xlu0 %v1984, 64
    %v2201 = vpop.permute.xlu0 %2200
    %v2203 = vsel %vm2184, %v2198, %v2201
    %vm2204 = vcmp.le.s32.totalorder %v592, 8
    %vm2205 = vcmp.gt.s32.totalorder %v592, 8
    %v2206 = vsel %vm2205, 1, 0
    %2207 = vrot.lane.b32.xlu0 %v2206, 127
    %v2208 = vpop.permute.xlu0 %2207
    %vm2209 = vcmp.ne.s32.totalorder %v2208, 0
    %vm2210 = vmand %vm2204, %vm2209
    %v2211 = vxor.u32 %v2146, 2147483648
    %v2212 = vmul.f32 %v2211, 1.442695
    %v2213 = vpow.pop %v2212
    %v2214 = vadd.f32 %v2213, 1.0
    %v2215 = vrcp.pop %v2214
    %v2216 = vmul.f32 1.0, %v2215
    %v2217 = vtanh.pop %v2147
    %v2218 = vxor.u32 %v2147, 2147483648
    %v2219 = vmul.f32 %v2218, 1.442695
    %v2220 = vpow.pop %v2219
    %v2221 = vadd.f32 %v2220, 1.0
    %v2222 = vrcp.pop %v2221
    %v2223 = vmul.f32 1.0, %v2222
    %2225 = vrot.lane.b32.xlu0 %v2040, 64
    %v2226 = vpop.permute.xlu0 %2225
    %v2228 = vmul.f32 %v2216, %v2226
    %v2229 = vmul.f32 %v2216, %v2217
    %2231 = vrot.lane.b32.xlu0 %v2229, 64
    %v2232 = vpop.permute.xlu0 %2231
    %v2234 = vadd.f32 %v2228, %v2232
    %v2235 = vtanh.pop %v2234
    %v2236 = vmul.f32 %v2223, %v2235
    %v2237 = vsel %vm2210, 1, 0
    %2238 = vset.pattern.permute.xlu0 0
    %2239 = vperm.xlu0 %2238, %v2237
    %v2240 = vpop.permute.xlu0 %2239
    %vm2241 = vcmp.eq.s32.totalorder %v2240, 1
    %2243 = vrot.lane.b32.xlu0 %v2031, 64
    %v2244 = vpop.permute.xlu0 %2243
    %v2246 = vsel %vm2241, %v2236, %v2244
    %v2247 = vsel %vm2241, %v2234, %v2226
    %v2248 = vld [vmem:[#allocation2 + $0x40] sm:$0xf]
    %v2249 = vld [vmem:[#allocation2 + $0x48] sm:$0xf]
    %v2250 = vpack.c.bf16 %v2194, %v2194
    %v2252 = vsel %vm156, %v2250, 0
    %2254 = vmatprep.subr.bf16.mxu0 %v561
    %2255 = vmatpush1.bf16.msra.mxu0 %v560
    %2256 = vmatprep.subr.bf16.mxu0 %v563
    %2257 = vmatpush1.bf16.msra.mxu0 %v562
    %2258 = vmatprep.subr.bf16.mxu0 %v565
    %2259 = vmatpush1.bf16.msra.mxu0 %v564
    %2260 = vmatprep.subr.bf16.mxu0 %v567
    %2261 = vmatpush1.bf16.msra.mxu0 %v566
    %2262 = vmatprep.subr.bf16.mxu0 0
    %2263 = vmatpush1.bf16.msra.mxu0 0
    %2264 = vmatprep.subr.bf16.mxu0 0
    %2265 = vmatpush1.bf16.msra.mxu0 0
    %2266 = vmatprep.subr.bf16.mxu0 0
    %2267 = vmatpush1.bf16.msra.mxu0 0
    %2268 = vmatprep.subr.bf16.mxu0 0
    %2269 = vmatpush1.bf16.msra.mxu0 0
    %2270 = vmatprep.subr.bf16.mxu0 0
    %2271 = vmatpush1.bf16.msra.mxu0 0
    %2272 = vmatprep.subr.bf16.mxu0 0
    %2273 = vmatpush1.bf16.msra.mxu0 0
    %2274 = vmatprep.subr.bf16.mxu0 0
    %2275 = vmatpush1.bf16.msra.mxu0 0
    %2276 = vmatprep.subr.bf16.mxu0 0
    %2277 = vmatpush1.bf16.msra.mxu0 0
    %2278 = vmatprep.subr.bf16.mxu0 0
    %2279 = vmatpush1.bf16.msra.mxu0 0
    %2280 = vmatprep.subr.bf16.mxu0 0
    %2281 = vmatpush1.bf16.msra.mxu0 0
    %2282 = vmatprep.subr.bf16.mxu0 0
    %2283 = vmatpush1.bf16.msra.mxu0 0
    %2284 = vmatprep.subr.bf16.mxu0 0
    %2285 = vmatpush1.bf16.msra.mxu0 0
    %2286 = vmatprep.mubr.bf16.mxu0 0
    %2287 = vmatmul.mubr.bf16.gmra.mrb[0].mxu0 %v2252
    %v2288 = vpop.f32.mrb[0].mxu0
    %v2289 = vadd.f32 0.0, %v2288
    %v2290 = vpop.f32.mrb[0].mxu0
    %v2291 = vadd.f32 0.0, %v2290
    %v2292 = vpop.f32.mrb[0].mxu0
    %v2293 = vpop.f32.mrb[0].mxu0
    %2294 = vdwg.mxu0
    %v2295 = vadd.f32 %v2248, %v2289
    %v2296 = vadd.f32 %v2249, %v2291
    %v2297 = vld [vmem:[#allocation3 + $0x30] sm:$0xf0]
    %v2298 = vld [vmem:[#allocation3 + $0x38] sm:$0xf0]
    %v2299 = vpack.c.bf16 %v2246, %v2246
    %2301 = vrot.lane.b32.xlu0 %v2299, 64
    %v2302 = vpop.permute.xlu0 %2301
    %v2304 = vsel %vm156, %v2302, 0
    %2306 = vmatprep.subr.bf16.mxu0 %v585
    %2307 = vmatpush1.bf16.msra.mxu0 %v584
    %2308 = vmatprep.subr.bf16.mxu0 %v587
    %2309 = vmatpush1.bf16.msra.mxu0 %v586
    %2310 = vmatprep.subr.bf16.mxu0 %v589
    %2311 = vmatpush1.bf16.msra.mxu0 %v588
    %2312 = vmatprep.subr.bf16.mxu0 %v591
    %2313 = vmatpush1.bf16.msra.mxu0 %v590
    %2314 = vmatprep.subr.bf16.mxu0 0
    %2315 = vmatpush1.bf16.msra.mxu0 0
    %2316 = vmatprep.subr.bf16.mxu0 0
    %2317 = vmatpush1.bf16.msra.mxu0 0
    %2318 = vmatprep.subr.bf16.mxu0 0
    %2319 = vmatpush1.bf16.msra.mxu0 0
    %2320 = vmatprep.subr.bf16.mxu0 0
    %2321 = vmatpush1.bf16.msra.mxu0 0
    %2322 = vmatprep.subr.bf16.mxu0 0
    %2323 = vmatpush1.bf16.msra.mxu0 0
    %2324 = vmatprep.subr.bf16.mxu0 0
    %2325 = vmatpush1.bf16.msra.mxu0 0
    %2326 = vmatprep.subr.bf16.mxu0 0
    %2327 = vmatpush1.bf16.msra.mxu0 0
    %2328 = vmatprep.subr.bf16.mxu0 0
    %2329 = vmatpush1.bf16.msra.mxu0 0
    %2330 = vmatprep.subr.bf16.mxu0 0
    %2331 = vmatpush1.bf16.msra.mxu0 0
    %2332 = vmatprep.subr.bf16.mxu0 0
    %2333 = vmatpush1.bf16.msra.mxu0 0
    %2334 = vmatprep.subr.bf16.mxu0 0
    %2335 = vmatpush1.bf16.msra.mxu0 0
    %2336 = vmatprep.subr.bf16.mxu0 0
    %2337 = vmatpush1.bf16.msra.mxu0 0
    %2338 = vmatprep.mubr.bf16.mxu0 0
    %2339 = vmatmul.mubr.bf16.gmra.mrb[0].mxu0 %v2304
    %v2340 = vpop.f32.mrb[0].mxu0
    %v2341 = vadd.f32 0.0, %v2340
    %v2342 = vpop.f32.mrb[0].mxu0
    %v2343 = vadd.f32 0.0, %v2342
    %v2344 = vpop.f32.mrb[0].mxu0
    %v2345 = vpop.f32.mrb[0].mxu0
    %2346 = vdwg.mxu0
    %v2349 = vrot.slane %v2341, 4
    %v2350 = vrot.slane %v2343, 4
    %v2353 = vadd.f32 %v2297, %v2349
    %v2354 = vadd.f32 %v2298, %v2350
    %v2355 = vxor.u32 %v2295, 2147483648
    %v2356 = vmul.f32 %v2355, 1.442695
    %v2357 = vpow.pop %v2356
    %v2358 = vadd.f32 %v2357, 1.0
    %v2359 = vrcp.pop %v2358
    %v2360 = vmul.f32 1.0, %v2359
    %v2361 = vtanh.pop %v2296
    %v2362 = vxor.u32 %v2296, 2147483648
    %v2363 = vmul.f32 %v2362, 1.442695
    %v2364 = vpow.pop %v2363
    %v2365 = vadd.f32 %v2364, 1.0
    %v2366 = vrcp.pop %v2365
    %v2367 = vmul.f32 1.0, %v2366
    %2369 = vrot.lane.b32.xlu0 %v2203, 64
    %v2370 = vpop.permute.xlu0 %2369
    %v2372 = vmul.f32 %v2360, %v2370
    %v2373 = vmul.f32 %v2360, %v2361
    %2375 = vrot.lane.b32.xlu0 %v2373, 64
    %v2376 = vpop.permute.xlu0 %2375
    %v2378 = vadd.f32 %v2372, %v2376
    %v2379 = vtanh.pop %v2378
    %v2380 = vmul.f32 %v2367, %v2379
    %2382 = vrot.lane.b32.xlu0 %v2194, 64
    %v2383 = vpop.permute.xlu0 %2382
    %v2385 = vsel %vm2241, %v2380, %v2383
    %v2386 = vsel %vm2241, %v2378, %v2370
    %v2387 = vxor.u32 %v2353, 2147483648
    %v2388 = vmul.f32 %v2387, 1.442695
    %v2389 = vpow.pop %v2388
    %v2390 = vadd.f32 %v2389, 1.0
    %v2391 = vrcp.pop %v2390
    %v2392 = vmul.f32 1.0, %v2391
    %v2393 = vtanh.pop %v2354
    %v2394 = vxor.u32 %v2354, 2147483648
    %v2395 = vmul.f32 %v2394, 1.442695
    %v2396 = vpow.pop %v2395
    %v2397 = vadd.f32 %v2396, 1.0
    %v2398 = vrcp.pop %v2397
    %v2399 = vmul.f32 1.0, %v2398
    %v2401 = vrot.slane %v2247, 4
    %v2403 = vmul.f32 %v2392, %v2401
    %v2404 = vmul.f32 %v2392, %v2393
    %2406 = vrot.lane.b32.xlu0 %v2404, 64
    %v2407 = vpop.permute.xlu0 %2406
    %v2409 = vadd.f32 %v2403, %v2407
    %v2410 = vtanh.pop %v2409
    %v2411 = vmul.f32 %v2399, %v2410
    %v2413 = vrot.slane %v2411, 4
    %2414 = vrot.lane.b32.xlu0 %v2413, 64
    %v2415 = vpop.permute.xlu0 %2414
    %2418 = vrot.lane.b32.xlu0 %v2246, 64
    %v2419 = vpop.permute.xlu0 %2418
    %v2421 = vsel %vm2184, %v2415, %v2419
    %v2423 = vrot.slane %v2409, 4
    %2424 = vrot.lane.b32.xlu0 %v2423, 64
    %v2425 = vpop.permute.xlu0 %2424
    %2427 = vrot.lane.b32.xlu0 %v2247, 64
    %v2428 = vpop.permute.xlu0 %2427
    %v2430 = vsel %vm2184, %v2425, %v2428
    %v2431 = vld [vmem:[#allocation2 + $0x40] sm:$0xf0]
    %v2432 = vld [vmem:[#allocation2 + $0x48] sm:$0xf0]
    %v2433 = vpack.c.bf16 %v2385, %v2385
    %2435 = vrot.lane.b32.xlu0 %v2433, 64
    %v2436 = vpop.permute.xlu0 %2435
    %v2438 = vsel %vm156, %v2436, 0
    %2440 = vmatprep.subr.bf16.mxu0 %v561
    %2441 = vmatpush1.bf16.msra.mxu0 %v560
    %2442 = vmatprep.subr.bf16.mxu0 %v563
    %2443 = vmatpush1.bf16.msra.mxu0 %v562
    %2444 = vmatprep.subr.bf16.mxu0 %v565
    %2445 = vmatpush1.bf16.msra.mxu0 %v564
    %2446 = vmatprep.subr.bf16.mxu0 %v567
    %2447 = vmatpush1.bf16.msra.mxu0 %v566
    %2448 = vmatprep.subr.bf16.mxu0 0
    %2449 = vmatpush1.bf16.msra.mxu0 0
    %2450 = vmatprep.subr.bf16.mxu0 0
    %2451 = vmatpush1.bf16.msra.mxu0 0
    %2452 = vmatprep.subr.bf16.mxu0 0
    %2453 = vmatpush1.bf16.msra.mxu0 0
    %2454 = vmatprep.subr.bf16.mxu0 0
    %2455 = vmatpush1.bf16.msra.mxu0 0
    %2456 = vmatprep.subr.bf16.mxu0 0
    %2457 = vmatpush1.bf16.msra.mxu0 0
    %2458 = vmatprep.subr.bf16.mxu0 0
    %2459 = vmatpush1.bf16.msra.mxu0 0
    %2460 = vmatprep.subr.bf16.mxu0 0
    %2461 = vmatpush1.bf16.msra.mxu0 0
    %2462 = vmatprep.subr.bf16.mxu0 0
    %2463 = vmatpush1.bf16.msra.mxu0 0
    %2464 = vmatprep.subr.bf16.mxu0 0
    %2465 = vmatpush1.bf16.msra.mxu0 0
    %2466 = vmatprep.subr.bf16.mxu0 0
    %2467 = vmatpush1.bf16.msra.mxu0 0
    %2468 = vmatprep.subr.bf16.mxu0 0
    %2469 = vmatpush1.bf16.msra.mxu0 0
    %2470 = vmatprep.subr.bf16.mxu0 0
    %2471 = vmatpush1.bf16.msra.mxu0 0
    %2472 = vmatprep.mubr.bf16.mxu0 0
    %2473 = vmatmul.mubr.bf16.gmra.mrb[0].mxu0 %v2438
    %v2474 = vpop.f32.mrb[0].mxu0
    %v2475 = vadd.f32 0.0, %v2474
    %v2476 = vpop.f32.mrb[0].mxu0
    %v2477 = vadd.f32 0.0, %v2476
    %v2478 = vpop.f32.mrb[0].mxu0
    %v2479 = vpop.f32.mrb[0].mxu0
    %2480 = vdwg.mxu0
    %v2483 = vrot.slane %v2475, 4
    %v2484 = vrot.slane %v2477, 4
    %v2487 = vadd.f32 %v2431, %v2483
    %v2488 = vadd.f32 %v2432, %v2484
    %v2489 = vld [vmem:[#allocation3 + $0x30] sm:$0xf]
    %v2490 = vld [vmem:[#allocation3 + $0x38] sm:$0xf]
    %v2491 = vpack.c.bf16 %v2421, %v2421
    %v2493 = vsel %vm156, %v2491, 0
    %2495 = vmatprep.subr.bf16.mxu0 %v585
    %2496 = vmatpush1.bf16.msra.mxu0 %v584
    %2497 = vmatprep.subr.bf16.mxu0 %v587
    %2498 = vmatpush1.bf16.msra.mxu0 %v586
    %2499 = vmatprep.subr.bf16.mxu0 %v589
    %2500 = vmatpush1.bf16.msra.mxu0 %v588
    %2501 = vmatprep.subr.bf16.mxu0 %v591
    %2502 = vmatpush1.bf16.msra.mxu0 %v590
    %2503 = vmatprep.subr.bf16.mxu0 0
    %2504 = vmatpush1.bf16.msra.mxu0 0
    %2505 = vmatprep.subr.bf16.mxu0 0
    %2506 = vmatpush1.bf16.msra.mxu0 0
    %2507 = vmatprep.subr.bf16.mxu0 0
    %2508 = vmatpush1.bf16.msra.mxu0 0
    %2509 = vmatprep.subr.bf16.mxu0 0
    %2510 = vmatpush1.bf16.msra.mxu0 0
    %2511 = vmatprep.subr.bf16.mxu0 0
    %2512 = vmatpush1.bf16.msra.mxu0 0
    %2513 = vmatprep.subr.bf16.mxu0 0
    %2514 = vmatpush1.bf16.msra.mxu0 0
    %2515 = vmatprep.subr.bf16.mxu0 0
    %2516 = vmatpush1.bf16.msra.mxu0 0
    %2517 = vmatprep.subr.bf16.mxu0 0
    %2518 = vmatpush1.bf16.msra.mxu0 0
    %2519 = vmatprep.subr.bf16.mxu0 0
    %2520 = vmatpush1.bf16.msra.mxu0 0
    %2521 = vmatprep.subr.bf16.mxu0 0
    %2522 = vmatpush1.bf16.msra.mxu0 0
    %2523 = vmatprep.subr.bf16.mxu0 0
    %2524 = vmatpush1.bf16.msra.mxu0 0
    %2525 = vmatprep.subr.bf16.mxu0 0
    %2526 = vmatpush1.bf16.msra.mxu0 0
    %2527 = vmatprep.mubr.bf16.mxu0 0
    %2528 = vmatmul.mubr.bf16.gmra.mrb[0].mxu0 %v2493
    %v2529 = vpop.f32.mrb[0].mxu0
    %v2530 = vadd.f32 0.0, %v2529
    %v2531 = vpop.f32.mrb[0].mxu0
    %v2532 = vadd.f32 0.0, %v2531
    %v2533 = vpop.f32.mrb[0].mxu0
    %v2534 = vpop.f32.mrb[0].mxu0
    %2535 = vdwg.mxu0
    %v2536 = vadd.f32 %v2489, %v2530
    %v2537 = vadd.f32 %v2490, %v2532
    %v2538 = vxor.u32 %v2487, 2147483648
    %v2539 = vmul.f32 %v2538, 1.442695
    %v2540 = vpow.pop %v2539
    %v2541 = vadd.f32 %v2540, 1.0
    %v2542 = vrcp.pop %v2541
    %v2543 = vmul.f32 1.0, %v2542
    %v2544 = vtanh.pop %v2488
    %v2545 = vxor.u32 %v2488, 2147483648
    %v2546 = vmul.f32 %v2545, 1.442695
    %v2547 = vpow.pop %v2546
    %v2548 = vadd.f32 %v2547, 1.0
    %v2549 = vrcp.pop %v2548
    %v2550 = vmul.f32 1.0, %v2549
    %v2552 = vrot.slane %v2386, 4
    %v2554 = vmul.f32 %v2543, %v2552
    %v2555 = vmul.f32 %v2543, %v2544
    %2557 = vrot.lane.b32.xlu0 %v2555, 64
    %v2558 = vpop.permute.xlu0 %2557
    %v2560 = vadd.f32 %v2554, %v2558
    %v2561 = vtanh.pop %v2560
    %v2562 = vmul.f32 %v2550, %v2561
    %v2564 = vrot.slane %v2562, 4
    %2565 = vrot.lane.b32.xlu0 %v2564, 64
    %v2566 = vpop.permute.xlu0 %2565
    %2569 = vrot.lane.b32.xlu0 %v2385, 64
    %v2570 = vpop.permute.xlu0 %2569
    %v2572 = vsel %vm2021, %v2566, %v2570
    %v2574 = vrot.slane %v2560, 4
    %2575 = vrot.lane.b32.xlu0 %v2574, 64
    %v2576 = vpop.permute.xlu0 %2575
    %2578 = vrot.lane.b32.xlu0 %v2386, 64
    %v2579 = vpop.permute.xlu0 %2578
    %v2581 = vsel %vm2021, %v2576, %v2579
    %v2582 = vxor.u32 %v2536, 2147483648
    %v2583 = vmul.f32 %v2582, 1.442695
    %v2584 = vpow.pop %v2583
    %v2585 = vadd.f32 %v2584, 1.0
    %v2586 = vrcp.pop %v2585
    %v2587 = vmul.f32 1.0, %v2586
    %v2588 = vtanh.pop %v2537
    %v2589 = vxor.u32 %v2537, 2147483648
    %v2590 = vmul.f32 %v2589, 1.442695
    %v2591 = vpow.pop %v2590
    %v2592 = vadd.f32 %v2591, 1.0
    %v2593 = vrcp.pop %v2592
    %v2594 = vmul.f32 1.0, %v2593
    %2596 = vrot.lane.b32.xlu0 %v2430, 64
    %v2597 = vpop.permute.xlu0 %2596
    %v2599 = vmul.f32 %v2587, %v2597
    %v2600 = vmul.f32 %v2587, %v2588
    %2602 = vrot.lane.b32.xlu0 %v2600, 64
    %v2603 = vpop.permute.xlu0 %2602
    %v2605 = vadd.f32 %v2599, %v2603
    %v2606 = vtanh.pop %v2605
    %v2607 = vmul.f32 %v2594, %v2606
    %2609 = vrot.lane.b32.xlu0 %v2421, 64
    %v2610 = vpop.permute.xlu0 %2609
    %v2612 = vsel %vm1978, %v2607, %v2610
    %v2613 = vsel %vm1978, %v2605, %v2597
    %v2614 = vld [vmem:[#allocation2 + $0x50] sm:$0xf]
    %v2615 = vld [vmem:[#allocation2 + $0x58] sm:$0xf]
    %v2616 = vpack.c.bf16 %v2572, %v2572
    %v2618 = vsel %vm156, %v2616, 0
    %2620 = vmatprep.subr.bf16.mxu0 %v561
    %2621 = vmatpush1.bf16.msra.mxu0 %v560
    %2622 = vmatprep.subr.bf16.mxu0 %v563
    %2623 = vmatpush1.bf16.msra.mxu0 %v562
    %2624 = vmatprep.subr.bf16.mxu0 %v565
    %2625 = vmatpush1.bf16.msra.mxu0 %v564
    %2626 = vmatprep.subr.bf16.mxu0 %v567
    %2627 = vmatpush1.bf16.msra.mxu0 %v566
    %2628 = vmatprep.subr.bf16.mxu0 0
    %2629 = vmatpush1.bf16.msra.mxu0 0
    %2630 = vmatprep.subr.bf16.mxu0 0
    %2631 = vmatpush1.bf16.msra.mxu0 0
    %2632 = vmatprep.subr.bf16.mxu0 0
    %2633 = vmatpush1.bf16.msra.mxu0 0
    %2634 = vmatprep.subr.bf16.mxu0 0
    %2635 = vmatpush1.bf16.msra.mxu0 0
    %2636 = vmatprep.subr.bf16.mxu0 0
    %2637 = vmatpush1.bf16.msra.mxu0 0
    %2638 = vmatprep.subr.bf16.mxu0 0
    %2639 = vmatpush1.bf16.msra.mxu0 0
    %2640 = vmatprep.subr.bf16.mxu0 0
    %2641 = vmatpush1.bf16.msra.mxu0 0
    %2642 = vmatprep.subr.bf16.mxu0 0
    %2643 = vmatpush1.bf16.msra.mxu0 0
    %2644 = vmatprep.subr.bf16.mxu0 0
    %2645 = vmatpush1.bf16.msra.mxu0 0
    %2646 = vmatprep.subr.bf16.mxu0 0
    %2647 = vmatpush1.bf16.msra.mxu0 0
    %2648 = vmatprep.subr.bf16.mxu0 0
    %2649 = vmatpush1.bf16.msra.mxu0 0
    %2650 = vmatprep.subr.bf16.mxu0 0
    %2651 = vmatpush1.bf16.msra.mxu0 0
    %2652 = vmatprep.mubr.bf16.mxu0 0
    %2653 = vmatmul.mubr.bf16.gmra.mrb[0].mxu0 %v2618
    %v2654 = vpop.f32.mrb[0].mxu0
    %v2655 = vadd.f32 0.0, %v2654
    %v2656 = vpop.f32.mrb[0].mxu0
    %v2657 = vadd.f32 0.0, %v2656
    %v2658 = vpop.f32.mrb[0].mxu0
    %v2659 = vpop.f32.mrb[0].mxu0
    %2660 = vdwg.mxu0
    %v2661 = vadd.f32 %v2614, %v2655
    %v2662 = vadd.f32 %v2615, %v2657
    %v2663 = vld [vmem:[#allocation3 + $0x20] sm:$0xf0]
    %v2664 = vld [vmem:[#allocation3 + $0x28] sm:$0xf0]
    %v2665 = vpack.c.bf16 %v2612, %v2612
    %2667 = vrot.lane.b32.xlu0 %v2665, 64
    %v2668 = vpop.permute.xlu0 %2667
    %v2670 = vsel %vm156, %v2668, 0
    %2672 = vmatprep.subr.bf16.mxu0 %v585
    %2673 = vmatpush1.bf16.msra.mxu0 %v584
    %2674 = vmatprep.subr.bf16.mxu0 %v587
    %2675 = vmatpush1.bf16.msra.mxu0 %v586
    %2676 = vmatprep.subr.bf16.mxu0 %v589
    %2677 = vmatpush1.bf16.msra.mxu0 %v588
    %2678 = vmatprep.subr.bf16.mxu0 %v591
    %2679 = vmatpush1.bf16.msra.mxu0 %v590
    %2680 = vmatprep.subr.bf16.mxu0 0
    %2681 = vmatpush1.bf16.msra.mxu0 0
    %2682 = vmatprep.subr.bf16.mxu0 0
    %2683 = vmatpush1.bf16.msra.mxu0 0
    %2684 = vmatprep.subr.bf16.mxu0 0
    %2685 = vmatpush1.bf16.msra.mxu0 0
    %2686 = vmatprep.subr.bf16.mxu0 0
    %2687 = vmatpush1.bf16.msra.mxu0 0
    %2688 = vmatprep.subr.bf16.mxu0 0
    %2689 = vmatpush1.bf16.msra.mxu0 0
    %2690 = vmatprep.subr.bf16.mxu0 0
    %2691 = vmatpush1.bf16.msra.mxu0 0
    %2692 = vmatprep.subr.bf16.mxu0 0
    %2693 = vmatpush1.bf16.msra.mxu0 0
    %2694 = vmatprep.subr.bf16.mxu0 0
    %2695 = vmatpush1.bf16.msra.mxu0 0
    %2696 = vmatprep.subr.bf16.mxu0 0
    %2697 = vmatpush1.bf16.msra.mxu0 0
    %2698 = vmatprep.subr.bf16.mxu0 0
    %2699 = vmatpush1.bf16.msra.mxu0 0
    %2700 = vmatprep.subr.bf16.mxu0 0
    %2701 = vmatpush1.bf16.msra.mxu0 0
    %2702 = vmatprep.subr.bf16.mxu0 0
    %2703 = vmatpush1.bf16.msra.mxu0 0
    %2704 = vmatprep.mubr.bf16.mxu0 0
    %2705 = vmatmul.mubr.bf16.gmra.mrb[0].mxu0 %v2670
    %v2706 = vpop.f32.mrb[0].mxu0
    %v2707 = vadd.f32 0.0, %v2706
    %v2708 = vpop.f32.mrb[0].mxu0
    %v2709 = vadd.f32 0.0, %v2708
    %v2710 = vpop.f32.mrb[0].mxu0
    %v2711 = vpop.f32.mrb[0].mxu0
    %2712 = vdwg.mxu0
    %v2715 = vrot.slane %v2707, 4
    %v2716 = vrot.slane %v2709, 4
    %v2719 = vadd.f32 %v2663, %v2715
    %v2720 = vadd.f32 %v2664, %v2716
    %v2721 = vxor.u32 %v2661, 2147483648
    %v2722 = vmul.f32 %v2721, 1.442695
    %v2723 = vpow.pop %v2722
    %v2724 = vadd.f32 %v2723, 1.0
    %v2725 = vrcp.pop %v2724
    %v2726 = vmul.f32 1.0, %v2725
    %v2727 = vtanh.pop %v2662
    %v2728 = vxor.u32 %v2662, 2147483648
    %v2729 = vmul.f32 %v2728, 1.442695
    %v2730 = vpow.pop %v2729
    %v2731 = vadd.f32 %v2730, 1.0
    %v2732 = vrcp.pop %v2731
    %v2733 = vmul.f32 1.0, %v2732
    %2735 = vrot.lane.b32.xlu0 %v2581, 64
    %v2736 = vpop.permute.xlu0 %2735
    %v2738 = vmul.f32 %v2726, %v2736
    %v2739 = vmul.f32 %v2726, %v2727
    %2741 = vrot.lane.b32.xlu0 %v2739, 64
    %v2742 = vpop.permute.xlu0 %2741
    %v2744 = vadd.f32 %v2738, %v2742
    %v2745 = vtanh.pop %v2744
    %v2746 = vmul.f32 %v2733, %v2745
    %2748 = vrot.lane.b32.xlu0 %v2572, 64
    %v2749 = vpop.permute.xlu0 %2748
    %v2751 = vsel %vm1827, %v2746, %v2749
    %v2752 = vsel %vm1827, %v2744, %v2736
    %v2753 = vxor.u32 %v2719, 2147483648
    %v2754 = vmul.f32 %v2753, 1.442695
    %v2755 = vpow.pop %v2754
    %v2756 = vadd.f32 %v2755, 1.0
    %v2757 = vrcp.pop %v2756
    %v2758 = vmul.f32 1.0, %v2757
    %v2759 = vtanh.pop %v2720
    %v2760 = vxor.u32 %v2720, 2147483648
    %v2761 = vmul.f32 %v2760, 1.442695
    %v2762 = vpow.pop %v2761
    %v2763 = vadd.f32 %v2762, 1.0
    %v2764 = vrcp.pop %v2763
    %v2765 = vmul.f32 1.0, %v2764
    %v2767 = vrot.slane %v2613, 4
    %v2769 = vmul.f32 %v2758, %v2767
    %v2770 = vmul.f32 %v2758, %v2759
    %2772 = vrot.lane.b32.xlu0 %v2770, 64
    %v2773 = vpop.permute.xlu0 %2772
    %v2775 = vadd.f32 %v2769, %v2773
    %v2776 = vtanh.pop %v2775
    %v2777 = vmul.f32 %v2765, %v2776
    %v2779 = vrot.slane %v2777, 4
    %2780 = vrot.lane.b32.xlu0 %v2779, 64
    %v2781 = vpop.permute.xlu0 %2780
    %2784 = vrot.lane.b32.xlu0 %v2612, 64
    %v2785 = vpop.permute.xlu0 %2784
    %v2787 = vsel %vm1770, %v2781, %v2785
    %v2789 = vrot.slane %v2775, 4
    %2790 = vrot.lane.b32.xlu0 %v2789, 64
    %v2791 = vpop.permute.xlu0 %2790
    %2793 = vrot.lane.b32.xlu0 %v2613, 64
    %v2794 = vpop.permute.xlu0 %2793
    %v2796 = vsel %vm1770, %v2791, %v2794
    %v2797 = vld [vmem:[#allocation2 + $0x50] sm:$0xf0]
    %v2798 = vld [vmem:[#allocation2 + $0x58] sm:$0xf0]
    %v2799 = vpack.c.bf16 %v2751, %v2751
    %2801 = vrot.lane.b32.xlu0 %v2799, 64
    %v2802 = vpop.permute.xlu0 %2801
    %v2804 = vsel %vm156, %v2802, 0
    %2806 = vmatprep.subr.bf16.mxu0 %v561
    %2807 = vmatpush1.bf16.msra.mxu0 %v560
    %2808 = vmatprep.subr.bf16.mxu0 %v563
    %2809 = vmatpush1.bf16.msra.mxu0 %v562
    %2810 = vmatprep.subr.bf16.mxu0 %v565
    %2811 = vmatpush1.bf16.msra.mxu0 %v564
    %2812 = vmatprep.subr.bf16.mxu0 %v567
    %2813 = vmatpush1.bf16.msra.mxu0 %v566
    %2814 = vmatprep.subr.bf16.mxu0 0
    %2815 = vmatpush1.bf16.msra.mxu0 0
    %2816 = vmatprep.subr.bf16.mxu0 0
    %2817 = vmatpush1.bf16.msra.mxu0 0
    %2818 = vmatprep.subr.bf16.mxu0 0
    %2819 = vmatpush1.bf16.msra.mxu0 0
    %2820 = vmatprep.subr.bf16.mxu0 0
    %2821 = vmatpush1.bf16.msra.mxu0 0
    %2822 = vmatprep.subr.bf16.mxu0 0
    %2823 = vmatpush1.bf16.msra.mxu0 0
    %2824 = vmatprep.subr.bf16.mxu0 0
    %2825 = vmatpush1.bf16.msra.mxu0 0
    %2826 = vmatprep.subr.bf16.mxu0 0
    %2827 = vmatpush1.bf16.msra.mxu0 0
    %2828 = vmatprep.subr.bf16.mxu0 0
    %2829 = vmatpush1.bf16.msra.mxu0 0
    %2830 = vmatprep.subr.bf16.mxu0 0
    %2831 = vmatpush1.bf16.msra.mxu0 0
    %2832 = vmatprep.subr.bf16.mxu0 0
    %2833 = vmatpush1.bf16.msra.mxu0 0
    %2834 = vmatprep.subr.bf16.mxu0 0
    %2835 = vmatpush1.bf16.msra.mxu0 0
    %2836 = vmatprep.subr.bf16.mxu0 0
    %2837 = vmatpush1.bf16.msra.mxu0 0
    %2838 = vmatprep.mubr.bf16.mxu0 0
    %2839 = vmatmul.mubr.bf16.gmra.mrb[0].mxu0 %v2804
    %v2840 = vpop.f32.mrb[0].mxu0
    %v2841 = vadd.f32 0.0, %v2840
    %v2842 = vpop.f32.mrb[0].mxu0
    %v2843 = vadd.f32 0.0, %v2842
    %v2844 = vpop.f32.mrb[0].mxu0
    %v2845 = vpop.f32.mrb[0].mxu0
    %2846 = vdwg.mxu0
    %v2849 = vrot.slane %v2841, 4
    %v2850 = vrot.slane %v2843, 4
    %v2853 = vadd.f32 %v2797, %v2849
    %v2854 = vadd.f32 %v2798, %v2850
    %v2855 = vld [vmem:[#allocation3 + $0x20] sm:$0xf]
    %v2856 = vld [vmem:[#allocation3 + $0x28] sm:$0xf]
    %v2857 = vpack.c.bf16 %v2787, %v2787
    %v2859 = vsel %vm156, %v2857, 0
    %2861 = vmatprep.subr.bf16.mxu0 %v585
    %2862 = vmatpush1.bf16.msra.mxu0 %v584
    %2863 = vmatprep.subr.bf16.mxu0 %v587
    %2864 = vmatpush1.bf16.msra.mxu0 %v586
    %2865 = vmatprep.subr.bf16.mxu0 %v589
    %2866 = vmatpush1.bf16.msra.mxu0 %v588
    %2867 = vmatprep.subr.bf16.mxu0 %v591
    %2868 = vmatpush1.bf16.msra.mxu0 %v590
    %2869 = vmatprep.subr.bf16.mxu0 0
    %2870 = vmatpush1.bf16.msra.mxu0 0
    %2871 = vmatprep.subr.bf16.mxu0 0
    %2872 = vmatpush1.bf16.msra.mxu0 0
    %2873 = vmatprep.subr.bf16.mxu0 0
    %2874 = vmatpush1.bf16.msra.mxu0 0
    %2875 = vmatprep.subr.bf16.mxu0 0
    %2876 = vmatpush1.bf16.msra.mxu0 0
    %2877 = vmatprep.subr.bf16.mxu0 0
    %2878 = vmatpush1.bf16.msra.mxu0 0
    %2879 = vmatprep.subr.bf16.mxu0 0
    %2880 = vmatpush1.bf16.msra.mxu0 0
    %2881 = vmatprep.subr.bf16.mxu0 0
    %2882 = vmatpush1.bf16.msra.mxu0 0
    %2883 = vmatprep.subr.bf16.mxu0 0
    %2884 = vmatpush1.bf16.msra.mxu0 0
    %2885 = vmatprep.subr.bf16.mxu0 0
    %2886 = vmatpush1.bf16.msra.mxu0 0
    %2887 = vmatprep.subr.bf16.mxu0 0
    %2888 = vmatpush1.bf16.msra.mxu0 0
    %2889 = vmatprep.subr.bf16.mxu0 0
    %2890 = vmatpush1.bf16.msra.mxu0 0
    %2891 = vmatprep.subr.bf16.mxu0 0
    %2892 = vmatpush1.bf16.msra.mxu0 0
    %2893 = vmatprep.mubr.bf16.mxu0 0
    %2894 = vmatmul.mubr.bf16.gmra.mrb[0].mxu0 %v2859
    %v2895 = vpop.f32.mrb[0].mxu0
    %v2896 = vadd.f32 0.0, %v2895
    %v2897 = vpop.f32.mrb[0].mxu0
    %v2898 = vadd.f32 0.0, %v2897
    %v2899 = vpop.f32.mrb[0].mxu0
    %v2900 = vpop.f32.mrb[0].mxu0
    %2901 = vdwg.mxu0
    %v2902 = vadd.f32 %v2855, %v2896
    %v2903 = vadd.f32 %v2856, %v2898
    %v2904 = vxor.u32 %v2853, 2147483648
    %v2905 = vmul.f32 %v2904, 1.442695
    %v2906 = vpow.pop %v2905
    %v2907 = vadd.f32 %v2906, 1.0
    %v2908 = vrcp.pop %v2907
    %v2909 = vmul.f32 1.0, %v2908
    %v2910 = vtanh.pop %v2854
    %v2911 = vxor.u32 %v2854, 2147483648
    %v2912 = vmul.f32 %v2911, 1.442695
    %v2913 = vpow.pop %v2912
    %v2914 = vadd.f32 %v2913, 1.0
    %v2915 = vrcp.pop %v2914
    %v2916 = vmul.f32 1.0, %v2915
    %v2918 = vrot.slane %v2752, 4
    %v2920 = vmul.f32 %v2909, %v2918
    %v2921 = vmul.f32 %v2909, %v2910
    %2923 = vrot.lane.b32.xlu0 %v2921, 64
    %v2924 = vpop.permute.xlu0 %2923
    %v2926 = vadd.f32 %v2920, %v2924
    %v2927 = vtanh.pop %v2926
    %v2928 = vmul.f32 %v2916, %v2927
    %v2930 = vrot.slane %v2928, 4
    %2931 = vrot.lane.b32.xlu0 %v2930, 64
    %v2932 = vpop.permute.xlu0 %2931
    %2935 = vrot.lane.b32.xlu0 %v2751, 64
    %v2936 = vpop.permute.xlu0 %2935
    %v2938 = vsel %vm1607, %v2932, %v2936
    %v2940 = vrot.slane %v2926, 4
    %2941 = vrot.lane.b32.xlu0 %v2940, 64
    %v2942 = vpop.permute.xlu0 %2941
    %2944 = vrot.lane.b32.xlu0 %v2752, 64
    %v2945 = vpop.permute.xlu0 %2944
    %v2947 = vsel %vm1607, %v2942, %v2945
    %v2948 = vxor.u32 %v2902, 2147483648
    %v2949 = vmul.f32 %v2948, 1.442695
    %v2950 = vpow.pop %v2949
    %v2951 = vadd.f32 %v2950, 1.0
    %v2952 = vrcp.pop %v2951
    %v2953 = vmul.f32 1.0, %v2952
    %v2954 = vtanh.pop %v2903
    %v2955 = vxor.u32 %v2903, 2147483648
    %v2956 = vmul.f32 %v2955, 1.442695
    %v2957 = vpow.pop %v2956
    %v2958 = vadd.f32 %v2957, 1.0
    %v2959 = vrcp.pop %v2958
    %v2960 = vmul.f32 1.0, %v2959
    %2962 = vrot.lane.b32.xlu0 %v2796, 64
    %v2963 = vpop.permute.xlu0 %2962
    %v2965 = vmul.f32 %v2953, %v2963
    %v2966 = vmul.f32 %v2953, %v2954
    %2968 = vrot.lane.b32.xlu0 %v2966, 64
    %v2969 = vpop.permute.xlu0 %2968
    %v2971 = vadd.f32 %v2965, %v2969
    %v2972 = vtanh.pop %v2971
    %v2973 = vmul.f32 %v2960, %v2972
    %2975 = vrot.lane.b32.xlu0 %v2787, 64
    %v2976 = vpop.permute.xlu0 %2975
    %v2978 = vsel %vm1564, %v2973, %v2976
    %v2979 = vsel %vm1564, %v2971, %v2963
    %v2980 = vld [vmem:[#allocation2 + $0x60] sm:$0xf]
    %v2981 = vld [vmem:[#allocation2 + $0x68] sm:$0xf]
    %v2982 = vpack.c.bf16 %v2938, %v2938
    %v2984 = vsel %vm156, %v2982, 0
    %2986 = vmatprep.subr.bf16.mxu0 %v561
    %2987 = vmatpush1.bf16.msra.mxu0 %v560
    %2988 = vmatprep.subr.bf16.mxu0 %v563
    %2989 = vmatpush1.bf16.msra.mxu0 %v562
    %2990 = vmatprep.subr.bf16.mxu0 %v565
    %2991 = vmatpush1.bf16.msra.mxu0 %v564
    %2992 = vmatprep.subr.bf16.mxu0 %v567
    %2993 = vmatpush1.bf16.msra.mxu0 %v566
    %2994 = vmatprep.subr.bf16.mxu0 0
    %2995 = vmatpush1.bf16.msra.mxu0 0
    %2996 = vmatprep.subr.bf16.mxu0 0
    %2997 = vmatpush1.bf16.msra.mxu0 0
    %2998 = vmatprep.subr.bf16.mxu0 0
    %2999 = vmatpush1.bf16.msra.mxu0 0
    %3000 = vmatprep.subr.bf16.mxu0 0
    %3001 = vmatpush1.bf16.msra.mxu0 0
    %3002 = vmatprep.subr.bf16.mxu0 0
    %3003 = vmatpush1.bf16.msra.mxu0 0
    %3004 = vmatprep.subr.bf16.mxu0 0
    %3005 = vmatpush1.bf16.msra.mxu0 0
    %3006 = vmatprep.subr.bf16.mxu0 0
    %3007 = vmatpush1.bf16.msra.mxu0 0
    %3008 = vmatprep.subr.bf16.mxu0 0
    %3009 = vmatpush1.bf16.msra.mxu0 0
    %3010 = vmatprep.subr.bf16.mxu0 0
    %3011 = vmatpush1.bf16.msra.mxu0 0
    %3012 = vmatprep.subr.bf16.mxu0 0
    %3013 = vmatpush1.bf16.msra.mxu0 0
    %3014 = vmatprep.subr.bf16.mxu0 0
    %3015 = vmatpush1.bf16.msra.mxu0 0
    %3016 = vmatprep.subr.bf16.mxu0 0
    %3017 = vmatpush1.bf16.msra.mxu0 0
    %3018 = vmatprep.mubr.bf16.mxu0 0
    %3019 = vmatmul.mubr.bf16.gmra.mrb[0].mxu0 %v2984
    %v3020 = vpop.f32.mrb[0].mxu0
    %v3021 = vadd.f32 0.0, %v3020
    %v3022 = vpop.f32.mrb[0].mxu0
    %v3023 = vadd.f32 0.0, %v3022
    %v3024 = vpop.f32.mrb[0].mxu0
    %v3025 = vpop.f32.mrb[0].mxu0
    %3026 = vdwg.mxu0
    %v3027 = vadd.f32 %v2980, %v3021
    %v3028 = vadd.f32 %v2981, %v3023
    %v3029 = vld [vmem:[#allocation3 + $0x10] sm:$0xf0]
    %v3030 = vld [vmem:[#allocation3 + $0x18] sm:$0xf0]
    %v3031 = vpack.c.bf16 %v2978, %v2978
    %3033 = vrot.lane.b32.xlu0 %v3031, 64
    %v3034 = vpop.permute.xlu0 %3033
    %v3036 = vsel %vm156, %v3034, 0
    %3038 = vmatprep.subr.bf16.mxu0 %v585
    %3039 = vmatpush1.bf16.msra.mxu0 %v584
    %3040 = vmatprep.subr.bf16.mxu0 %v587
    %3041 = vmatpush1.bf16.msra.mxu0 %v586
    %3042 = vmatprep.subr.bf16.mxu0 %v589
    %3043 = vmatpush1.bf16.msra.mxu0 %v588
    %3044 = vmatprep.subr.bf16.mxu0 %v591
    %3045 = vmatpush1.bf16.msra.mxu0 %v590
    %3046 = vmatprep.subr.bf16.mxu0 0
    %3047 = vmatpush1.bf16.msra.mxu0 0
    %3048 = vmatprep.subr.bf16.mxu0 0
    %3049 = vmatpush1.bf16.msra.mxu0 0
    %3050 = vmatprep.subr.bf16.mxu0 0
    %3051 = vmatpush1.bf16.msra.mxu0 0
    %3052 = vmatprep.subr.bf16.mxu0 0
    %3053 = vmatpush1.bf16.msra.mxu0 0
    %3054 = vmatprep.subr.bf16.mxu0 0
    %3055 = vmatpush1.bf16.msra.mxu0 0
    %3056 = vmatprep.subr.bf16.mxu0 0
    %3057 = vmatpush1.bf16.msra.mxu0 0
    %3058 = vmatprep.subr.bf16.mxu0 0
    %3059 = vmatpush1.bf16.msra.mxu0 0
    %3060 = vmatprep.subr.bf16.mxu0 0
    %3061 = vmatpush1.bf16.msra.mxu0 0
    %3062 = vmatprep.subr.bf16.mxu0 0
    %3063 = vmatpush1.bf16.msra.mxu0 0
    %3064 = vmatprep.subr.bf16.mxu0 0
    %3065 = vmatpush1.bf16.msra.mxu0 0
    %3066 = vmatprep.subr.bf16.mxu0 0
    %3067 = vmatpush1.bf16.msra.mxu0 0
    %3068 = vmatprep.subr.bf16.mxu0 0
    %3069 = vmatpush1.bf16.msra.mxu0 0
    %3070 = vmatprep.mubr.bf16.mxu0 0
    %3071 = vmatmul.mubr.bf16.gmra.mrb[0].mxu0 %v3036
    %v3072 = vpop.f32.mrb[0].mxu0
    %v3073 = vadd.f32 0.0, %v3072
    %v3074 = vpop.f32.mrb[0].mxu0
    %v3075 = vadd.f32 0.0, %v3074
    %v3076 = vpop.f32.mrb[0].mxu0
    %v3077 = vpop.f32.mrb[0].mxu0
    %3078 = vdwg.mxu0
    %v3081 = vrot.slane %v3073, 4
    %v3082 = vrot.slane %v3075, 4
    %v3085 = vadd.f32 %v3029, %v3081
    %v3086 = vadd.f32 %v3030, %v3082
    %v3087 = vxor.u32 %v3027, 2147483648
    %v3088 = vmul.f32 %v3087, 1.442695
    %v3089 = vpow.pop %v3088
    %v3090 = vadd.f32 %v3089, 1.0
    %v3091 = vrcp.pop %v3090
    %v3092 = vmul.f32 1.0, %v3091
    %v3093 = vtanh.pop %v3028
    %v3094 = vxor.u32 %v3028, 2147483648
    %v3095 = vmul.f32 %v3094, 1.442695
    %v3096 = vpow.pop %v3095
    %v3097 = vadd.f32 %v3096, 1.0
    %v3098 = vrcp.pop %v3097
    %v3099 = vmul.f32 1.0, %v3098
    %3101 = vrot.lane.b32.xlu0 %v2947, 64
    %v3102 = vpop.permute.xlu0 %3101
    %v3104 = vmul.f32 %v3092, %v3102
    %v3105 = vmul.f32 %v3092, %v3093
    %3107 = vrot.lane.b32.xlu0 %v3105, 64
    %v3108 = vpop.permute.xlu0 %3107
    %v3110 = vadd.f32 %v3104, %v3108
    %v3111 = vtanh.pop %v3110
    %v3112 = vmul.f32 %v3099, %v3111
    %3114 = vrot.lane.b32.xlu0 %v2938, 64
    %v3115 = vpop.permute.xlu0 %3114
    %v3117 = vsel %vm1413, %v3112, %v3115
    %v3118 = vsel %vm1413, %v3110, %v3102
    %v3119 = vxor.u32 %v3085, 2147483648
    %v3120 = vmul.f32 %v3119, 1.442695
    %v3121 = vpow.pop %v3120
    %v3122 = vadd.f32 %v3121, 1.0
    %v3123 = vrcp.pop %v3122
    %v3124 = vmul.f32 1.0, %v3123
    %v3125 = vtanh.pop %v3086
    %v3126 = vxor.u32 %v3086, 2147483648
    %v3127 = vmul.f32 %v3126, 1.442695
    %v3128 = vpow.pop %v3127
    %v3129 = vadd.f32 %v3128, 1.0
    %v3130 = vrcp.pop %v3129
    %v3131 = vmul.f32 1.0, %v3130
    %v3133 = vrot.slane %v2979, 4
    %v3135 = vmul.f32 %v3124, %v3133
    %v3136 = vmul.f32 %v3124, %v3125
    %3138 = vrot.lane.b32.xlu0 %v3136, 64
    %v3139 = vpop.permute.xlu0 %3138
    %v3141 = vadd.f32 %v3135, %v3139
    %v3142 = vtanh.pop %v3141
    %v3143 = vmul.f32 %v3131, %v3142
    %v3145 = vrot.slane %v3143, 4
    %3146 = vrot.lane.b32.xlu0 %v3145, 64
    %v3147 = vpop.permute.xlu0 %3146
    %3150 = vrot.lane.b32.xlu0 %v2978, 64
    %v3151 = vpop.permute.xlu0 %3150
    %v3153 = vsel %vm1356, %v3147, %v3151
    %v3155 = vrot.slane %v3141, 4
    %3156 = vrot.lane.b32.xlu0 %v3155, 64
    %v3157 = vpop.permute.xlu0 %3156
    %3159 = vrot.lane.b32.xlu0 %v2979, 64
    %v3160 = vpop.permute.xlu0 %3159
    %v3162 = vsel %vm1356, %v3157, %v3160
    %v3163 = vld [vmem:[#allocation2 + $0x60] sm:$0xf0]
    %v3164 = vld [vmem:[#allocation2 + $0x68] sm:$0xf0]
    %v3165 = vpack.c.bf16 %v3117, %v3117
    %3167 = vrot.lane.b32.xlu0 %v3165, 64
    %v3168 = vpop.permute.xlu0 %3167
    %v3170 = vsel %vm156, %v3168, 0
    %3172 = vmatprep.subr.bf16.mxu0 %v561
    %3173 = vmatpush1.bf16.msra.mxu0 %v560
    %3174 = vmatprep.subr.bf16.mxu0 %v563
    %3175 = vmatpush1.bf16.msra.mxu0 %v562
    %3176 = vmatprep.subr.bf16.mxu0 %v565
    %3177 = vmatpush1.bf16.msra.mxu0 %v564
    %3178 = vmatprep.subr.bf16.mxu0 %v567
    %3179 = vmatpush1.bf16.msra.mxu0 %v566
    %3180 = vmatprep.subr.bf16.mxu0 0
    %3181 = vmatpush1.bf16.msra.mxu0 0
    %3182 = vmatprep.subr.bf16.mxu0 0
    %3183 = vmatpush1.bf16.msra.mxu0 0
    %3184 = vmatprep.subr.bf16.mxu0 0
    %3185 = vmatpush1.bf16.msra.mxu0 0
    %3186 = vmatprep.subr.bf16.mxu0 0
    %3187 = vmatpush1.bf16.msra.mxu0 0
    %3188 = vmatprep.subr.bf16.mxu0 0
    %3189 = vmatpush1.bf16.msra.mxu0 0
    %3190 = vmatprep.subr.bf16.mxu0 0
    %3191 = vmatpush1.bf16.msra.mxu0 0
    %3192 = vmatprep.subr.bf16.mxu0 0
    %3193 = vmatpush1.bf16.msra.mxu0 0
    %3194 = vmatprep.subr.bf16.mxu0 0
    %3195 = vmatpush1.bf16.msra.mxu0 0
    %3196 = vmatprep.subr.bf16.mxu0 0
    %3197 = vmatpush1.bf16.msra.mxu0 0
    %3198 = vmatprep.subr.bf16.mxu0 0
    %3199 = vmatpush1.bf16.msra.mxu0 0
    %3200 = vmatprep.subr.bf16.mxu0 0
    %3201 = vmatpush1.bf16.msra.mxu0 0
    %3202 = vmatprep.subr.bf16.mxu0 0
    %3203 = vmatpush1.bf16.msra.mxu0 0
    %3204 = vmatprep.mubr.bf16.mxu0 0
    %3205 = vmatmul.mubr.bf16.gmra.mrb[0].mxu0 %v3170
    %v3206 = vpop.f32.mrb[0].mxu0
    %v3207 = vadd.f32 0.0, %v3206
    %v3208 = vpop.f32.mrb[0].mxu0
    %v3209 = vadd.f32 0.0, %v3208
    %v3210 = vpop.f32.mrb[0].mxu0
    %v3211 = vpop.f32.mrb[0].mxu0
    %3212 = vdwg.mxu0
    %v3215 = vrot.slane %v3207, 4
    %v3216 = vrot.slane %v3209, 4
    %v3219 = vadd.f32 %v3163, %v3215
    %v3220 = vadd.f32 %v3164, %v3216
    %v3221 = vld [vmem:[#allocation3 + $0x10] sm:$0xf]
    %v3222 = vld [vmem:[#allocation3 + $0x18] sm:$0xf]
    %v3223 = vpack.c.bf16 %v3153, %v3153
    %v3225 = vsel %vm156, %v3223, 0
    %3227 = vmatprep.subr.bf16.mxu0 %v585
    %3228 = vmatpush1.bf16.msra.mxu0 %v584
    %3229 = vmatprep.subr.bf16.mxu0 %v587
    %3230 = vmatpush1.bf16.msra.mxu0 %v586
    %3231 = vmatprep.subr.bf16.mxu0 %v589
    %3232 = vmatpush1.bf16.msra.mxu0 %v588
    %3233 = vmatprep.subr.bf16.mxu0 %v591
    %3234 = vmatpush1.bf16.msra.mxu0 %v590
    %3235 = vmatprep.subr.bf16.mxu0 0
    %3236 = vmatpush1.bf16.msra.mxu0 0
    %3237 = vmatprep.subr.bf16.mxu0 0
    %3238 = vmatpush1.bf16.msra.mxu0 0
    %3239 = vmatprep.subr.bf16.mxu0 0
    %3240 = vmatpush1.bf16.msra.mxu0 0
    %3241 = vmatprep.subr.bf16.mxu0 0
    %3242 = vmatpush1.bf16.msra.mxu0 0
    %3243 = vmatprep.subr.bf16.mxu0 0
    %3244 = vmatpush1.bf16.msra.mxu0 0
    %3245 = vmatprep.subr.bf16.mxu0 0
    %3246 = vmatpush1.bf16.msra.mxu0 0
    %3247 = vmatprep.subr.bf16.mxu0 0
    %3248 = vmatpush1.bf16.msra.mxu0 0
    %3249 = vmatprep.subr.bf16.mxu0 0
    %3250 = vmatpush1.bf16.msra.mxu0 0
    %3251 = vmatprep.subr.bf16.mxu0 0
    %3252 = vmatpush1.bf16.msra.mxu0 0
    %3253 = vmatprep.subr.bf16.mxu0 0
    %3254 = vmatpush1.bf16.msra.mxu0 0
    %3255 = vmatprep.subr.bf16.mxu0 0
    %3256 = vmatpush1.bf16.msra.mxu0 0
    %3257 = vmatprep.subr.bf16.mxu0 0
    %3258 = vmatpush1.bf16.msra.mxu0 0
    %3259 = vmatprep.mubr.bf16.mxu0 0
    %3260 = vmatmul.mubr.bf16.gmra.mrb[0].mxu0 %v3225
    %v3261 = vpop.f32.mrb[0].mxu0
    %v3262 = vadd.f32 0.0, %v3261
    %v3263 = vpop.f32.mrb[0].mxu0
    %v3264 = vadd.f32 0.0, %v3263
    %v3265 = vpop.f32.mrb[0].mxu0
    %v3266 = vpop.f32.mrb[0].mxu0
    %3267 = vdwg.mxu0
    %v3268 = vadd.f32 %v3221, %v3262
    %v3269 = vadd.f32 %v3222, %v3264
    %v3270 = vxor.u32 %v3219, 2147483648
    %v3271 = vmul.f32 %v3270, 1.442695
    %v3272 = vpow.pop %v3271
    %v3273 = vadd.f32 %v3272, 1.0
    %v3274 = vrcp.pop %v3273
    %v3275 = vmul.f32 1.0, %v3274
    %v3276 = vtanh.pop %v3220
    %v3277 = vxor.u32 %v3220, 2147483648
    %v3278 = vmul.f32 %v3277, 1.442695
    %v3279 = vpow.pop %v3278
    %v3280 = vadd.f32 %v3279, 1.0
    %v3281 = vrcp.pop %v3280
    %v3282 = vmul.f32 1.0, %v3281
    %v3284 = vrot.slane %v3118, 4
    %v3286 = vmul.f32 %v3275, %v3284
    %v3287 = vmul.f32 %v3275, %v3276
    %3289 = vrot.lane.b32.xlu0 %v3287, 64
    %v3290 = vpop.permute.xlu0 %3289
    %v3292 = vadd.f32 %v3286, %v3290
    %v3293 = vtanh.pop %v3292
    %v3294 = vmul.f32 %v3282, %v3293
    %v3296 = vrot.slane %v3294, 4
    %3297 = vrot.lane.b32.xlu0 %v3296, 64
    %v3298 = vpop.permute.xlu0 %3297
    %3301 = vrot.lane.b32.xlu0 %v3117, 64
    %v3302 = vpop.permute.xlu0 %3301
    %v3304 = vsel %vm1193, %v3298, %v3302
    %v3306 = vrot.slane %v3292, 4
    %3307 = vrot.lane.b32.xlu0 %v3306, 64
    %v3308 = vpop.permute.xlu0 %3307
    %3310 = vrot.lane.b32.xlu0 %v3118, 64
    %v3311 = vpop.permute.xlu0 %3310
    %v3313 = vsel %vm1193, %v3308, %v3311
    %v3314 = vxor.u32 %v3268, 2147483648
    %v3315 = vmul.f32 %v3314, 1.442695
    %v3316 = vpow.pop %v3315
    %v3317 = vadd.f32 %v3316, 1.0
    %v3318 = vrcp.pop %v3317
    %v3319 = vmul.f32 1.0, %v3318
    %v3320 = vtanh.pop %v3269
    %v3321 = vxor.u32 %v3269, 2147483648
    %v3322 = vmul.f32 %v3321, 1.442695
    %v3323 = vpow.pop %v3322
    %v3324 = vadd.f32 %v3323, 1.0
    %v3325 = vrcp.pop %v3324
    %v3326 = vmul.f32 1.0, %v3325
    %3328 = vrot.lane.b32.xlu0 %v3162, 64
    %v3329 = vpop.permute.xlu0 %3328
    %v3331 = vmul.f32 %v3319, %v3329
    %v3332 = vmul.f32 %v3319, %v3320
    %3334 = vrot.lane.b32.xlu0 %v3332, 64
    %v3335 = vpop.permute.xlu0 %3334
    %v3337 = vadd.f32 %v3331, %v3335
    %v3338 = vtanh.pop %v3337
    %v3339 = vmul.f32 %v3326, %v3338
    %3341 = vrot.lane.b32.xlu0 %v3153, 64
    %v3342 = vpop.permute.xlu0 %3341
    %v3344 = vsel %vm1150, %v3339, %v3342
    %v3345 = vsel %vm1150, %v3337, %v3329
    %v3346 = vld [vmem:[#allocation2 + $0x70] sm:$0xf]
    %v3347 = vld [vmem:[#allocation2 + $0x78] sm:$0xf]
    %v3348 = vpack.c.bf16 %v3304, %v3304
    %v3350 = vsel %vm156, %v3348, 0
    %3352 = vmatprep.subr.bf16.mxu0 %v561
    %3353 = vmatpush1.bf16.msra.mxu0 %v560
    %3354 = vmatprep.subr.bf16.mxu0 %v563
    %3355 = vmatpush1.bf16.msra.mxu0 %v562
    %3356 = vmatprep.subr.bf16.mxu0 %v565
    %3357 = vmatpush1.bf16.msra.mxu0 %v564
    %3358 = vmatprep.subr.bf16.mxu0 %v567
    %3359 = vmatpush1.bf16.msra.mxu0 %v566
    %3360 = vmatprep.subr.bf16.mxu0 0
    %3361 = vmatpush1.bf16.msra.mxu0 0
    %3362 = vmatprep.subr.bf16.mxu0 0
    %3363 = vmatpush1.bf16.msra.mxu0 0
    %3364 = vmatprep.subr.bf16.mxu0 0
    %3365 = vmatpush1.bf16.msra.mxu0 0
    %3366 = vmatprep.subr.bf16.mxu0 0
    %3367 = vmatpush1.bf16.msra.mxu0 0
    %3368 = vmatprep.subr.bf16.mxu0 0
    %3369 = vmatpush1.bf16.msra.mxu0 0
    %3370 = vmatprep.subr.bf16.mxu0 0
    %3371 = vmatpush1.bf16.msra.mxu0 0
    %3372 = vmatprep.subr.bf16.mxu0 0
    %3373 = vmatpush1.bf16.msra.mxu0 0
    %3374 = vmatprep.subr.bf16.mxu0 0
    %3375 = vmatpush1.bf16.msra.mxu0 0
    %3376 = vmatprep.subr.bf16.mxu0 0
    %3377 = vmatpush1.bf16.msra.mxu0 0
    %3378 = vmatprep.subr.bf16.mxu0 0
    %3379 = vmatpush1.bf16.msra.mxu0 0
    %3380 = vmatprep.subr.bf16.mxu0 0
    %3381 = vmatpush1.bf16.msra.mxu0 0
    %3382 = vmatprep.subr.bf16.mxu0 0
    %3383 = vmatpush1.bf16.msra.mxu0 0
    %3384 = vmatprep.mubr.bf16.mxu0 0
    %3385 = vmatmul.mubr.bf16.gmra.mrb[0].mxu0 %v3350
    %v3386 = vpop.f32.mrb[0].mxu0
    %v3387 = vadd.f32 0.0, %v3386
    %v3388 = vpop.f32.mrb[0].mxu0
    %v3389 = vadd.f32 0.0, %v3388
    %v3390 = vpop.f32.mrb[0].mxu0
    %v3391 = vpop.f32.mrb[0].mxu0
    %3392 = vdwg.mxu0
    %v3393 = vadd.f32 %v3346, %v3387
    %v3394 = vadd.f32 %v3347, %v3389
    %v3395 = vld [vmem:[#allocation3] sm:$0xf0]
    %v3396 = vld [vmem:[#allocation3 + $0x8] sm:$0xf0]
    %v3397 = vpack.c.bf16 %v3344, %v3344
    %3399 = vrot.lane.b32.xlu0 %v3397, 64
    %v3400 = vpop.permute.xlu0 %3399
    %v3402 = vsel %vm156, %v3400, 0
    %3404 = vmatprep.subr.bf16.mxu0 %v585
    %3405 = vmatpush1.bf16.msra.mxu0 %v584
    %3406 = vmatprep.subr.bf16.mxu0 %v587
    %3407 = vmatpush1.bf16.msra.mxu0 %v586
    %3408 = vmatprep.subr.bf16.mxu0 %v589
    %3409 = vmatpush1.bf16.msra.mxu0 %v588
    %3410 = vmatprep.subr.bf16.mxu0 %v591
    %3411 = vmatpush1.bf16.msra.mxu0 %v590
    %3412 = vmatprep.subr.bf16.mxu0 0
    %3413 = vmatpush1.bf16.msra.mxu0 0
    %3414 = vmatprep.subr.bf16.mxu0 0
    %3415 = vmatpush1.bf16.msra.mxu0 0
    %3416 = vmatprep.subr.bf16.mxu0 0
    %3417 = vmatpush1.bf16.msra.mxu0 0
    %3418 = vmatprep.subr.bf16.mxu0 0
    %3419 = vmatpush1.bf16.msra.mxu0 0
    %3420 = vmatprep.subr.bf16.mxu0 0
    %3421 = vmatpush1.bf16.msra.mxu0 0
    %3422 = vmatprep.subr.bf16.mxu0 0
    %3423 = vmatpush1.bf16.msra.mxu0 0
    %3424 = vmatprep.subr.bf16.mxu0 0
    %3425 = vmatpush1.bf16.msra.mxu0 0
    %3426 = vmatprep.subr.bf16.mxu0 0
    %3427 = vmatpush1.bf16.msra.mxu0 0
    %3428 = vmatprep.subr.bf16.mxu0 0
    %3429 = vmatpush1.bf16.msra.mxu0 0
    %3430 = vmatprep.subr.bf16.mxu0 0
    %3431 = vmatpush1.bf16.msra.mxu0 0
    %3432 = vmatprep.subr.bf16.mxu0 0
    %3433 = vmatpush1.bf16.msra.mxu0 0
    %3434 = vmatprep.subr.bf16.mxu0 0
    %3435 = vmatpush1.bf16.msra.mxu0 0
    %3436 = vmatprep.mubr.bf16.mxu0 0
    %3437 = vmatmul.mubr.bf16.gmra.mrb[0].mxu0 %v3402
    %v3438 = vpop.f32.mrb[0].mxu0
    %v3439 = vadd.f32 0.0, %v3438
    %v3440 = vpop.f32.mrb[0].mxu0
    %v3441 = vadd.f32 0.0, %v3440
    %v3442 = vpop.f32.mrb[0].mxu0
    %v3443 = vpop.f32.mrb[0].mxu0
    %3444 = vdwg.mxu0
    %v3447 = vrot.slane %v3439, 4
    %v3448 = vrot.slane %v3441, 4
    %v3451 = vadd.f32 %v3395, %v3447
    %v3452 = vadd.f32 %v3396, %v3448
    %v3453 = vxor.u32 %v3393, 2147483648
    %v3454 = vmul.f32 %v3453, 1.442695
    %v3455 = vpow.pop %v3454
    %v3456 = vadd.f32 %v3455, 1.0
    %v3457 = vrcp.pop %v3456
    %v3458 = vmul.f32 1.0, %v3457
    %v3459 = vtanh.pop %v3394
    %v3460 = vxor.u32 %v3394, 2147483648
    %v3461 = vmul.f32 %v3460, 1.442695
    %v3462 = vpow.pop %v3461
    %v3463 = vadd.f32 %v3462, 1.0
    %v3464 = vrcp.pop %v3463
    %v3465 = vmul.f32 1.0, %v3464
    %3467 = vrot.lane.b32.xlu0 %v3313, 64
    %v3468 = vpop.permute.xlu0 %3467
    %v3470 = vmul.f32 %v3458, %v3468
    %v3471 = vmul.f32 %v3458, %v3459
    %3473 = vrot.lane.b32.xlu0 %v3471, 64
    %v3474 = vpop.permute.xlu0 %3473
    %v3476 = vadd.f32 %v3470, %v3474
    %v3477 = vtanh.pop %v3476
    %v3478 = vmul.f32 %v3465, %v3477
    %3480 = vrot.lane.b32.xlu0 %v3304, 64
    %v3481 = vpop.permute.xlu0 %3480
    %v3483 = vsel %vm999, %v3478, %v3481
    %v3484 = vsel %vm999, %v3476, %v3468
    %v3485 = vxor.u32 %v3451, 2147483648
    %v3486 = vmul.f32 %v3485, 1.442695
    %v3487 = vpow.pop %v3486
    %v3488 = vadd.f32 %v3487, 1.0
    %v3489 = vrcp.pop %v3488
    %v3490 = vmul.f32 1.0, %v3489
    %v3491 = vtanh.pop %v3452
    %v3492 = vxor.u32 %v3452, 2147483648
    %v3493 = vmul.f32 %v3492, 1.442695
    %v3494 = vpow.pop %v3493
    %v3495 = vadd.f32 %v3494, 1.0
    %v3496 = vrcp.pop %v3495
    %v3497 = vmul.f32 1.0, %v3496
    %v3499 = vrot.slane %v3345, 4
    %v3501 = vmul.f32 %v3490, %v3499
    %v3502 = vmul.f32 %v3490, %v3491
    %3504 = vrot.lane.b32.xlu0 %v3502, 64
    %v3505 = vpop.permute.xlu0 %3504
    %v3507 = vadd.f32 %v3501, %v3505
    %v3508 = vtanh.pop %v3507
    %v3509 = vmul.f32 %v3497, %v3508
    %v3511 = vrot.slane %v3509, 4
    %3512 = vrot.lane.b32.xlu0 %v3511, 64
    %v3513 = vpop.permute.xlu0 %3512
    %3516 = vrot.lane.b32.xlu0 %v3344, 64
    %v3517 = vpop.permute.xlu0 %3516
    %v3519 = vsel %vm942, %v3513, %v3517
    %v3521 = vrot.slane %v3507, 4
    %3522 = vrot.lane.b32.xlu0 %v3521, 64
    %v3523 = vpop.permute.xlu0 %3522
    %3525 = vrot.lane.b32.xlu0 %v3345, 64
    %v3526 = vpop.permute.xlu0 %3525
    %v3528 = vsel %vm942, %v3523, %v3526
    %v3529 = vld [vmem:[#allocation2 + $0x70] sm:$0xf0]
    %v3530 = vld [vmem:[#allocation2 + $0x78] sm:$0xf0]
    %v3531 = vpack.c.bf16 %v3483, %v3483
    %3533 = vrot.lane.b32.xlu0 %v3531, 64
    %v3534 = vpop.permute.xlu0 %3533
    %v3536 = vsel %vm156, %v3534, 0
    %3538 = vmatprep.subr.bf16.mxu0 %v561
    %3539 = vmatpush1.bf16.msra.mxu0 %v560
    %3540 = vmatprep.subr.bf16.mxu0 %v563
    %3541 = vmatpush1.bf16.msra.mxu0 %v562
    %3542 = vmatprep.subr.bf16.mxu0 %v565
    %3543 = vmatpush1.bf16.msra.mxu0 %v564
    %3544 = vmatprep.subr.bf16.mxu0 %v567
    %3545 = vmatpush1.bf16.msra.mxu0 %v566
    %3546 = vmatprep.subr.bf16.mxu0 0
    %3547 = vmatpush1.bf16.msra.mxu0 0
    %3548 = vmatprep.subr.bf16.mxu0 0
    %3549 = vmatpush1.bf16.msra.mxu0 0
    %3550 = vmatprep.subr.bf16.mxu0 0
    %3551 = vmatpush1.bf16.msra.mxu0 0
    %3552 = vmatprep.subr.bf16.mxu0 0
    %3553 = vmatpush1.bf16.msra.mxu0 0
    %3554 = vmatprep.subr.bf16.mxu0 0
    %3555 = vmatpush1.bf16.msra.mxu0 0
    %3556 = vmatprep.subr.bf16.mxu0 0
    %3557 = vmatpush1.bf16.msra.mxu0 0
    %3558 = vmatprep.subr.bf16.mxu0 0
    %3559 = vmatpush1.bf16.msra.mxu0 0
    %3560 = vmatprep.subr.bf16.mxu0 0
    %3561 = vmatpush1.bf16.msra.mxu0 0
    %3562 = vmatprep.subr.bf16.mxu0 0
    %3563 = vmatpush1.bf16.msra.mxu0 0
    %3564 = vmatprep.subr.bf16.mxu0 0
    %3565 = vmatpush1.bf16.msra.mxu0 0
    %3566 = vmatprep.subr.bf16.mxu0 0
    %3567 = vmatpush1.bf16.msra.mxu0 0
    %3568 = vmatprep.subr.bf16.mxu0 0
    %3569 = vmatpush1.bf16.msra.mxu0 0
    %3570 = vmatprep.mubr.bf16.mxu0 0
    %3571 = vmatmul.mubr.bf16.gmra.mrb[0].mxu0 %v3536
    %v3572 = vpop.f32.mrb[0].mxu0
    %v3573 = vadd.f32 0.0, %v3572
    %v3574 = vpop.f32.mrb[0].mxu0
    %v3575 = vadd.f32 0.0, %v3574
    %v3576 = vpop.f32.mrb[0].mxu0
    %v3577 = vpop.f32.mrb[0].mxu0
    %3578 = vdwg.mxu0
    %v3581 = vrot.slane %v3573, 4
    %v3582 = vrot.slane %v3575, 4
    %v3585 = vadd.f32 %v3529, %v3581
    %v3586 = vadd.f32 %v3530, %v3582
    %v3587 = vld [vmem:[#allocation3] sm:$0xf]
    %v3588 = vld [vmem:[#allocation3 + $0x8] sm:$0xf]
    %v3589 = vpack.c.bf16 %v3519, %v3519
    %v3591 = vsel %vm156, %v3589, 0
    %3593 = vmatprep.subr.bf16.mxu0 %v585
    %3594 = vmatpush1.bf16.msra.mxu0 %v584
    %3595 = vmatprep.subr.bf16.mxu0 %v587
    %3596 = vmatpush1.bf16.msra.mxu0 %v586
    %3597 = vmatprep.subr.bf16.mxu0 %v589
    %3598 = vmatpush1.bf16.msra.mxu0 %v588
    %3599 = vmatprep.subr.bf16.mxu0 %v591
    %3600 = vmatpush1.bf16.msra.mxu0 %v590
    %3601 = vmatprep.subr.bf16.mxu0 0
    %3602 = vmatpush1.bf16.msra.mxu0 0
    %3603 = vmatprep.subr.bf16.mxu0 0
    %3604 = vmatpush1.bf16.msra.mxu0 0
    %3605 = vmatprep.subr.bf16.mxu0 0
    %3606 = vmatpush1.bf16.msra.mxu0 0
    %3607 = vmatprep.subr.bf16.mxu0 0
    %3608 = vmatpush1.bf16.msra.mxu0 0
    %3609 = vmatprep.subr.bf16.mxu0 0
    %3610 = vmatpush1.bf16.msra.mxu0 0
    %3611 = vmatprep.subr.bf16.mxu0 0
    %3612 = vmatpush1.bf16.msra.mxu0 0
    %3613 = vmatprep.subr.bf16.mxu0 0
    %3614 = vmatpush1.bf16.msra.mxu0 0
    %3615 = vmatprep.subr.bf16.mxu0 0
    %3616 = vmatpush1.bf16.msra.mxu0 0
    %3617 = vmatprep.subr.bf16.mxu0 0
    %3618 = vmatpush1.bf16.msra.mxu0 0
    %3619 = vmatprep.subr.bf16.mxu0 0
    %3620 = vmatpush1.bf16.msra.mxu0 0
    %3621 = vmatprep.subr.bf16.mxu0 0
    %3622 = vmatpush1.bf16.msra.mxu0 0
    %3623 = vmatprep.subr.bf16.mxu0 0
    %3624 = vmatpush1.bf16.msra.mxu0 0
    %3625 = vmatprep.mubr.bf16.mxu0 0
    %3626 = vmatmul.mubr.bf16.gmra.mrb[0].mxu0 %v3591
    %v3627 = vpop.f32.mrb[0].mxu0
    %v3628 = vadd.f32 0.0, %v3627
    %v3629 = vpop.f32.mrb[0].mxu0
    %v3630 = vadd.f32 0.0, %v3629
    %v3631 = vpop.f32.mrb[0].mxu0
    %v3632 = vpop.f32.mrb[0].mxu0
    %3633 = vdwg.mxu0
    %v3634 = vadd.f32 %v3587, %v3628
    %v3635 = vadd.f32 %v3588, %v3630
    %v3636 = vxor.u32 %v3585, 2147483648
    %v3637 = vmul.f32 %v3636, 1.442695
    %v3638 = vpow.pop %v3637
    %v3639 = vadd.f32 %v3638, 1.0
    %v3640 = vrcp.pop %v3639
    %v3641 = vmul.f32 1.0, %v3640
    %v3642 = vtanh.pop %v3586
    %v3643 = vxor.u32 %v3586, 2147483648
    %v3644 = vmul.f32 %v3643, 1.442695
    %v3645 = vpow.pop %v3644
    %v3646 = vadd.f32 %v3645, 1.0
    %v3647 = vrcp.pop %v3646
    %v3648 = vmul.f32 1.0, %v3647
    %v3650 = vrot.slane %v3484, 4
    %v3652 = vmul.f32 %v3641, %v3650
    %v3653 = vmul.f32 %v3641, %v3642
    %3655 = vrot.lane.b32.xlu0 %v3653, 64
    %v3656 = vpop.permute.xlu0 %3655
    %v3658 = vadd.f32 %v3652, %v3656
    %v3659 = vtanh.pop %v3658
    %v3660 = vmul.f32 %v3648, %v3659
    %v3662 = vrot.slane %v3660, 4
    %3663 = vrot.lane.b32.xlu0 %v3662, 64
    %v3664 = vpop.permute.xlu0 %3663
    %3667 = vrot.lane.b32.xlu0 %v3483, 64
    %v3668 = vpop.permute.xlu0 %3667
    %v3670 = vsel %vm786, %v3664, %v3668
    %v3671 = vxor.u32 %v3634, 2147483648
    %v3672 = vmul.f32 %v3671, 1.442695
    %v3673 = vpow.pop %v3672
    %v3674 = vadd.f32 %v3673, 1.0
    %v3675 = vrcp.pop %v3674
    %v3676 = vmul.f32 1.0, %v3675
    %v3677 = vtanh.pop %v3635
    %v3678 = vxor.u32 %v3635, 2147483648
    %v3679 = vmul.f32 %v3678, 1.442695
    %v3680 = vpow.pop %v3679
    %v3681 = vadd.f32 %v3680, 1.0
    %v3682 = vrcp.pop %v3681
    %v3683 = vmul.f32 1.0, %v3682
    %3685 = vrot.lane.b32.xlu0 %v3528, 64
    %v3686 = vpop.permute.xlu0 %3685
    %v3688 = vmul.f32 %v3676, %v3686
    %v3689 = vmul.f32 %v3676, %v3677
    %3691 = vrot.lane.b32.xlu0 %v3689, 64
    %v3692 = vpop.permute.xlu0 %3691
    %v3694 = vadd.f32 %v3688, %v3692
    %v3695 = vtanh.pop %v3694
    %v3696 = vmul.f32 %v3683, %v3695
    %3698 = vrot.lane.b32.xlu0 %v3519, 64
    %v3699 = vpop.permute.xlu0 %3698
    %v3701 = vsel %vm741, %v3696, %v3699
    %v3702 = vld [vmem:[#allocation5] sm:$0x3]
    %v3703 = vld [vmem:[#allocation13] sm:$0xff]
    %v3704 = vld [vmem:[#allocation13 + $0x8] sm:$0xff]
    %v3705 = vld [vmem:[#allocation13 + $0x10] sm:$0xff]
    %v3706 = vld [vmem:[#allocation13 + $0x18] sm:$0xff]
    %v3707 = vld [vmem:[#allocation13 + $0x20] sm:$0xff]
    %v3708 = vld [vmem:[#allocation13 + $0x28] sm:$0xff]
    %v3709 = vld [vmem:[#allocation13 + $0x30] sm:$0xff]
    %v3710 = vld [vmem:[#allocation13 + $0x38] sm:$0xff]
    %v3711 = vld [vmem:[#allocation13 + $0x40] sm:$0xff]
    %v3712 = vld [vmem:[#allocation13 + $0x48] sm:$0xff]
    %v3713 = vld [vmem:[#allocation13 + $0x50] sm:$0xff]
    %v3714 = vld [vmem:[#allocation13 + $0x58] sm:$0xff]
    %v3715 = vld [vmem:[#allocation13 + $0x60] sm:$0xff]
    %v3716 = vld [vmem:[#allocation13 + $0x68] sm:$0xff]
    %v3717 = vld [vmem:[#allocation13 + $0x70] sm:$0xff]
    %v3718 = vld [vmem:[#allocation13 + $0x78] sm:$0xff]
    %v3719 = vld [vmem:[#allocation13 + $0x80] sm:$0xff]
    %v3720 = vld [vmem:[#allocation13 + $0x88] sm:$0xff]
    %v3721 = vld [vmem:[#allocation13 + $0x90] sm:$0xff]
    %v3722 = vld [vmem:[#allocation13 + $0x98] sm:$0xff]
    %v3723 = vld [vmem:[#allocation13 + $0xa0] sm:$0xff]
    %v3724 = vld [vmem:[#allocation13 + $0xa8] sm:$0xff]
    %v3725 = vld [vmem:[#allocation13 + $0xb0] sm:$0xff]
    %v3726 = vld [vmem:[#allocation13 + $0xb8] sm:$0xff]
    %v3727 = vld [vmem:[#allocation13 + $0xc0] sm:$0xff]
    %v3728 = vld [vmem:[#allocation13 + $0xc8] sm:$0xff]
    %v3729 = vld [vmem:[#allocation13 + $0xd0] sm:$0xff]
    %v3730 = vld [vmem:[#allocation13 + $0xd8] sm:$0xff]
    %v3731 = vld [vmem:[#allocation13 + $0xe0] sm:$0xff]
    %v3732 = vld [vmem:[#allocation13 + $0xe8] sm:$0xff]
    %v3733 = vld [vmem:[#allocation13 + $0xf0] sm:$0xff]
    %v3734 = vld [vmem:[#allocation13 + $0xf8] sm:$0xff]
    %v3735 = vld [vmem:[#allocation13 + $0x100] sm:$0xff]
    %v3736 = vld [vmem:[#allocation13 + $0x108] sm:$0xff]
    %v3737 = vld [vmem:[#allocation13 + $0x110] sm:$0xff]
    %v3738 = vld [vmem:[#allocation13 + $0x118] sm:$0xff]
    %v3739 = vld [vmem:[#allocation13 + $0x120] sm:$0xff]
    %v3740 = vld [vmem:[#allocation13 + $0x128] sm:$0xff]
    %v3741 = vld [vmem:[#allocation13 + $0x130] sm:$0xff]
    %v3742 = vld [vmem:[#allocation13 + $0x138] sm:$0xff]
    %v3743 = vld [vmem:[#allocation13 + $0x140] sm:$0xff]
    %v3744 = vld [vmem:[#allocation13 + $0x148] sm:$0xff]
    %v3745 = vld [vmem:[#allocation13 + $0x150] sm:$0xff]
    %v3746 = vld [vmem:[#allocation13 + $0x158] sm:$0xff]
    %v3747 = vld [vmem:[#allocation13 + $0x160] sm:$0xff]
    %v3748 = vld [vmem:[#allocation13 + $0x168] sm:$0xff]
    %v3749 = vld [vmem:[#allocation13 + $0x170] sm:$0xff]
    %v3750 = vld [vmem:[#allocation13 + $0x178] sm:$0xff]
    %v3751 = vpack.c.bf16 %v3704, %v3703
    %v3752 = vpack.c.bf16 %v3706, %v3705
    %v3753 = vpack.c.bf16 %v3708, %v3707
    %v3754 = vpack.c.bf16 %v3710, %v3709
    %v3755 = vpack.c.bf16 %v3712, %v3711
    %v3756 = vpack.c.bf16 %v3714, %v3713
    %v3757 = vpack.c.bf16 %v3716, %v3715
    %v3758 = vpack.c.bf16 %v3718, %v3717
    %v3759 = vpack.c.bf16 %v3720, %v3719
    %v3760 = vpack.c.bf16 %v3722, %v3721
    %v3761 = vpack.c.bf16 %v3724, %v3723
    %v3762 = vpack.c.bf16 %v3726, %v3725
    %v3763 = vpack.c.bf16 %v3728, %v3727
    %v3764 = vpack.c.bf16 %v3730, %v3729
    %v3765 = vpack.c.bf16 %v3732, %v3731
    %v3766 = vpack.c.bf16 %v3734, %v3733
    %v3767 = vpack.c.bf16 %v3736, %v3735
    %v3768 = vpack.c.bf16 %v3738, %v3737
    %v3769 = vpack.c.bf16 %v3740, %v3739
    %v3770 = vpack.c.bf16 %v3742, %v3741
    %v3771 = vpack.c.bf16 %v3744, %v3743
    %v3772 = vpack.c.bf16 %v3746, %v3745
    %v3773 = vpack.c.bf16 %v3748, %v3747
    %v3774 = vpack.c.bf16 %v3750, %v3749
    %v3775 = vpack.c.bf16 %v3702, %v3702
    %v3776 = vpack.c.bf16 %v3670, %v3670
    %v3778 = vsel %vm156, %v3776, 0
    %3780 = vmatprep.subr.bf16.mxu0 0
    %3781 = vmatpush1.bf16.msra.mxu0 %v3759
    %3782 = vmatprep.subr.bf16.mxu0 0
    %3783 = vmatpush1.bf16.msra.mxu0 %v3760
    %3784 = vmatprep.subr.bf16.mxu0 0
    %3785 = vmatpush1.bf16.msra.mxu0 %v3761
    %3786 = vmatprep.subr.bf16.mxu0 0
    %3787 = vmatpush1.bf16.msra.mxu0 %v3762
    %3788 = vmatprep.subr.bf16.mxu0 0
    %3789 = vmatpush1.bf16.msra.mxu0 0
    %3790 = vmatprep.subr.bf16.mxu0 0
    %3791 = vmatpush1.bf16.msra.mxu0 0
    %3792 = vmatprep.subr.bf16.mxu0 0
    %3793 = vmatpush1.bf16.msra.mxu0 0
    %3794 = vmatprep.subr.bf16.mxu0 0
    %3795 = vmatpush1.bf16.msra.mxu0 0
    %3796 = vmatprep.subr.bf16.mxu0 0
    %3797 = vmatpush1.bf16.msra.mxu0 0
    %3798 = vmatprep.subr.bf16.mxu0 0
    %3799 = vmatpush1.bf16.msra.mxu0 0
    %3800 = vmatprep.subr.bf16.mxu0 0
    %3801 = vmatpush1.bf16.msra.mxu0 0
    %3802 = vmatprep.subr.bf16.mxu0 0
    %3803 = vmatpush1.bf16.msra.mxu0 0
    %3804 = vmatprep.subr.bf16.mxu0 0
    %3805 = vmatpush1.bf16.msra.mxu0 0
    %3806 = vmatprep.subr.bf16.mxu0 0
    %3807 = vmatpush1.bf16.msra.mxu0 0
    %3808 = vmatprep.subr.bf16.mxu0 0
    %3809 = vmatpush1.bf16.msra.mxu0 0
    %3810 = vmatprep.subr.bf16.mxu0 0
    %3811 = vmatpush1.bf16.msra.mxu0 0
    %3812 = vmatprep.mubr.bf16.mxu0 0
    %3813 = vmatmul.mubr.bf16.gmra.mrb[0].mxu0 %v3778
    %v3814 = vpop.f32.mrb[0].mxu0
    %v3815 = vadd.f32 0.0, %v3814
    %v3816 = vpop.f32.mrb[0].mxu0
    %v3817 = vpop.f32.mrb[0].mxu0
    %v3818 = vpop.f32.mrb[0].mxu0
    %3819 = vdwg.mxu0
    %3820 = vmatprep.subr.bf16.mxu0 0
    %3821 = vmatpush1.bf16.msra.mxu0 %v3751
    %3822 = vmatprep.subr.bf16.mxu0 0
    %3823 = vmatpush1.bf16.msra.mxu0 %v3752
    %3824 = vmatprep.subr.bf16.mxu0 0
    %3825 = vmatpush1.bf16.msra.mxu0 %v3753
    %3826 = vmatprep.subr.bf16.mxu0 0
    %3827 = vmatpush1.bf16.msra.mxu0 %v3754
    %3828 = vmatprep.subr.bf16.mxu0 0
    %3829 = vmatpush1.bf16.msra.mxu0 %v3755
    %3830 = vmatprep.subr.bf16.mxu0 0
    %3831 = vmatpush1.bf16.msra.mxu0 %v3756
    %3832 = vmatprep.subr.bf16.mxu0 0
    %3833 = vmatpush1.bf16.msra.mxu0 %v3757
    %3834 = vmatprep.subr.bf16.mxu0 0
    %3835 = vmatpush1.bf16.msra.mxu0 %v3758
    %3836 = vmatprep.subr.bf16.mxu0 0
    %3837 = vmatpush1.bf16.msra.mxu0 0
    %3838 = vmatprep.subr.bf16.mxu0 0
    %3839 = vmatpush1.bf16.msra.mxu0 0
    %3840 = vmatprep.subr.bf16.mxu0 0
    %3841 = vmatpush1.bf16.msra.mxu0 0
    %3842 = vmatprep.subr.bf16.mxu0 0
    %3843 = vmatpush1.bf16.msra.mxu0 0
    %3844 = vmatprep.subr.bf16.mxu0 0
    %3845 = vmatpush1.bf16.msra.mxu0 0
    %3846 = vmatprep.subr.bf16.mxu0 0
    %3847 = vmatpush1.bf16.msra.mxu0 0
    %3848 = vmatprep.subr.bf16.mxu0 0
    %3849 = vmatpush1.bf16.msra.mxu0 0
    %3850 = vmatprep.subr.bf16.mxu0 0
    %3851 = vmatpush1.bf16.msra.mxu0 0
    %3852 = vmatprep.mubr.bf16.mxu0 0
    %3853 = vmatmul.mubr.bf16.gmra.mrb[0].mxu0 %v3775
    %v3854 = vpop.f32.mrb[0].mxu0
    %v3855 = vadd.f32 %v3815, %v3854
    %v3856 = vpop.f32.mrb[0].mxu0
    %v3857 = vpop.f32.mrb[0].mxu0
    %v3858 = vpop.f32.mrb[0].mxu0
    %3859 = vdwg.mxu0
    %v3860 = vpack.c.bf16 %v3701, %v3701
    %3862 = vrot.lane.b32.xlu0 %v3860, 64
    %v3863 = vpop.permute.xlu0 %3862
    %v3865 = vsel %vm156, %v3863, 0
    %3867 = vmatprep.subr.bf16.mxu0 0
    %3868 = vmatpush1.bf16.msra.mxu0 %v3763
    %3869 = vmatprep.subr.bf16.mxu0 0
    %3870 = vmatpush1.bf16.msra.mxu0 %v3764
    %3871 = vmatprep.subr.bf16.mxu0 0
    %3872 = vmatpush1.bf16.msra.mxu0 %v3765
    %3873 = vmatprep.subr.bf16.mxu0 0
    %3874 = vmatpush1.bf16.msra.mxu0 %v3766
    %3875 = vmatprep.subr.bf16.mxu0 0
    %3876 = vmatpush1.bf16.msra.mxu0 0
    %3877 = vmatprep.subr.bf16.mxu0 0
    %3878 = vmatpush1.bf16.msra.mxu0 0
    %3879 = vmatprep.subr.bf16.mxu0 0
    %3880 = vmatpush1.bf16.msra.mxu0 0
    %3881 = vmatprep.subr.bf16.mxu0 0
    %3882 = vmatpush1.bf16.msra.mxu0 0
    %3883 = vmatprep.subr.bf16.mxu0 0
    %3884 = vmatpush1.bf16.msra.mxu0 0
    %3885 = vmatprep.subr.bf16.mxu0 0
    %3886 = vmatpush1.bf16.msra.mxu0 0
    %3887 = vmatprep.subr.bf16.mxu0 0
    %3888 = vmatpush1.bf16.msra.mxu0 0
    %3889 = vmatprep.subr.bf16.mxu0 0
    %3890 = vmatpush1.bf16.msra.mxu0 0
    %3891 = vmatprep.subr.bf16.mxu0 0
    %3892 = vmatpush1.bf16.msra.mxu0 0
    %3893 = vmatprep.subr.bf16.mxu0 0
    %3894 = vmatpush1.bf16.msra.mxu0 0
    %3895 = vmatprep.subr.bf16.mxu0 0
    %3896 = vmatpush1.bf16.msra.mxu0 0
    %3897 = vmatprep.subr.bf16.mxu0 0
    %3898 = vmatpush1.bf16.msra.mxu0 0
    %3899 = vmatprep.mubr.bf16.mxu0 0
    %3900 = vmatmul.mubr.bf16.gmra.mrb[0].mxu0 %v3865
    %v3901 = vpop.f32.mrb[0].mxu0
    %v3902 = vadd.f32 0.0, %v3901
    %v3903 = vpop.f32.mrb[0].mxu0
    %v3904 = vpop.f32.mrb[0].mxu0
    %v3905 = vpop.f32.mrb[0].mxu0
    %3906 = vdwg.mxu0
    %v3907 = vadd.f32 %v3855, %v3902
    %v3909 = vrot.slane %v3776, 1
    %v3911 = vsel %vm156, %v3909, 0
    %3913 = vmatprep.subr.bf16.mxu0 0
    %3914 = vmatpush1.bf16.msra.mxu0 %v3767
    %3915 = vmatprep.subr.bf16.mxu0 0
    %3916 = vmatpush1.bf16.msra.mxu0 %v3768
    %3917 = vmatprep.subr.bf16.mxu0 0
    %3918 = vmatpush1.bf16.msra.mxu0 %v3769
    %3919 = vmatprep.subr.bf16.mxu0 0
    %3920 = vmatpush1.bf16.msra.mxu0 %v3770
    %3921 = vmatprep.subr.bf16.mxu0 0
    %3922 = vmatpush1.bf16.msra.mxu0 0
    %3923 = vmatprep.subr.bf16.mxu0 0
    %3924 = vmatpush1.bf16.msra.mxu0 0
    %3925 = vmatprep.subr.bf16.mxu0 0
    %3926 = vmatpush1.bf16.msra.mxu0 0
    %3927 = vmatprep.subr.bf16.mxu0 0
    %3928 = vmatpush1.bf16.msra.mxu0 0
    %3929 = vmatprep.subr.bf16.mxu0 0
    %3930 = vmatpush1.bf16.msra.mxu0 0
    %3931 = vmatprep.subr.bf16.mxu0 0
    %3932 = vmatpush1.bf16.msra.mxu0 0
    %3933 = vmatprep.subr.bf16.mxu0 0
    %3934 = vmatpush1.bf16.msra.mxu0 0
    %3935 = vmatprep.subr.bf16.mxu0 0
    %3936 = vmatpush1.bf16.msra.mxu0 0
    %3937 = vmatprep.subr.bf16.mxu0 0
    %3938 = vmatpush1.bf16.msra.mxu0 0
    %3939 = vmatprep.subr.bf16.mxu0 0
    %3940 = vmatpush1.bf16.msra.mxu0 0
    %3941 = vmatprep.subr.bf16.mxu0 0
    %3942 = vmatpush1.bf16.msra.mxu0 0
    %3943 = vmatprep.subr.bf16.mxu0 0
    %3944 = vmatpush1.bf16.msra.mxu0 0
    %3945 = vmatprep.mubr.bf16.mxu0 0
    %3946 = vmatmul.mubr.bf16.gmra.mrb[0].mxu0 %v3911
    %v3947 = vpop.f32.mrb[0].mxu0
    %v3948 = vadd.f32 0.0, %v3947
    %v3949 = vpop.f32.mrb[0].mxu0
    %v3950 = vpop.f32.mrb[0].mxu0
    %v3951 = vpop.f32.mrb[0].mxu0
    %3952 = vdwg.mxu0
    %v3953 = vadd.f32 %v3907, %v3948
    %v3954 = vrot.slane %v3860, 1
    %3955 = vrot.lane.b32.xlu0 %v3954, 64
    %v3956 = vpop.permute.xlu0 %3955
    %v3958 = vsel %vm156, %v3956, 0
    %3960 = vmatprep.subr.bf16.mxu0 0
    %3961 = vmatpush1.bf16.msra.mxu0 %v3771
    %3962 = vmatprep.subr.bf16.mxu0 0
    %3963 = vmatpush1.bf16.msra.mxu0 %v3772
    %3964 = vmatprep.subr.bf16.mxu0 0
    %3965 = vmatpush1.bf16.msra.mxu0 %v3773
    %3966 = vmatprep.subr.bf16.mxu0 0
    %3967 = vmatpush1.bf16.msra.mxu0 %v3774
    %3968 = vmatprep.subr.bf16.mxu0 0
    %3969 = vmatpush1.bf16.msra.mxu0 0
    %3970 = vmatprep.subr.bf16.mxu0 0
    %3971 = vmatpush1.bf16.msra.mxu0 0
    %3972 = vmatprep.subr.bf16.mxu0 0
    %3973 = vmatpush1.bf16.msra.mxu0 0
    %3974 = vmatprep.subr.bf16.mxu0 0
    %3975 = vmatpush1.bf16.msra.mxu0 0
    %3976 = vmatprep.subr.bf16.mxu0 0
    %3977 = vmatpush1.bf16.msra.mxu0 0
    %3978 = vmatprep.subr.bf16.mxu0 0
    %3979 = vmatpush1.bf16.msra.mxu0 0
    %3980 = vmatprep.subr.bf16.mxu0 0
    %3981 = vmatpush1.bf16.msra.mxu0 0
    %3982 = vmatprep.subr.bf16.mxu0 0
    %3983 = vmatpush1.bf16.msra.mxu0 0
    %3984 = vmatprep.subr.bf16.mxu0 0
    %3985 = vmatpush1.bf16.msra.mxu0 0
    %3986 = vmatprep.subr.bf16.mxu0 0
    %3987 = vmatpush1.bf16.msra.mxu0 0
    %3988 = vmatprep.subr.bf16.mxu0 0
    %3989 = vmatpush1.bf16.msra.mxu0 0
    %3990 = vmatprep.subr.bf16.mxu0 0
    %3991 = vmatpush1.bf16.msra.mxu0 0
    %3992 = vmatprep.mubr.bf16.mxu0 0
    %3993 = vmatmul.mubr.bf16.gmra.mrb[0].mxu0 %v3958
    %v3994 = vpop.f32.mrb[0].mxu0
    %v3995 = vadd.f32 0.0, %v3994
    %v3996 = vpop.f32.mrb[0].mxu0
    %v3997 = vpop.f32.mrb[0].mxu0
    %v3998 = vpop.f32.mrb[0].mxu0
    %3999 = vdwg.mxu0
    %v4000 = vadd.f32 %v3953, %v3995
    %v4001 = vld [vmem:[%s11] sm:$0x1]
    %v4003 = vlaneseq
    %v4004 = vshrl.u32 %v4003, 7
    %v4005 = vsub.s32 0, %v4004
    %v4006 = vrot.slane %v4001, %v4005
    %v4008 = vadd.f32 %v4000, %v4006
    %v4009 = vmax.f32 %v4008, 0.0
    %v4010 = vpack.c.bf16 %v4009, %v4009
    %v4011 = vld [vmem:[%s12] sm:$0xff]
    %v4012 = vld [vmem:[%s12 + $0x8] sm:$0xff]
    %v4013 = vld [vmem:[%s12 + $0x10] sm:$0xff]
    %v4014 = vld [vmem:[%s12 + $0x18] sm:$0xff]
    %v4015 = vld [vmem:[%s12 + $0x20] sm:$0xff]
    %v4016 = vld [vmem:[%s12 + $0x28] sm:$0xff]
    %v4017 = vld [vmem:[%s12 + $0x30] sm:$0xff]
    %v4018 = vld [vmem:[%s12 + $0x38] sm:$0xff]
    %v4019 = vld [vmem:[%s12 + $0x40] sm:$0xff]
    %v4020 = vld [vmem:[%s12 + $0x48] sm:$0xff]
    %v4021 = vld [vmem:[%s12 + $0x50] sm:$0xff]
    %v4022 = vld [vmem:[%s12 + $0x58] sm:$0xff]
    %v4023 = vld [vmem:[%s12 + $0x60] sm:$0xff]
    %v4024 = vld [vmem:[%s12 + $0x68] sm:$0xff]
    %v4025 = vld [vmem:[%s12 + $0x70] sm:$0xff]
    %v4026 = vld [vmem:[%s12 + $0x78] sm:$0xff]
    %v4027 = vpack.c.bf16 %v4012, %v4011
    %v4028 = vpack.c.bf16 %v4014, %v4013
    %v4029 = vpack.c.bf16 %v4016, %v4015
    %v4030 = vpack.c.bf16 %v4018, %v4017
    %v4031 = vpack.c.bf16 %v4020, %v4019
    %v4032 = vpack.c.bf16 %v4022, %v4021
    %v4033 = vpack.c.bf16 %v4024, %v4023
    %v4034 = vpack.c.bf16 %v4026, %v4025
    %v4035 = vld [vmem:[#allocation4] sm:$0x1]
    %v4037 = vlaneseq
    %v4038 = vshrl.u32 %v4037, 7
    %v4039 = vsub.s32 0, %v4038
    %v4040 = vrot.slane %v4035, %v4039
    %4042 = vmatprep.subr.bf16.mxu0 0
    %4043 = vmatpush1.bf16.msra.mxu0 %v4027
    %4044 = vmatprep.subr.bf16.mxu0 0
    %4045 = vmatpush1.bf16.msra.mxu0 %v4028
    %4046 = vmatprep.subr.bf16.mxu0 0
    %4047 = vmatpush1.bf16.msra.mxu0 %v4029
    %4048 = vmatprep.subr.bf16.mxu0 0
    %4049 = vmatpush1.bf16.msra.mxu0 %v4030
    %4050 = vmatprep.subr.bf16.mxu0 0
    %4051 = vmatpush1.bf16.msra.mxu0 %v4031
    %4052 = vmatprep.subr.bf16.mxu0 0
    %4053 = vmatpush1.bf16.msra.mxu0 %v4032
    %4054 = vmatprep.subr.bf16.mxu0 0
    %4055 = vmatpush1.bf16.msra.mxu0 %v4033
    %4056 = vmatprep.subr.bf16.mxu0 0
    %4057 = vmatpush1.bf16.msra.mxu0 %v4034
    %4058 = vmatprep.subr.bf16.mxu0 0
    %4059 = vmatpush1.bf16.msra.mxu0 0
    %4060 = vmatprep.subr.bf16.mxu0 0
    %4061 = vmatpush1.bf16.msra.mxu0 0
    %4062 = vmatprep.subr.bf16.mxu0 0
    %4063 = vmatpush1.bf16.msra.mxu0 0
    %4064 = vmatprep.subr.bf16.mxu0 0
    %4065 = vmatpush1.bf16.msra.mxu0 0
    %4066 = vmatprep.subr.bf16.mxu0 0
    %4067 = vmatpush1.bf16.msra.mxu0 0
    %4068 = vmatprep.subr.bf16.mxu0 0
    %4069 = vmatpush1.bf16.msra.mxu0 0
    %4070 = vmatprep.subr.bf16.mxu0 0
    %4071 = vmatpush1.bf16.msra.mxu0 0
    %4072 = vmatprep.subr.bf16.mxu0 0
    %4073 = vmatpush1.bf16.msra.mxu0 0
    %4074 = vmatprep.mubr.bf16.mxu0 0
    %4075 = vmatmul.mubr.bf16.gmra.mrb[0].mxu0 %v4010
    %v4076 = vpop.f32.mrb[0].mxu0
    %v4077 = vadd.f32 %v4040, %v4076
    %v4078 = vpop.f32.mrb[0].mxu0
    %v4079 = vpop.f32.mrb[0].mxu0
    %v4080 = vpop.f32.mrb[0].mxu0
    %4081 = vdwg.mxu0
    %v4082 = vxor.u32 %v4077, 2147483648
    %v4083 = vmul.f32 %v4082, 1.442695
    %v4084 = vpow.pop %v4083
    %v4085 = vadd.f32 %v4084, 1.0
    %v4086 = vrcp.pop %v4085
    %v4087 = vmul.f32 1.0, %v4086
    %vm4088 = vcmask 1024
    %4089 = vst.msk [vmem:[%s14] sm:$0x3] %vm4088, %v4087
    // Predicated region
    $region82: #{tpu_custom_call.1} parent=1 // pred_check
      _
    $region83: #{tpu_custom_call.1} parent=1 // pred_check_branch
      %4091 = sbr.rel (0) target = $region85
    $region84: #{tpu_custom_call.1} parent=1 // pred_region
      _
    $region85: #{tpu_custom_call.1} parent=1 // pred_fallthru
      _
    // Predicated region
    $region86: #{tpu_custom_call.1} parent=1 // pred_check
      _
    $region87: #{tpu_custom_call.1} parent=1 // pred_check_branch
      %4093 = sbr.rel (0) target = $region89
    $region88: #{tpu_custom_call.1} parent=1 // pred_region
      _
    $region89: #{tpu_custom_call.1} parent=1 // pred_fallthru
      _
    %4094 = vsyncpa [#allocation6], 1
    %4095 = vsyncpa [#allocation8], 1
    %4096 = vsyncpa [#allocation11], 1
    %4097 = vsyncpa [#allocation14], 1

</llo_original>
